<compile_context>
chip_gen: v5e
topology: v5e:2x2
jax: 0.10.0
libtpu: 0.0.40
codegen_flags: <defaults>
</compile_context>

<pallas_src>
import math
import numpy as np
import jax
import jax.numpy as jnp
from jax.experimental import pallas as pl
from jax.experimental.pallas import tpu as pltpu

# ---- static architecture constants (fixed by x.view(-1, 16*5*5)) ----
K = 5                                       # conv kernel size
H1, CIN1, COUT1 = 32, 3, 6
OH1, OW1 = H1 - K + 1, H1 - K + 1           # 28, 28
PH1, PW1 = OH1 // 2, OW1 // 2               # 14, 14
H2, CIN2, COUT2 = PH1, COUT1, 16            # 14, 6, 16
OH2, OW2 = H2 - K + 1, H2 - K + 1           # 10, 10
PH2, PW2 = OH2 // 2, OW2 // 2               # 5, 5
LANES = 128                                 # every activation padded to 128 lanes


# ---------------------------- fused Pallas kernel ----------------------------

def net_kernel(x_ref,
               w1_ref, b1_ref, r1e_ref, r1o_ref,
               w2_ref, b2_ref, r2e_ref, r2o_ref,
               wf1_ref, bf1_ref, wf2_ref, bf2_ref, wf3_ref, bf3_ref,
               o_ref):
    """Whole forward pass for a tile of BT images, VMEM-resident end to end.

    x_ref: (BT*32, 128) bf16 slab -- BT images stacked along rows (32-row bands),
    each row holding the NHWC-interleaved 96 pixels zero-padded to 128 lanes.
    Convs are single large-K MXU matmuls (Toeplitz weights with the 2x2 column
    pool folded in, even/odd pooled columns side by side).  Row pooling is two
    one-hot selection matmuls that also compact the batched rows.  MLP is
    batched over images.  Only a dense (BT, 128) f32 logit slab goes to HBM.
    """
    f32, bf16 = jnp.float32, jnp.bfloat16
    x = x_ref[...]                                            # (BT*32, 128) bf16
    bt = x.shape[0] // H1
    m1 = x.shape[0] - (K - 1)

    # ---- conv1 (+ fused even/odd column pool): one (m1, 640)@(640, 256) dot ----
    xs = jnp.concatenate([x[kh:kh + m1, :] for kh in range(K)], axis=1)
    c1 = jnp.dot(xs, w1_ref[...], preferred_element_type=f32)             # (m1, 256)
    y1 = jnp.maximum(jnp.maximum(c1[:, :LANES], c1[:, LANES:]) + b1_ref[...], 0.0)
    y1 = y1.astype(bf16)                                                  # (m1, 128)

    # ---- 2x2 row pool 1: one-hot selection matmuls -> compact (BT*14, 128) ----
    p1 = jnp.maximum(
        jnp.dot(r1e_ref[...], y1, preferred_element_type=f32),
        jnp.dot(r1o_ref[...], y1, preferred_element_type=f32)).astype(bf16)

    # ---- conv2 (+ fused even/odd column pool) ----
    m2 = p1.shape[0] - (K - 1)
    p1s = jnp.concatenate([p1[kh:kh + m2, :] for kh in range(K)], axis=1)
    c2 = jnp.dot(p1s, w2_ref[...], preferred_element_type=f32)            # (m2, 256)
    y2 = jnp.maximum(jnp.maximum(c2[:, :LANES], c2[:, LANES:]) + b2_ref[...], 0.0)
    y2 = y2.astype(bf16)

    # ---- 2x2 row pool 2 -> (5*BT, 128), rows ordered s-major (row = s*BT + img) ----
    p2 = jnp.maximum(
        jnp.dot(r2e_ref[...], y2, preferred_element_type=f32),
        jnp.dot(r2o_ref[...], y2, preferred_element_type=f32)).astype(bf16)

    # ---- MLP, batched over the BT images (flatten-free FC1) ----
    h = jnp.zeros((bt, LANES), f32)
    for s in range(PH2):
        h = h + jnp.dot(p2[s * bt:(s + 1) * bt, :], wf1_ref[s],
                        preferred_element_type=f32)
    h = jnp.maximum(h + bf1_ref[...], 0.0).astype(bf16)
    h = jnp.maximum(jnp.dot(h, wf2_ref[...], preferred_element_type=f32)
                    + bf2_ref[...], 0.0).astype(bf16)
    logits = jnp.dot(h, wf3_ref[...], preferred_element_type=f32) + bf3_ref[...]

    o_ref[...] = logits                                       # (BT, 128) f32, lane-dense


# ---------------------- one-time parameter preparation ----------------------

def _toeplitz_stack(w_oihw, w_in):
    """Per-kh Toeplitz matrices: (K, w_in*Cin, OW*Cout) with
    T[kh, w*Cin+ci, ow*Cout+co] = w[co, ci, kh, w-ow] for 0 <= w-ow < K."""
    cout, cin, k, _ = w_oihw.shape
    ow = w_in - k + 1
    w_kkio = jnp.transpose(w_oihw, (2, 3, 1, 0)).astype(jnp.float32)  # (kh,kw,ci,co)
    mats = []
    for kh in range(k):
        m = jnp.zeros((w_in, cin, ow, cout), jnp.float32)
        for kw in range(k):
            sel = np.zeros((w_in, ow), np.float32)
            sel[np.arange(ow) + kw, np.arange(ow)] = 1.0
            m = m + jnp.asarray(sel)[:, None, :, None] * w_kkio[kh, kw][:, None, :]
        mats.append(m.reshape(w_in * cin, ow * cout))
    return jnp.stack(mats)


def _col_pool_mats(ow, c):
    pw = ow // 2
    e = np.zeros((ow * c, pw * c), np.float32)
    o = np.zeros((ow * c, pw * c), np.float32)
    for p in range(pw):
        for ch in range(c):
            e[(2 * p) * c + ch, p * c + ch] = 1.0
            o[(2 * p + 1) * c + ch, p * c + ch] = 1.0
    return jnp.asarray(e), jnp.asarray(o)


def _conv_pool_weight(w_oihw, w_in):
    """(K*128, 256) concat weight: 128-row block per kh (first w_in*Cin rows valid);
    output cols [0 : PW*Cout] = even-column-pooled conv, [128 : 128+PW*Cout] = odd."""
    cout, cin, k, _ = map(int, w_oihw.shape)
    ow = w_in - k + 1
    pw = ow // 2
    t = _toeplitz_stack(w_oihw, w_in)                       # (k, w_in*cin, ow*cout)
    se, so = _col_pool_mats(ow, cout)                       # (ow*cout, pw*cout)
    te = jnp.einsum('kij,jl->kil', t, se)                   # (k, w_in*cin, pw*cout)
    to = jnp.einsum('kij,jl->kil', t, so)
    kin, npw = w_in * cin, pw * cout
    cat = jnp.zeros((k, LANES, 2 * LANES), jnp.float32)
    cat = cat.at[:, :kin, :npw].set(te)
    cat = cat.at[:, :kin, LANES:LANES + npw].set(to)
    return cat.reshape(k * LANES, 2 * LANES)


def _row_pool_select(bt, in_band, out_band, m_in, s_major):
    """One-hot matrices (bt*out_band, m_in) picking even / odd rows of each 2x2
    pool pair; also compacts the per-image bands (garbage rows never selected)."""
    e = np.zeros((bt * out_band, m_in), np.float32)
    o = np.zeros((bt * out_band, m_in), np.float32)
    for i in range(bt):
        for p in range(out_band):
            row = p * bt + i if s_major else i * out_band + p
            e[row, i * in_band + 2 * p] = 1.0
            o[row, i * in_band + 2 * p + 1] = 1.0
    return jnp.asarray(e), jnp.asarray(o)


def prepare_params(params, bt):
    """One-time host-side preprocessing for a batch tile of `bt` images — NOT
    inside the per-call jit.  All MXU operands are cast to bf16 (f32 accum)."""
    f32, bf16 = jnp.float32, jnp.bfloat16
    w1c = _conv_pool_weight(params["conv1_w"], H1).astype(bf16)       # (640, 256)
    w2c = _conv_pool_weight(params["conv2_w"], H2).astype(bf16)       # (640, 256)
    b1c = jnp.zeros((1, LANES), f32).at[0, :PW1 * COUT1].set(
        jnp.tile(params["conv1_b"].astype(f32), PW1))
    b2c = jnp.zeros((1, LANES), f32).at[0, :PW2 * COUT2].set(
        jnp.tile(params["conv2_b"].astype(f32), PW2))

    m1 = bt * H1 - (K - 1)
    m2 = bt * PH1 - (K - 1)
    r1e, r1o = _row_pool_select(bt, H1, PH1, m1, s_major=False)
    r2e, r2o = _row_pool_select(bt, PH1, PH2, m2, s_major=True)
    r1e, r1o, r2e, r2o = (a.astype(bf16) for a in (r1e, r1o, r2e, r2o))

    # FC1: permute torch's NCHW-flatten columns (c*25 + h*5 + w) to the kernel's
    # (h, w*16 + c) layout; one (128, 128) slab per pooled row h, 120 -> 128 pad.
    w1p = jnp.transpose(params["w1"].reshape(120, COUT2, PH2, PW2),
                        (2, 3, 1, 0)).reshape(PH2, PW2 * COUT2, 120)
    wf1 = jnp.zeros((PH2, LANES, LANES), jnp.float32).at[:, :PW2 * COUT2, :120].set(w1p)
    bf1 = jnp.zeros((1, LANES), f32).at[0, :120].set(params["b1"].astype(f32))
    wf2 = jnp.zeros((LANES, LANES), jnp.float32).at[:120, :84].set(params["w2"].T)
    bf2 = jnp.zeros((1, LANES), f32).at[0, :84].set(params["b2"].astype(f32))
    wf3 = jnp.zeros((LANES, LANES), jnp.float32).at[:84, :10].set(params["w3"].T)
    bf3 = jnp.zeros((1, LANES), f32).at[0, :10].set(params["b3"].astype(f32))

    return (w1c, b1c, r1e, r1o, w2c, b2c, r2e, r2o,
            wf1.astype(bf16), bf1, wf2.astype(bf16), bf2, wf3.astype(bf16), bf3)


def pick_batch_tile(batch):
    """Images per grid step.  Keep grid >= 2 where possible (v7x: 2 TensorCores);
    cap at 8 so the one-hot row-pool selection matrices (O(BT^2)) stay tiny."""
    return max(1, min(8, -(-batch // 2)))


# ---------------------------- jitted forward ----------------------------

@jax.jit
def net_forward(x_nchw, prep):
    (w1c, b1c, r1e, r1o, w2c, b2c, r2e, r2o,
     wf1, bf1, wf2, bf2, wf3, bf3) = prep
    bt = r1e.shape[0] // PH1                  # static: encoded in the prep shapes
    b = x_nchw.shape[0]
    grid = int(pl.cdiv(b, bt))
    bp = grid * bt
    x = x_nchw
    if bp > b:
        x = jnp.pad(x, ((0, bp - b), (0, 0), (0, 0), (0, 0)))
    # NCHW -> per-image (32, 96) NHWC slab, zero-padded to 128 lanes, bf16,
    # BT images stacked per grid step along the sublane/M dimension.
    # TODO(synk): the NCHW->NHWC transpose is still one fused XLA pass over x
    # outside the kernel; folding it into the kernel's input DMA would remove it.
    x = jnp.transpose(x, (0, 2, 3, 1)).reshape(bp, H1, H1 * CIN1)
    x = jnp.pad(x, ((0, 0), (0, 0), (0, LANES - H1 * CIN1))).astype(jnp.bfloat16)
    x = x.reshape(grid, bt * H1, LANES)

    weights = (w1c, b1c, r1e, r1o, w2c, b2c, r2e, r2o,
               wf1, bf1, wf2, bf2, wf3, bf3)
    in_specs = [pl.BlockSpec((None, bt * H1, LANES), lambda g: (g, 0, 0))]
    in_specs += [pl.BlockSpec(w.shape, lambda g, _z=(0,) * w.ndim: _z)
                 for w in weights]

    out = pl.pallas_call(
        net_kernel,
        out_shape=jax.ShapeDtypeStruct((grid, bt, LANES), jnp.float32),
        grid_spec=pltpu.PrefetchScalarGridSpec(
            num_scalar_prefetch=0,
            grid=(grid,),
            in_specs=in_specs,
            out_specs=pl.BlockSpec((None, bt, LANES), lambda g: (g, 0, 0)),
        ),
        compiler_params=pltpu.CompilerParams(
            dimension_semantics=("parallel",)),
    )(x, *weights)
    return out.reshape(bp, LANES)[:b, :10]


# ---------------------------- pure-JAX reference ----------------------------

def ref_forward(x, params):
    def conv(x, w, b):
        y = jax.lax.conv_general_dilated(
            x, w, window_strides=(1, 1), padding="VALID",
            dimension_numbers=("NCHW", "OIHW", "NCHW"))
        return y + b[None, :, None, None]

    def pool(x):
        return jax.lax.reduce_window(x, -jnp.inf, jax.lax.max,
                                     (1, 1, 2, 2), (1, 1, 2, 2), "VALID")

    y = pool(jax.nn.relu(conv(x, params["conv1_w"], params["conv1_b"])))
    y = pool(jax.nn.relu(conv(y, params["conv2_w"], params["conv2_b"])))
    y = y.reshape(y.shape[0], -1)
    y = jax.nn.relu(y @ params["w1"].T + params["b1"])
    y = jax.nn.relu(y @ params["w2"].T + params["b2"])
    return y @ params["w3"].T + params["b3"]


# ---------------------------- main ----------------------------

if __name__ == "__main__":
    key = jax.random.PRNGKey(0)
    keys = jax.random.split(key, 11)

    def rnd(k, shape, fan_in):
        return jax.random.normal(k, shape, dtype=jnp.float32) * (1.0 / math.sqrt(fan_in))

    params = dict(
        conv1_w=rnd(keys[0], (6, 3, 5, 5), 3 * 5 * 5),
        conv1_b=rnd(keys[1], (6,), 3 * 5 * 5),
        conv2_w=rnd(keys[2], (16, 6, 5, 5), 6 * 5 * 5),
        conv2_b=rnd(keys[3], (16,), 6 * 5 * 5),
        w1=rnd(keys[4], (120, 400), 400),
        b1=rnd(keys[5], (120,), 400),
        w2=rnd(keys[6], (84, 120), 120),
        b2=rnd(keys[7], (84,), 120),
        w3=rnd(keys[8], (10, 84), 84),
        b3=rnd(keys[9], (10,), 84),
    )
    # Input forced to 32x32 by the x.view(-1, 16*5*5) flatten; small batch = 8
    # (BT = 4 images per grid step -> grid = 2 parallel steps).
    B = 8
    x = jax.random.normal(keys[10], (B, 3, 32, 32), dtype=jnp.float32)

    BT = pick_batch_tile(B)                # 4
    prep = prepare_params(params, BT)      # one-time weight preprocessing

    out = jax.block_until_ready(net_forward(x, prep))
    ref = jax.block_until_ready(ref_forward(x, params))

    assert out.shape == (B, 10), out.shape
    # bf16 MXU operands (f32 accumulation) vs. the f32 reference.
    np.testing.assert_allclose(np.asarray(out), np.asarray(ref), rtol=2e-2, atol=2e-2)
    print("KERNEL_OK")
</pallas_src>

<mosaic_0001>
module attributes {stable_mosaic.version = 11 : i64} {
  func.func @net_kernel(%arg0: i32, %arg1: memref<1x128x128xbf16, #tpu.memory_space<vmem>>, %arg2: memref<640x256xbf16, #tpu.memory_space<vmem>>, %arg3: memref<1x128xf32, #tpu.memory_space<vmem>>, %arg4: memref<56x124xbf16, #tpu.memory_space<vmem>>, %arg5: memref<56x124xbf16, #tpu.memory_space<vmem>>, %arg6: memref<640x256xbf16, #tpu.memory_space<vmem>>, %arg7: memref<1x128xf32, #tpu.memory_space<vmem>>, %arg8: memref<20x52xbf16, #tpu.memory_space<vmem>>, %arg9: memref<20x52xbf16, #tpu.memory_space<vmem>>, %arg10: memref<5x128x128xbf16, #tpu.memory_space<vmem>>, %arg11: memref<1x128xf32, #tpu.memory_space<vmem>>, %arg12: memref<128x128xbf16, #tpu.memory_space<vmem>>, %arg13: memref<1x128xf32, #tpu.memory_space<vmem>>, %arg14: memref<128x128xbf16, #tpu.memory_space<vmem>>, %arg15: memref<1x128xf32, #tpu.memory_space<vmem>>, %arg16: memref<1x4x128xf32, #tpu.memory_space<vmem>>) attributes {dimension_semantics = [#tpu.dimension_semantics<parallel>], iteration_bounds = array<i64: 2>, scalar_prefetch = 0 : i64, scratch_operands = 0 : i64, tpu.core_type = #tpu.core_type<tc>, window_params = [{transform_indices = @transform_0, window_bounds = array<i64: 1, 128, 128>}, {pipeline_mode = #tpu.pipeline_mode<synchronous>, transform_indices = @transform_1, window_bounds = array<i64: 640, 256>}, {pipeline_mode = #tpu.pipeline_mode<synchronous>, transform_indices = @transform_2, window_bounds = array<i64: 1, 128>}, {pipeline_mode = #tpu.pipeline_mode<synchronous>, transform_indices = @transform_3, window_bounds = array<i64: 56, 124>}, {pipeline_mode = #tpu.pipeline_mode<synchronous>, transform_indices = @transform_4, window_bounds = array<i64: 56, 124>}, {pipeline_mode = #tpu.pipeline_mode<synchronous>, transform_indices = @transform_5, window_bounds = array<i64: 640, 256>}, {pipeline_mode = #tpu.pipeline_mode<synchronous>, transform_indices = @transform_6, window_bounds = array<i64: 1, 128>}, {pipeline_mode = #tpu.pipeline_mode<synchronous>, transform_indices = @transform_7, window_bounds = array<i64: 20, 52>}, {pipeline_mode = #tpu.pipeline_mode<synchronous>, transform_indices = @transform_8, window_bounds = array<i64: 20, 52>}, {pipeline_mode = #tpu.pipeline_mode<synchronous>, transform_indices = @transform_9, window_bounds = array<i64: 5, 128, 128>}, {pipeline_mode = #tpu.pipeline_mode<synchronous>, transform_indices = @transform_10, window_bounds = array<i64: 1, 128>}, {pipeline_mode = #tpu.pipeline_mode<synchronous>, transform_indices = @transform_11, window_bounds = array<i64: 128, 128>}, {pipeline_mode = #tpu.pipeline_mode<synchronous>, transform_indices = @transform_12, window_bounds = array<i64: 1, 128>}, {pipeline_mode = #tpu.pipeline_mode<synchronous>, transform_indices = @transform_13, window_bounds = array<i64: 128, 128>}, {pipeline_mode = #tpu.pipeline_mode<synchronous>, transform_indices = @transform_14, window_bounds = array<i64: 1, 128>}, {transform_indices = @transform_15, window_bounds = array<i64: 1, 4, 128>}]} {
    %c0 = arith.constant 0 : index
    %c0_0 = arith.constant 0 : index
    %c0_1 = arith.constant 0 : index
    %0 = vector.load %arg1[%c0, %c0_0, %c0_1] : memref<1x128x128xbf16, #tpu.memory_space<vmem>>, vector<1x128x128xbf16>
    %1 = vector.shape_cast %0 : vector<1x128x128xbf16> to vector<128x128xbf16>
    %2 = vector.extract_strided_slice %1 {offsets = [0, 0], sizes = [124, 128], strides = [1, 1]} : vector<128x128xbf16> to vector<124x128xbf16>
    %3 = vector.extract_strided_slice %1 {offsets = [1, 0], sizes = [124, 128], strides = [1, 1]} : vector<128x128xbf16> to vector<124x128xbf16>
    %4 = vector.extract_strided_slice %1 {offsets = [2, 0], sizes = [124, 128], strides = [1, 1]} : vector<128x128xbf16> to vector<124x128xbf16>
    %5 = vector.extract_strided_slice %1 {offsets = [3, 0], sizes = [124, 128], strides = [1, 1]} : vector<128x128xbf16> to vector<124x128xbf16>
    %6 = vector.extract_strided_slice %1 {offsets = [4, 0], sizes = [124, 128], strides = [1, 1]} : vector<128x128xbf16> to vector<124x128xbf16>
    %7 = tpu.concatenate %2, %3, %4, %5, %6 in 1 : vector<124x128xbf16>, vector<124x128xbf16>, vector<124x128xbf16>, vector<124x128xbf16>, vector<124x128xbf16> -> vector<124x640xbf16>
    %c0_2 = arith.constant 0 : index
    %c0_3 = arith.constant 0 : index
    %8 = vector.load %arg2[%c0_2, %c0_3] : memref<640x256xbf16, #tpu.memory_space<vmem>>, vector<640x256xbf16>
    %cst = arith.constant dense<0.000000e+00> : vector<124x256xf32>
    %9 = tpu.matmul %7, %8, %cst {dimension_numbers = #tpu.dot_dimension_numbers<[1], [0], [0], [1], [0, 0, 1, 1], [], []>} : vector<124x640xbf16>, vector<640x256xbf16>, vector<124x256xf32> -> vector<124x256xf32>
    %10 = vector.extract_strided_slice %9 {offsets = [0, 0], sizes = [124, 128], strides = [1, 1]} : vector<124x256xf32> to vector<124x128xf32>
    %11 = vector.extract_strided_slice %9 {offsets = [0, 128], sizes = [124, 128], strides = [1, 1]} : vector<124x256xf32> to vector<124x128xf32>
    %12 = arith.maximumf %10, %11 : vector<124x128xf32>
    %c0_4 = arith.constant 0 : index
    %c0_5 = arith.constant 0 : index
    %13 = vector.load %arg3[%c0_4, %c0_5] : memref<1x128xf32, #tpu.memory_space<vmem>>, vector<1x128xf32>
    %14 = vector.broadcast %13 : vector<1x128xf32> to vector<124x128xf32>
    %15 = arith.addf %12, %14 : vector<124x128xf32>
    %cst_6 = arith.constant 0.000000e+00 : f32
    %16 = vector.broadcast %cst_6 : f32 to vector<124x128xf32>
    %17 = arith.maximumf %15, %16 : vector<124x128xf32>
    %18 = arith.truncf %17 : vector<124x128xf32> to vector<124x128xbf16>
    %c0_7 = arith.constant 0 : index
    %c0_8 = arith.constant 0 : index
    %19 = vector.load %arg4[%c0_7, %c0_8] : memref<56x124xbf16, #tpu.memory_space<vmem>>, vector<56x124xbf16>
    %cst_9 = arith.constant dense<0.000000e+00> : vector<56x128xf32>
    %20 = tpu.matmul %19, %18, %cst_9 {dimension_numbers = #tpu.dot_dimension_numbers<[1], [0], [0], [1], [0, 0, 1, 1], [], []>} : vector<56x124xbf16>, vector<124x128xbf16>, vector<56x128xf32> -> vector<56x128xf32>
    %c0_10 = arith.constant 0 : index
    %c0_11 = arith.constant 0 : index
    %21 = vector.load %arg5[%c0_10, %c0_11] : memref<56x124xbf16, #tpu.memory_space<vmem>>, vector<56x124xbf16>
    %cst_12 = arith.constant dense<0.000000e+00> : vector<56x128xf32>
    %22 = tpu.matmul %21, %18, %cst_12 {dimension_numbers = #tpu.dot_dimension_numbers<[1], [0], [0], [1], [0, 0, 1, 1], [], []>} : vector<56x124xbf16>, vector<124x128xbf16>, vector<56x128xf32> -> vector<56x128xf32>
    %23 = arith.maximumf %20, %22 : vector<56x128xf32>
    %24 = arith.truncf %23 : vector<56x128xf32> to vector<56x128xbf16>
    %25 = vector.extract_strided_slice %24 {offsets = [0, 0], sizes = [52, 128], strides = [1, 1]} : vector<56x128xbf16> to vector<52x128xbf16>
    %26 = vector.extract_strided_slice %24 {offsets = [1, 0], sizes = [52, 128], strides = [1, 1]} : vector<56x128xbf16> to vector<52x128xbf16>
    %27 = vector.extract_strided_slice %24 {offsets = [2, 0], sizes = [52, 128], strides = [1, 1]} : vector<56x128xbf16> to vector<52x128xbf16>
    %28 = vector.extract_strided_slice %24 {offsets = [3, 0], sizes = [52, 128], strides = [1, 1]} : vector<56x128xbf16> to vector<52x128xbf16>
    %29 = vector.extract_strided_slice %24 {offsets = [4, 0], sizes = [52, 128], strides = [1, 1]} : vector<56x128xbf16> to vector<52x128xbf16>
    %30 = tpu.concatenate %25, %26, %27, %28, %29 in 1 : vector<52x128xbf16>, vector<52x128xbf16>, vector<52x128xbf16>, vector<52x128xbf16>, vector<52x128xbf16> -> vector<52x640xbf16>
    %c0_13 = arith.constant 0 : index
    %c0_14 = arith.constant 0 : index
    %31 = vector.load %arg6[%c0_13, %c0_14] : memref<640x256xbf16, #tpu.memory_space<vmem>>, vector<640x256xbf16>
    %cst_15 = arith.constant dense<0.000000e+00> : vector<52x256xf32>
    %32 = tpu.matmul %30, %31, %cst_15 {dimension_numbers = #tpu.dot_dimension_numbers<[1], [0], [0], [1], [0, 0, 1, 1], [], []>} : vector<52x640xbf16>, vector<640x256xbf16>, vector<52x256xf32> -> vector<52x256xf32>
    %33 = vector.extract_strided_slice %32 {offsets = [0, 0], sizes = [52, 128], strides = [1, 1]} : vector<52x256xf32> to vector<52x128xf32>
    %34 = vector.extract_strided_slice %32 {offsets = [0, 128], sizes = [52, 128], strides = [1, 1]} : vector<52x256xf32> to vector<52x128xf32>
    %35 = arith.maximumf %33, %34 : vector<52x128xf32>
    %c0_16 = arith.constant 0 : index
    %c0_17 = arith.constant 0 : index
    %36 = vector.load %arg7[%c0_16, %c0_17] : memref<1x128xf32, #tpu.memory_space<vmem>>, vector<1x128xf32>
    %37 = vector.broadcast %36 : vector<1x128xf32> to vector<52x128xf32>
    %38 = arith.addf %35, %37 : vector<52x128xf32>
    %cst_18 = arith.constant 0.000000e+00 : f32
    %39 = vector.broadcast %cst_18 : f32 to vector<52x128xf32>
    %40 = arith.maximumf %38, %39 : vector<52x128xf32>
    %41 = arith.truncf %40 : vector<52x128xf32> to vector<52x128xbf16>
    %c0_19 = arith.constant 0 : index
    %c0_20 = arith.constant 0 : index
    %42 = vector.load %arg8[%c0_19, %c0_20] : memref<20x52xbf16, #tpu.memory_space<vmem>>, vector<20x52xbf16>
    %cst_21 = arith.constant dense<0.000000e+00> : vector<20x128xf32>
    %43 = tpu.matmul %42, %41, %cst_21 {dimension_numbers = #tpu.dot_dimension_numbers<[1], [0], [0], [1], [0, 0, 1, 1], [], []>} : vector<20x52xbf16>, vector<52x128xbf16>, vector<20x128xf32> -> vector<20x128xf32>
    %c0_22 = arith.constant 0 : index
    %c0_23 = arith.constant 0 : index
    %44 = vector.load %arg9[%c0_22, %c0_23] : memref<20x52xbf16, #tpu.memory_space<vmem>>, vector<20x52xbf16>
    %cst_24 = arith.constant dense<0.000000e+00> : vector<20x128xf32>
    %45 = tpu.matmul %44, %41, %cst_24 {dimension_numbers = #tpu.dot_dimension_numbers<[1], [0], [0], [1], [0, 0, 1, 1], [], []>} : vector<20x52xbf16>, vector<52x128xbf16>, vector<20x128xf32> -> vector<20x128xf32>
    %46 = arith.maximumf %43, %45 : vector<20x128xf32>
    %47 = arith.truncf %46 : vector<20x128xf32> to vector<20x128xbf16>
    %cst_25 = arith.constant 0.000000e+00 : f32
    %48 = vector.broadcast %cst_25 : f32 to vector<4x128xf32>
    %49 = vector.extract_strided_slice %47 {offsets = [0, 0], sizes = [4, 128], strides = [1, 1]} : vector<20x128xbf16> to vector<4x128xbf16>
    %c0_26 = arith.constant 0 : index
    %c0_27 = arith.constant 0 : index
    %c0_28 = arith.constant 0 : index
    %50 = vector.load %arg10[%c0_26, %c0_27, %c0_28] : memref<5x128x128xbf16, #tpu.memory_space<vmem>>, vector<1x128x128xbf16>
    %51 = vector.shape_cast %50 : vector<1x128x128xbf16> to vector<128x128xbf16>
    %cst_29 = arith.constant dense<0.000000e+00> : vector<4x128xf32>
    %52 = tpu.matmul %49, %51, %cst_29 {dimension_numbers = #tpu.dot_dimension_numbers<[1], [0], [0], [1], [0, 0, 1, 1], [], []>} : vector<4x128xbf16>, vector<128x128xbf16>, vector<4x128xf32> -> vector<4x128xf32>
    %53 = arith.addf %48, %52 : vector<4x128xf32>
    %54 = vector.extract_strided_slice %47 {offsets = [4, 0], sizes = [4, 128], strides = [1, 1]} : vector<20x128xbf16> to vector<4x128xbf16>
    %c1 = arith.constant 1 : index
    %c0_30 = arith.constant 0 : index
    %c0_31 = arith.constant 0 : index
    %55 = vector.load %arg10[%c1, %c0_30, %c0_31] : memref<5x128x128xbf16, #tpu.memory_space<vmem>>, vector<1x128x128xbf16>
    %56 = vector.shape_cast %55 : vector<1x128x128xbf16> to vector<128x128xbf16>
    %cst_32 = arith.constant dense<0.000000e+00> : vector<4x128xf32>
    %57 = tpu.matmul %54, %56, %cst_32 {dimension_numbers = #tpu.dot_dimension_numbers<[1], [0], [0], [1], [0, 0, 1, 1], [], []>} : vector<4x128xbf16>, vector<128x128xbf16>, vector<4x128xf32> -> vector<4x128xf32>
    %58 = arith.addf %53, %57 : vector<4x128xf32>
    %59 = vector.extract_strided_slice %47 {offsets = [8, 0], sizes = [4, 128], strides = [1, 1]} : vector<20x128xbf16> to vector<4x128xbf16>
    %c2 = arith.constant 2 : index
    %c0_33 = arith.constant 0 : index
    %c0_34 = arith.constant 0 : index
    %60 = vector.load %arg10[%c2, %c0_33, %c0_34] : memref<5x128x128xbf16, #tpu.memory_space<vmem>>, vector<1x128x128xbf16>
    %61 = vector.shape_cast %60 : vector<1x128x128xbf16> to vector<128x128xbf16>
    %cst_35 = arith.constant dense<0.000000e+00> : vector<4x128xf32>
    %62 = tpu.matmul %59, %61, %cst_35 {dimension_numbers = #tpu.dot_dimension_numbers<[1], [0], [0], [1], [0, 0, 1, 1], [], []>} : vector<4x128xbf16>, vector<128x128xbf16>, vector<4x128xf32> -> vector<4x128xf32>
    %63 = arith.addf %58, %62 : vector<4x128xf32>
    %64 = vector.extract_strided_slice %47 {offsets = [12, 0], sizes = [4, 128], strides = [1, 1]} : vector<20x128xbf16> to vector<4x128xbf16>
    %c3 = arith.constant 3 : index
    %c0_36 = arith.constant 0 : index
    %c0_37 = arith.constant 0 : index
    %65 = vector.load %arg10[%c3, %c0_36, %c0_37] : memref<5x128x128xbf16, #tpu.memory_space<vmem>>, vector<1x128x128xbf16>
    %66 = vector.shape_cast %65 : vector<1x128x128xbf16> to vector<128x128xbf16>
    %cst_38 = arith.constant dense<0.000000e+00> : vector<4x128xf32>
    %67 = tpu.matmul %64, %66, %cst_38 {dimension_numbers = #tpu.dot_dimension_numbers<[1], [0], [0], [1], [0, 0, 1, 1], [], []>} : vector<4x128xbf16>, vector<128x128xbf16>, vector<4x128xf32> -> vector<4x128xf32>
    %68 = arith.addf %63, %67 : vector<4x128xf32>
    %69 = vector.extract_strided_slice %47 {offsets = [16, 0], sizes = [4, 128], strides = [1, 1]} : vector<20x128xbf16> to vector<4x128xbf16>
    %c4 = arith.constant 4 : index
    %c0_39 = arith.constant 0 : index
    %c0_40 = arith.constant 0 : index
    %70 = vector.load %arg10[%c4, %c0_39, %c0_40] : memref<5x128x128xbf16, #tpu.memory_space<vmem>>, vector<1x128x128xbf16>
    %71 = vector.shape_cast %70 : vector<1x128x128xbf16> to vector<128x128xbf16>
    %cst_41 = arith.constant dense<0.000000e+00> : vector<4x128xf32>
    %72 = tpu.matmul %69, %71, %cst_41 {dimension_numbers = #tpu.dot_dimension_numbers<[1], [0], [0], [1], [0, 0, 1, 1], [], []>} : vector<4x128xbf16>, vector<128x128xbf16>, vector<4x128xf32> -> vector<4x128xf32>
    %73 = arith.addf %68, %72 : vector<4x128xf32>
    %c0_42 = arith.constant 0 : index
    %c0_43 = arith.constant 0 : index
    %74 = vector.load %arg11[%c0_42, %c0_43] : memref<1x128xf32, #tpu.memory_space<vmem>>, vector<1x128xf32>
    %75 = vector.broadcast %74 : vector<1x128xf32> to vector<4x128xf32>
    %76 = arith.addf %73, %75 : vector<4x128xf32>
    %cst_44 = arith.constant 0.000000e+00 : f32
    %77 = vector.broadcast %cst_44 : f32 to vector<4x128xf32>
    %78 = arith.maximumf %76, %77 : vector<4x128xf32>
    %79 = arith.truncf %78 : vector<4x128xf32> to vector<4x128xbf16>
    %c0_45 = arith.constant 0 : index
    %c0_46 = arith.constant 0 : index
    %80 = vector.load %arg12[%c0_45, %c0_46] : memref<128x128xbf16, #tpu.memory_space<vmem>>, vector<128x128xbf16>
    %cst_47 = arith.constant dense<0.000000e+00> : vector<4x128xf32>
    %81 = tpu.matmul %79, %80, %cst_47 {dimension_numbers = #tpu.dot_dimension_numbers<[1], [0], [0], [1], [0, 0, 1, 1], [], []>} : vector<4x128xbf16>, vector<128x128xbf16>, vector<4x128xf32> -> vector<4x128xf32>
    %c0_48 = arith.constant 0 : index
    %c0_49 = arith.constant 0 : index
    %82 = vector.load %arg13[%c0_48, %c0_49] : memref<1x128xf32, #tpu.memory_space<vmem>>, vector<1x128xf32>
    %83 = vector.broadcast %82 : vector<1x128xf32> to vector<4x128xf32>
    %84 = arith.addf %81, %83 : vector<4x128xf32>
    %cst_50 = arith.constant 0.000000e+00 : f32
    %85 = vector.broadcast %cst_50 : f32 to vector<4x128xf32>
    %86 = arith.maximumf %84, %85 : vector<4x128xf32>
    %87 = arith.truncf %86 : vector<4x128xf32> to vector<4x128xbf16>
    %c0_51 = arith.constant 0 : index
    %c0_52 = arith.constant 0 : index
    %88 = vector.load %arg14[%c0_51, %c0_52] : memref<128x128xbf16, #tpu.memory_space<vmem>>, vector<128x128xbf16>
    %cst_53 = arith.constant dense<0.000000e+00> : vector<4x128xf32>
    %89 = tpu.matmul %87, %88, %cst_53 {dimension_numbers = #tpu.dot_dimension_numbers<[1], [0], [0], [1], [0, 0, 1, 1], [], []>} : vector<4x128xbf16>, vector<128x128xbf16>, vector<4x128xf32> -> vector<4x128xf32>
    %c0_54 = arith.constant 0 : index
    %c0_55 = arith.constant 0 : index
    %90 = vector.load %arg15[%c0_54, %c0_55] : memref<1x128xf32, #tpu.memory_space<vmem>>, vector<1x128xf32>
    %91 = vector.broadcast %90 : vector<1x128xf32> to vector<4x128xf32>
    %92 = arith.addf %89, %91 : vector<4x128xf32>
    %c0_56 = arith.constant 0 : index
    %c0_57 = arith.constant 0 : index
    %c0_58 = arith.constant 0 : index
    %93 = vector.load %arg16[%c0_56, %c0_57, %c0_58] : memref<1x4x128xf32, #tpu.memory_space<vmem>>, vector<1x4x128xf32>
    %94 = vector.shape_cast %93 : vector<1x4x128xf32> to vector<4x128xf32>
    %95 = vector.shape_cast %92 : vector<4x128xf32> to vector<1x4x128xf32>
    tpu.vector_store %arg16[%c0_56, %c0_57, %c0_58], %95 {strides = array<i32>} : memref<1x4x128xf32, #tpu.memory_space<vmem>>, vector<1x4x128xf32>,
    return
  }
  func.func @transform_0(%arg0: i32) -> (i32, i32, i32) {
    %c0_i32 = arith.constant 0 : i32
    %c0_i32_0 = arith.constant 0 : i32
    %c0_i32_1 = arith.constant 0 : i32
    return %arg0, %c0_i32, %c0_i32_0 : i32, i32, i32
  }
  func.func @transform_1(%arg0: i32) -> (i32, i32) {
    %c0_i32 = arith.constant 0 : i32
    %c0_i32_0 = arith.constant 0 : i32
    %c0_i32_1 = arith.constant 0 : i32
    return %c0_i32, %c0_i32_0 : i32, i32
  }
  func.func @transform_2(%arg0: i32) -> (i32, i32) {
    %c0_i32 = arith.constant 0 : i32
    %c0_i32_0 = arith.constant 0 : i32
    %c0_i32_1 = arith.constant 0 : i32
    return %c0_i32, %c0_i32_0 : i32, i32
  }
  func.func @transform_3(%arg0: i32) -> (i32, i32) {
    %c0_i32 = arith.constant 0 : i32
    %c0_i32_0 = arith.constant 0 : i32
    %c0_i32_1 = arith.constant 0 : i32
    return %c0_i32, %c0_i32_0 : i32, i32
  }
  func.func @transform_4(%arg0: i32) -> (i32, i32) {
    %c0_i32 = arith.constant 0 : i32
    %c0_i32_0 = arith.constant 0 : i32
    %c0_i32_1 = arith.constant 0 : i32
    return %c0_i32, %c0_i32_0 : i32, i32
  }
  func.func @transform_5(%arg0: i32) -> (i32, i32) {
    %c0_i32 = arith.constant 0 : i32
    %c0_i32_0 = arith.constant 0 : i32
    %c0_i32_1 = arith.constant 0 : i32
    return %c0_i32, %c0_i32_0 : i32, i32
  }
  func.func @transform_6(%arg0: i32) -> (i32, i32) {
    %c0_i32 = arith.constant 0 : i32
    %c0_i32_0 = arith.constant 0 : i32
    %c0_i32_1 = arith.constant 0 : i32
    return %c0_i32, %c0_i32_0 : i32, i32
  }
  func.func @transform_7(%arg0: i32) -> (i32, i32) {
    %c0_i32 = arith.constant 0 : i32
    %c0_i32_0 = arith.constant 0 : i32
    %c0_i32_1 = arith.constant 0 : i32
    return %c0_i32, %c0_i32_0 : i32, i32
  }
  func.func @transform_8(%arg0: i32) -> (i32, i32) {
    %c0_i32 = arith.constant 0 : i32
    %c0_i32_0 = arith.constant 0 : i32
    %c0_i32_1 = arith.constant 0 : i32
    return %c0_i32, %c0_i32_0 : i32, i32
  }
  func.func @transform_9(%arg0: i32) -> (i32, i32, i32) {
    %c0_i32 = arith.constant 0 : i32
    %c0_i32_0 = arith.constant 0 : i32
    %c0_i32_1 = arith.constant 0 : i32
    %c0_i32_2 = arith.constant 0 : i32
    return %c0_i32, %c0_i32_0, %c0_i32_1 : i32, i32, i32
  }
  func.func @transform_10(%arg0: i32) -> (i32, i32) {
    %c0_i32 = arith.constant 0 : i32
    %c0_i32_0 = arith.constant 0 : i32
    %c0_i32_1 = arith.constant 0 : i32
    return %c0_i32, %c0_i32_0 : i32, i32
  }
  func.func @transform_11(%arg0: i32) -> (i32, i32) {
    %c0_i32 = arith.constant 0 : i32
    %c0_i32_0 = arith.constant 0 : i32
    %c0_i32_1 = arith.constant 0 : i32
    return %c0_i32, %c0_i32_0 : i32, i32
  }
  func.func @transform_12(%arg0: i32) -> (i32, i32) {
    %c0_i32 = arith.constant 0 : i32
    %c0_i32_0 = arith.constant 0 : i32
    %c0_i32_1 = arith.constant 0 : i32
    return %c0_i32, %c0_i32_0 : i32, i32
  }
  func.func @transform_13(%arg0: i32) -> (i32, i32) {
    %c0_i32 = arith.constant 0 : i32
    %c0_i32_0 = arith.constant 0 : i32
    %c0_i32_1 = arith.constant 0 : i32
    return %c0_i32, %c0_i32_0 : i32, i32
  }
  func.func @transform_14(%arg0: i32) -> (i32, i32) {
    %c0_i32 = arith.constant 0 : i32
    %c0_i32_0 = arith.constant 0 : i32
    %c0_i32_1 = arith.constant 0 : i32
    return %c0_i32, %c0_i32_0 : i32, i32
  }
  func.func @transform_15(%arg0: i32) -> (i32, i32, i32) {
    %c0_i32 = arith.constant 0 : i32
    %c0_i32_0 = arith.constant 0 : i32
    %c0_i32_1 = arith.constant 0 : i32
    return %arg0, %c0_i32, %c0_i32_0 : i32, i32, i32
  }
}

</mosaic_0001>

<llo_original>
// kernel: net_forward.1
$region0: #{net_forward.1}
  #allocation0 [shape = 'u32[]', space=smem, size = 0x4, offset = 0x4, fixed_abs, tag = 'smem constant byte address 0x4 - core index']
  #allocation1 [shape = 'u32[72,128]{1,0:T(1,128)}', space=vmem, size = 0x9000, scoped, tag = 'internal scratch']
  %s0 = inlined_call_operand.vmem [shape: bf16[2,128,128], index: 0, kind: input, shape index: {}]
  %s1 = inlined_call_operand.vmem [shape: bf16[640,256], index: 1, kind: input, shape index: {}]
  %s2 = inlined_call_operand.vmem [shape: f32[1,128], index: 2, kind: input, shape index: {}]
  %s3 = inlined_call_operand.vmem [shape: bf16[56,124], index: 3, kind: input, shape index: {}]
  %s4 = inlined_call_operand.vmem [shape: bf16[56,124], index: 4, kind: input, shape index: {}]
  %s5 = inlined_call_operand.vmem [shape: bf16[640,256], index: 5, kind: input, shape index: {}]
  %s6 = inlined_call_operand.vmem [shape: f32[1,128], index: 6, kind: input, shape index: {}]
  %s7 = inlined_call_operand.vmem [shape: bf16[20,52], index: 7, kind: input, shape index: {}]
  %s8 = inlined_call_operand.vmem [shape: bf16[20,52], index: 8, kind: input, shape index: {}]
  %s9 = inlined_call_operand.vmem [shape: bf16[5,128,128], index: 9, kind: input, shape index: {}]
  %s10 = inlined_call_operand.vmem [shape: f32[1,128], index: 10, kind: input, shape index: {}]
  %s11 = inlined_call_operand.vmem [shape: bf16[128,128], index: 11, kind: input, shape index: {}]
  %s12 = inlined_call_operand.vmem [shape: f32[1,128], index: 12, kind: input, shape index: {}]
  %s13 = inlined_call_operand.vmem [shape: bf16[128,128], index: 13, kind: input, shape index: {}]
  %s14 = inlined_call_operand.vmem [shape: f32[1,128], index: 14, kind: input, shape index: {}]
  %s15 = inlined_call_operand.hbm [shape: f32[2,4,128], index: 15, kind: output, shape index: {}]
  %s16 = sld [smem:[#allocation0]]
  $region93: #{net_forward.1} parent=0
    _
  %s18 = ssub.s32 1, %s16
  %s19 = scalar_select 0, %s18, %s16
  $region1: #{net_forward.1} parent=0
    #allocation2 [shape = 'u8[4096]{0}', space=vmem, size = 0x1000, scoped, tag = 'output window, operand 0']
    #allocation3 [shape = 's32[2]{0}', space=sflag, size = 0x8, scoped, tag = 'scoped memory for net_forward.1']
    %20 = vsyncpa [#allocation3], 0
    %s21 = scalar_lea.sflag [#allocation3], 1
    %22 = vsyncpa %s21, 0
    loop: start=0, step=1, limit=4
    $region2: #{net_forward.1} parent=1 // loop_pre_header
      _
    $region3: #{net_forward.1} parent=1 // loop_header
      %s24 = sphi 0, %s28
      %p25 = scmp.ge.s32.totalorder %s24, 4
      %s34 = sphi 0, %s36
      %s37 = sphi 0, %s34
      %s38 = sphi 0, %s37
      %s54 = sphi 0, %s38
      %s58 = sphi 0, %s58
      %s60 = sphi 0, %s58
      %s61 = sphi 0, %s60
      %s75 = sphi 0, %s61
      %s79 = sphi 0, %s79
      %s81 = sphi 0, %s79
      %s82 = sphi 0, %s81
      %s96 = sphi 0, %s82
      %s100 = sphi 0, %s100
      %s102 = sphi 0, %s100
      %s103 = sphi 0, %s102
      %s117 = sphi 0, %s103
      %s121 = sphi 0, %s121
      %s123 = sphi 0, %s121
      %s124 = sphi 0, %s123
      %s138 = sphi 0, %s124
      %s142 = sphi 0, %s142
      %s144 = sphi 0, %s142
      %s145 = sphi 0, %s144
      %s159 = sphi 0, %s145
      %s163 = sphi 0, %s163
      %s165 = sphi 0, %s163
      %s166 = sphi 0, %s165
      %s180 = sphi 0, %s166
      %s184 = sphi 0, %s184
      %s186 = sphi 0, %s184
      %s187 = sphi 0, %s186
      %s201 = sphi 0, %s187
      %s205 = sphi 0, %s205
      %s207 = sphi 0, %s205
      %s208 = sphi 0, %s207
      %s222 = sphi 0, %s208
      %s226 = sphi 0, %s226
      %s228 = sphi 0, %s226
      %s229 = sphi 0, %s228
      %s243 = sphi 0, %s229
      %s247 = sphi 0, %s247
      %s249 = sphi 0, %s247
      %s250 = sphi 0, %s249
      %s264 = sphi 0, %s250
      %s268 = sphi 0, %s268
      %s270 = sphi 0, %s268
      %s271 = sphi 0, %s270
      %s285 = sphi 0, %s271
      %s289 = sphi 0, %s289
      %s291 = sphi 0, %s289
      %s292 = sphi 0, %s291
      %s306 = sphi 0, %s292
      %s310 = sphi 0, %s310
      %s312 = sphi 0, %s310
      %s313 = sphi 0, %s312
      %s327 = sphi 0, %s313
      %s331 = sphi 0, %s331
      %s333 = sphi 0, %s331
      %s334 = sphi 0, %s333
      %s348 = sphi 0, %s334
      %s354 = sphi 0, %s356
      %s357 = sphi 0, %s354
      %s358 = sphi 0, %s357
      %s374 = sphi 0, %s358
    $region4: #{net_forward.1} parent=1 // loop_header_branch
      %27 = sbr.rel (%p25) target = $region8
    $region5: #{net_forward.1} parent=1 // loop_body
      %s29 = ssub.s32 %s24, 1
      %s30 = ssub.s32 %s24, 2
      %s31 = sadd.s32 %s24, 1
      %s32 = ssub.s32 %s24, %s31
      %p33 = scmp.eq.s32.totalorder %s32, 0
      %s35 = sadd.s32 %s34, 1
      %s36 = scalar_select %p33, %s34, %s35
      %p39 = pneg %p33
      %p40 = scmp.eq.s32.totalorder %s24, 1
      %p41 = por %p39, %p40
      %p42 = scmp.ne.s32.totalorder %s34, %s37
      %p43 = scmp.eq.s32.totalorder %s24, 0
      %p44 = por %p42, %p43
      %p45 = scmp.ne.s32.totalorder %s34, %s37
      %p46 = scmp.eq.s32.totalorder %s29, 1
      %p47 = por %p45, %p46
      %p48 = scmp.ne.s32.totalorder %s37, %s38
      %p49 = scmp.eq.s32.totalorder %s29, 0
      %p50 = por %p48, %p49
      %p51 = scmp.ne.s32.totalorder %s37, %s38
      %p52 = scmp.eq.s32.totalorder %s30, 1
      %p53 = por %p51, %p52
      %p55 = scmp.ne.s32.totalorder %s38, %s54
      %p56 = scmp.eq.s32.totalorder %s30, 0
      %p57 = por %p55, %p56
      %s59 = sadd.s32 %s58, 1
      %p62 = scmp.eq.s32.totalorder %s24, 1
      %p63 = scmp.ne.s32.totalorder %s58, %s60
      %p64 = scmp.eq.s32.totalorder %s24, 0
      %p65 = por %p63, %p64
      %p66 = scmp.ne.s32.totalorder %s58, %s60
      %p67 = scmp.eq.s32.totalorder %s29, 1
      %p68 = por %p66, %p67
      %p69 = scmp.ne.s32.totalorder %s60, %s61
      %p70 = scmp.eq.s32.totalorder %s29, 0
      %p71 = por %p69, %p70
      %p72 = scmp.ne.s32.totalorder %s60, %s61
      %p73 = scmp.eq.s32.totalorder %s30, 1
      %p74 = por %p72, %p73
      %p76 = scmp.ne.s32.totalorder %s61, %s75
      %p77 = scmp.eq.s32.totalorder %s30, 0
      %p78 = por %p76, %p77
      %s80 = sadd.s32 %s79, 1
      %p83 = scmp.eq.s32.totalorder %s24, 1
      %p84 = scmp.ne.s32.totalorder %s79, %s81
      %p85 = scmp.eq.s32.totalorder %s24, 0
      %p86 = por %p84, %p85
      %p87 = scmp.ne.s32.totalorder %s79, %s81
      %p88 = scmp.eq.s32.totalorder %s29, 1
      %p89 = por %p87, %p88
      %p90 = scmp.ne.s32.totalorder %s81, %s82
      %p91 = scmp.eq.s32.totalorder %s29, 0
      %p92 = por %p90, %p91
      %p93 = scmp.ne.s32.totalorder %s81, %s82
      %p94 = scmp.eq.s32.totalorder %s30, 1
      %p95 = por %p93, %p94
      %p97 = scmp.ne.s32.totalorder %s82, %s96
      %p98 = scmp.eq.s32.totalorder %s30, 0
      %p99 = por %p97, %p98
      %s101 = sadd.s32 %s100, 1
      %p104 = scmp.eq.s32.totalorder %s24, 1
      %p105 = scmp.ne.s32.totalorder %s100, %s102
      %p106 = scmp.eq.s32.totalorder %s24, 0
      %p107 = por %p105, %p106
      %p108 = scmp.ne.s32.totalorder %s100, %s102
      %p109 = scmp.eq.s32.totalorder %s29, 1
      %p110 = por %p108, %p109
      %p111 = scmp.ne.s32.totalorder %s102, %s103
      %p112 = scmp.eq.s32.totalorder %s29, 0
      %p113 = por %p111, %p112
      %p114 = scmp.ne.s32.totalorder %s102, %s103
      %p115 = scmp.eq.s32.totalorder %s30, 1
      %p116 = por %p114, %p115
      %p118 = scmp.ne.s32.totalorder %s103, %s117
      %p119 = scmp.eq.s32.totalorder %s30, 0
      %p120 = por %p118, %p119
      %s122 = sadd.s32 %s121, 1
      %p125 = scmp.eq.s32.totalorder %s24, 1
      %p126 = scmp.ne.s32.totalorder %s121, %s123
      %p127 = scmp.eq.s32.totalorder %s24, 0
      %p128 = por %p126, %p127
      %p129 = scmp.ne.s32.totalorder %s121, %s123
      %p130 = scmp.eq.s32.totalorder %s29, 1
      %p131 = por %p129, %p130
      %p132 = scmp.ne.s32.totalorder %s123, %s124
      %p133 = scmp.eq.s32.totalorder %s29, 0
      %p134 = por %p132, %p133
      %p135 = scmp.ne.s32.totalorder %s123, %s124
      %p136 = scmp.eq.s32.totalorder %s30, 1
      %p137 = por %p135, %p136
      %p139 = scmp.ne.s32.totalorder %s124, %s138
      %p140 = scmp.eq.s32.totalorder %s30, 0
      %p141 = por %p139, %p140
      %s143 = sadd.s32 %s142, 1
      %p146 = scmp.eq.s32.totalorder %s24, 1
      %p147 = scmp.ne.s32.totalorder %s142, %s144
      %p148 = scmp.eq.s32.totalorder %s24, 0
      %p149 = por %p147, %p148
      %p150 = scmp.ne.s32.totalorder %s142, %s144
      %p151 = scmp.eq.s32.totalorder %s29, 1
      %p152 = por %p150, %p151
      %p153 = scmp.ne.s32.totalorder %s144, %s145
      %p154 = scmp.eq.s32.totalorder %s29, 0
      %p155 = por %p153, %p154
      %p156 = scmp.ne.s32.totalorder %s144, %s145
      %p157 = scmp.eq.s32.totalorder %s30, 1
      %p158 = por %p156, %p157
      %p160 = scmp.ne.s32.totalorder %s145, %s159
      %p161 = scmp.eq.s32.totalorder %s30, 0
      %p162 = por %p160, %p161
      %s164 = sadd.s32 %s163, 1
      %p167 = scmp.eq.s32.totalorder %s24, 1
      %p168 = scmp.ne.s32.totalorder %s163, %s165
      %p169 = scmp.eq.s32.totalorder %s24, 0
      %p170 = por %p168, %p169
      %p171 = scmp.ne.s32.totalorder %s163, %s165
      %p172 = scmp.eq.s32.totalorder %s29, 1
      %p173 = por %p171, %p172
      %p174 = scmp.ne.s32.totalorder %s165, %s166
      %p175 = scmp.eq.s32.totalorder %s29, 0
      %p176 = por %p174, %p175
      %p177 = scmp.ne.s32.totalorder %s165, %s166
      %p178 = scmp.eq.s32.totalorder %s30, 1
      %p179 = por %p177, %p178
      %p181 = scmp.ne.s32.totalorder %s166, %s180
      %p182 = scmp.eq.s32.totalorder %s30, 0
      %p183 = por %p181, %p182
      %s185 = sadd.s32 %s184, 1
      %p188 = scmp.eq.s32.totalorder %s24, 1
      %p189 = scmp.ne.s32.totalorder %s184, %s186
      %p190 = scmp.eq.s32.totalorder %s24, 0
      %p191 = por %p189, %p190
      %p192 = scmp.ne.s32.totalorder %s184, %s186
      %p193 = scmp.eq.s32.totalorder %s29, 1
      %p194 = por %p192, %p193
      %p195 = scmp.ne.s32.totalorder %s186, %s187
      %p196 = scmp.eq.s32.totalorder %s29, 0
      %p197 = por %p195, %p196
      %p198 = scmp.ne.s32.totalorder %s186, %s187
      %p199 = scmp.eq.s32.totalorder %s30, 1
      %p200 = por %p198, %p199
      %p202 = scmp.ne.s32.totalorder %s187, %s201
      %p203 = scmp.eq.s32.totalorder %s30, 0
      %p204 = por %p202, %p203
      %s206 = sadd.s32 %s205, 1
      %p209 = scmp.eq.s32.totalorder %s24, 1
      %p210 = scmp.ne.s32.totalorder %s205, %s207
      %p211 = scmp.eq.s32.totalorder %s24, 0
      %p212 = por %p210, %p211
      %p213 = scmp.ne.s32.totalorder %s205, %s207
      %p214 = scmp.eq.s32.totalorder %s29, 1
      %p215 = por %p213, %p214
      %p216 = scmp.ne.s32.totalorder %s207, %s208
      %p217 = scmp.eq.s32.totalorder %s29, 0
      %p218 = por %p216, %p217
      %p219 = scmp.ne.s32.totalorder %s207, %s208
      %p220 = scmp.eq.s32.totalorder %s30, 1
      %p221 = por %p219, %p220
      %p223 = scmp.ne.s32.totalorder %s208, %s222
      %p224 = scmp.eq.s32.totalorder %s30, 0
      %p225 = por %p223, %p224
      %s227 = sadd.s32 %s226, 1
      %p230 = scmp.eq.s32.totalorder %s24, 1
      %p231 = scmp.ne.s32.totalorder %s226, %s228
      %p232 = scmp.eq.s32.totalorder %s24, 0
      %p233 = por %p231, %p232
      %p234 = scmp.ne.s32.totalorder %s226, %s228
      %p235 = scmp.eq.s32.totalorder %s29, 1
      %p236 = por %p234, %p235
      %p237 = scmp.ne.s32.totalorder %s228, %s229
      %p238 = scmp.eq.s32.totalorder %s29, 0
      %p239 = por %p237, %p238
      %p240 = scmp.ne.s32.totalorder %s228, %s229
      %p241 = scmp.eq.s32.totalorder %s30, 1
      %p242 = por %p240, %p241
      %p244 = scmp.ne.s32.totalorder %s229, %s243
      %p245 = scmp.eq.s32.totalorder %s30, 0
      %p246 = por %p244, %p245
      %s248 = sadd.s32 %s247, 1
      %p251 = scmp.eq.s32.totalorder %s24, 1
      %p252 = scmp.ne.s32.totalorder %s247, %s249
      %p253 = scmp.eq.s32.totalorder %s24, 0
      %p254 = por %p252, %p253
      %p255 = scmp.ne.s32.totalorder %s247, %s249
      %p256 = scmp.eq.s32.totalorder %s29, 1
      %p257 = por %p255, %p256
      %p258 = scmp.ne.s32.totalorder %s249, %s250
      %p259 = scmp.eq.s32.totalorder %s29, 0
      %p260 = por %p258, %p259
      %p261 = scmp.ne.s32.totalorder %s249, %s250
      %p262 = scmp.eq.s32.totalorder %s30, 1
      %p263 = por %p261, %p262
      %p265 = scmp.ne.s32.totalorder %s250, %s264
      %p266 = scmp.eq.s32.totalorder %s30, 0
      %p267 = por %p265, %p266
      %s269 = sadd.s32 %s268, 1
      %p272 = scmp.eq.s32.totalorder %s24, 1
      %p273 = scmp.ne.s32.totalorder %s268, %s270
      %p274 = scmp.eq.s32.totalorder %s24, 0
      %p275 = por %p273, %p274
      %p276 = scmp.ne.s32.totalorder %s268, %s270
      %p277 = scmp.eq.s32.totalorder %s29, 1
      %p278 = por %p276, %p277
      %p279 = scmp.ne.s32.totalorder %s270, %s271
      %p280 = scmp.eq.s32.totalorder %s29, 0
      %p281 = por %p279, %p280
      %p282 = scmp.ne.s32.totalorder %s270, %s271
      %p283 = scmp.eq.s32.totalorder %s30, 1
      %p284 = por %p282, %p283
      %p286 = scmp.ne.s32.totalorder %s271, %s285
      %p287 = scmp.eq.s32.totalorder %s30, 0
      %p288 = por %p286, %p287
      %s290 = sadd.s32 %s289, 1
      %p293 = scmp.eq.s32.totalorder %s24, 1
      %p294 = scmp.ne.s32.totalorder %s289, %s291
      %p295 = scmp.eq.s32.totalorder %s24, 0
      %p296 = por %p294, %p295
      %p297 = scmp.ne.s32.totalorder %s289, %s291
      %p298 = scmp.eq.s32.totalorder %s29, 1
      %p299 = por %p297, %p298
      %p300 = scmp.ne.s32.totalorder %s291, %s292
      %p301 = scmp.eq.s32.totalorder %s29, 0
      %p302 = por %p300, %p301
      %p303 = scmp.ne.s32.totalorder %s291, %s292
      %p304 = scmp.eq.s32.totalorder %s30, 1
      %p305 = por %p303, %p304
      %p307 = scmp.ne.s32.totalorder %s292, %s306
      %p308 = scmp.eq.s32.totalorder %s30, 0
      %p309 = por %p307, %p308
      %s311 = sadd.s32 %s310, 1
      %p314 = scmp.eq.s32.totalorder %s24, 1
      %p315 = scmp.ne.s32.totalorder %s310, %s312
      %p316 = scmp.eq.s32.totalorder %s24, 0
      %p317 = por %p315, %p316
      %p318 = scmp.ne.s32.totalorder %s310, %s312
      %p319 = scmp.eq.s32.totalorder %s29, 1
      %p320 = por %p318, %p319
      %p321 = scmp.ne.s32.totalorder %s312, %s313
      %p322 = scmp.eq.s32.totalorder %s29, 0
      %p323 = por %p321, %p322
      %p324 = scmp.ne.s32.totalorder %s312, %s313
      %p325 = scmp.eq.s32.totalorder %s30, 1
      %p326 = por %p324, %p325
      %p328 = scmp.ne.s32.totalorder %s313, %s327
      %p329 = scmp.eq.s32.totalorder %s30, 0
      %p330 = por %p328, %p329
      %s332 = sadd.s32 %s331, 1
      %p335 = scmp.eq.s32.totalorder %s24, 1
      %p336 = scmp.ne.s32.totalorder %s331, %s333
      %p337 = scmp.eq.s32.totalorder %s24, 0
      %p338 = por %p336, %p337
      %p339 = scmp.ne.s32.totalorder %s331, %s333
      %p340 = scmp.eq.s32.totalorder %s29, 1
      %p341 = por %p339, %p340
      %p342 = scmp.ne.s32.totalorder %s333, %s334
      %p343 = scmp.eq.s32.totalorder %s29, 0
      %p344 = por %p342, %p343
      %p345 = scmp.ne.s32.totalorder %s333, %s334
      %p346 = scmp.eq.s32.totalorder %s30, 1
      %p347 = por %p345, %p346
      %p349 = scmp.ne.s32.totalorder %s334, %s348
      %p350 = scmp.eq.s32.totalorder %s30, 0
      %p351 = por %p349, %p350
      %s352 = ssub.s32 %s24, %s31
      %p353 = scmp.eq.s32.totalorder %s352, 0
      %s355 = sadd.s32 %s354, 1
      %s356 = scalar_select %p353, %s354, %s355
      %p359 = pneg %p353
      %p360 = scmp.eq.s32.totalorder %s24, 1
      %p361 = por %p359, %p360
      %p362 = scmp.ne.s32.totalorder %s354, %s357
      %p363 = scmp.eq.s32.totalorder %s24, 0
      %p364 = por %p362, %p363
      %p365 = scmp.ne.s32.totalorder %s354, %s357
      %p366 = scmp.eq.s32.totalorder %s29, 1
      %p367 = por %p365, %p366
      %p368 = scmp.ne.s32.totalorder %s357, %s358
      %p369 = scmp.eq.s32.totalorder %s29, 0
      %p370 = por %p368, %p369
      %p371 = scmp.ne.s32.totalorder %s357, %s358
      %p372 = scmp.eq.s32.totalorder %s30, 1
      %p373 = por %p371, %p372
      %p375 = scmp.ne.s32.totalorder %s358, %s374
      %p376 = scmp.eq.s32.totalorder %s30, 0
      %p377 = por %p375, %p376
      %p378 = scmp.le.s32.totalorder 1, %s24
      %p379 = scmp.lt.s32.totalorder %s24, 3
      %p380 = pnand %p378, %p379
      %p381 = pneg %p380
      // Predicated region
      $region9: #{net_forward.1} parent=5 // pred_check
        _
      $region10: #{net_forward.1} parent=5 // pred_check_branch
        %383 = sbr.rel (%p380) target = $region12
      $region11: #{net_forward.1} parent=5 // pred_region
        %s384 = ssub.s32 %s24, 1
        // Predicated region
        $region13: #{net_forward.1} parent=11 // pred_check
          %p385 = pneg %p71
        $region14: #{net_forward.1} parent=11 // pred_check_branch
          %387 = sbr.rel (%p385) target = $region16
        $region15: #{net_forward.1} parent=11 // pred_region
          _
        $region16: #{net_forward.1} parent=11 // pred_fallthru
          _
        // Predicated region
        $region17: #{net_forward.1} parent=11 // pred_check
          %p388 = pneg %p92
        $region18: #{net_forward.1} parent=11 // pred_check_branch
          %390 = sbr.rel (%p388) target = $region20
        $region19: #{net_forward.1} parent=11 // pred_region
          _
        $region20: #{net_forward.1} parent=11 // pred_fallthru
          _
        // Predicated region
        $region21: #{net_forward.1} parent=11 // pred_check
          %p391 = pneg %p113
        $region22: #{net_forward.1} parent=11 // pred_check_branch
          %393 = sbr.rel (%p391) target = $region24
        $region23: #{net_forward.1} parent=11 // pred_region
          _
        $region24: #{net_forward.1} parent=11 // pred_fallthru
          _
        // Predicated region
        $region25: #{net_forward.1} parent=11 // pred_check
          %p394 = pneg %p134
        $region26: #{net_forward.1} parent=11 // pred_check_branch
          %396 = sbr.rel (%p394) target = $region28
        $region27: #{net_forward.1} parent=11 // pred_region
          _
        $region28: #{net_forward.1} parent=11 // pred_fallthru
          _
        // Predicated region
        $region29: #{net_forward.1} parent=11 // pred_check
          %p397 = pneg %p155
        $region30: #{net_forward.1} parent=11 // pred_check_branch
          %399 = sbr.rel (%p397) target = $region32
        $region31: #{net_forward.1} parent=11 // pred_region
          _
        $region32: #{net_forward.1} parent=11 // pred_fallthru
          _
        // Predicated region
        $region33: #{net_forward.1} parent=11 // pred_check
          %p400 = pneg %p176
        $region34: #{net_forward.1} parent=11 // pred_check_branch
          %402 = sbr.rel (%p400) target = $region36
        $region35: #{net_forward.1} parent=11 // pred_region
          _
        $region36: #{net_forward.1} parent=11 // pred_fallthru
          _
        // Predicated region
        $region37: #{net_forward.1} parent=11 // pred_check
          %p403 = pneg %p197
        $region38: #{net_forward.1} parent=11 // pred_check_branch
          %405 = sbr.rel (%p403) target = $region40
        $region39: #{net_forward.1} parent=11 // pred_region
          _
        $region40: #{net_forward.1} parent=11 // pred_fallthru
          _
        // Predicated region
        $region41: #{net_forward.1} parent=11 // pred_check
          %p406 = pneg %p218
        $region42: #{net_forward.1} parent=11 // pred_check_branch
          %408 = sbr.rel (%p406) target = $region44
        $region43: #{net_forward.1} parent=11 // pred_region
          _
        $region44: #{net_forward.1} parent=11 // pred_fallthru
          _
        // Predicated region
        $region45: #{net_forward.1} parent=11 // pred_check
          %p409 = pneg %p239
        $region46: #{net_forward.1} parent=11 // pred_check_branch
          %411 = sbr.rel (%p409) target = $region48
        $region47: #{net_forward.1} parent=11 // pred_region
          _
        $region48: #{net_forward.1} parent=11 // pred_fallthru
          _
        // Predicated region
        $region49: #{net_forward.1} parent=11 // pred_check
          %p412 = pneg %p260
        $region50: #{net_forward.1} parent=11 // pred_check_branch
          %414 = sbr.rel (%p412) target = $region52
        $region51: #{net_forward.1} parent=11 // pred_region
          _
        $region52: #{net_forward.1} parent=11 // pred_fallthru
          _
        // Predicated region
        $region53: #{net_forward.1} parent=11 // pred_check
          %p415 = pneg %p281
        $region54: #{net_forward.1} parent=11 // pred_check_branch
          %417 = sbr.rel (%p415) target = $region56
        $region55: #{net_forward.1} parent=11 // pred_region
          _
        $region56: #{net_forward.1} parent=11 // pred_fallthru
          _
        // Predicated region
        $region57: #{net_forward.1} parent=11 // pred_check
          %p418 = pneg %p302
        $region58: #{net_forward.1} parent=11 // pred_check_branch
          %420 = sbr.rel (%p418) target = $region60
        $region59: #{net_forward.1} parent=11 // pred_region
          _
        $region60: #{net_forward.1} parent=11 // pred_fallthru
          _
        // Predicated region
        $region61: #{net_forward.1} parent=11 // pred_check
          %p421 = pneg %p323
        $region62: #{net_forward.1} parent=11 // pred_check_branch
          %423 = sbr.rel (%p421) target = $region64
        $region63: #{net_forward.1} parent=11 // pred_region
          _
        $region64: #{net_forward.1} parent=11 // pred_fallthru
          _
        // Predicated region
        $region65: #{net_forward.1} parent=11 // pred_check
          %p424 = pneg %p344
        $region66: #{net_forward.1} parent=11 // pred_check_branch
          %426 = sbr.rel (%p424) target = $region68
        $region67: #{net_forward.1} parent=11 // pred_region
          _
        $region68: #{net_forward.1} parent=11 // pred_fallthru
          _
      $region12: #{net_forward.1} parent=5 // pred_fallthru
        _
      %p427 = scmp.lt.s32.totalorder %s24, 2
      // Predicated region
      $region69: #{net_forward.1} parent=5 // pred_check
        %p428 = pneg %p427
      $region70: #{net_forward.1} parent=5 // pred_check_branch
        %430 = sbr.rel (%p428) target = $region72
      $region71: #{net_forward.1} parent=5 // pred_region
        // Predicated region
        $region73: #{net_forward.1} parent=71 // pred_check
          %p431 = pneg %p44
        $region74: #{net_forward.1} parent=71 // pred_check_branch
          %433 = sbr.rel (%p431) target = $region76
        $region75: #{net_forward.1} parent=71 // pred_region
          %p434 = scmp.lt.s32.totalorder %s24, 1
          %s435 = scalar_select %p434, %s24, 1
          %s436 = smul.addr %s435, 16
          %s437 = smul.addr %s436, 4
          %s438 = scalar_lea.vmem %s0, %s437
        $region76: #{net_forward.1} parent=71 // pred_fallthru
          _
      $region72: #{net_forward.1} parent=5 // pred_fallthru
        _
      %p439 = scmp.le.s32.totalorder 1, %s24
      %p440 = scmp.lt.s32.totalorder %s24, 3
      %p441 = pnand %p439, %p440
      %p442 = pneg %p441
      // Predicated region
      $region77: #{net_forward.1} parent=5 // pred_check
        _
      $region78: #{net_forward.1} parent=5 // pred_check_branch
        %444 = sbr.rel (%p441) target = $region80
      $region79: #{net_forward.1} parent=5 // pred_region
        %s445 = ssub.s32 %s24, 1
        %p446 = scmp.lt.s32.totalorder %s29, 1
        %s447 = scalar_select %p446, %s29, 1
        %s448 = smul.addr %s447, 16
        %s449 = smul.addr %s448, 4
        %s450 = scalar_lea.vmem %s0, %s449
        %p451 = pneg %p50
        %p452 = pneg %p47
        %p453 = pneg %p71
        %p454 = pneg %p68
        %p455 = pneg %p92
        %p456 = pneg %p89
        %p457 = pneg %p113
        %p458 = pneg %p110
        %p459 = pneg %p134
        %p460 = pneg %p131
        %p461 = pneg %p155
        %p462 = pneg %p152
        %p463 = pneg %p176
        %p464 = pneg %p173
        %p465 = pneg %p197
        %p466 = pneg %p194
        %p467 = pneg %p218
        %p468 = pneg %p215
        %p469 = pneg %p239
        %p470 = pneg %p236
        %p471 = pneg %p260
        %p472 = pneg %p257
        %p473 = pneg %p281
        %p474 = pneg %p278
        %p475 = pneg %p302
        %p476 = pneg %p299
        %p477 = pneg %p323
        %p478 = pneg %p320
        %p479 = pneg %p344
        %p480 = pneg %p341
        %p481 = pneg %p370
        %p482 = pneg %p367
        %s483 = sand.u32 %s357, 1
        %s484 = scalar_lea.sflag [#allocation3], %s483
        %s485 = sand.u32 %s357, 1
        %s486 = smul.addr %s485, 4
        %s487 = scalar_lea.vmem [#allocation2], %s486
        %p488 = scmp.lt.s32.totalorder %s29, 1
        %s489 = scalar_select %p488, %s29, 1
        %s490 = smul.addr %s489, 16
        %s491 = smul.addr %s490, 4
        %s492 = scalar_lea.vmem %s0, %s491
        %v494 = vld [vmem:[%s492] sm:$0xf]
        %v495 = vld [vmem:[%s492 + $0x4] sm:$0xf]
        %v496 = vld [vmem:[%s492 + $0x8] sm:$0xf]
        %v497 = vld [vmem:[%s492 + $0xc] sm:$0xf]
        %v498 = vld [vmem:[%s492 + $0x10] sm:$0xf]
        %v499 = vld [vmem:[%s492 + $0x14] sm:$0xf]
        %v500 = vld [vmem:[%s492 + $0x18] sm:$0xf]
        %v501 = vld [vmem:[%s492 + $0x1c] sm:$0xf]
        %v502 = vld [vmem:[%s492 + $0x20] sm:$0xf]
        %v503 = vld [vmem:[%s492 + $0x24] sm:$0xf]
        %v504 = vld [vmem:[%s492 + $0x28] sm:$0xf]
        %v505 = vld [vmem:[%s492 + $0x2c] sm:$0xf]
        %v506 = vld [vmem:[%s492 + $0x30] sm:$0xf]
        %v507 = vld [vmem:[%s492 + $0x34] sm:$0xf]
        %v508 = vld [vmem:[%s492 + $0x38] sm:$0xf]
        %v509 = vld [vmem:[%s492 + $0x3c] sm:$0xf]
        %v526 = vunpack.c.l.b16 %v494
        %v527 = vunpack.c.l.b16 %v495
        %v528 = vunpack.c.l.b16 %v496
        %v529 = vunpack.c.l.b16 %v497
        %v530 = vunpack.c.l.b16 %v498
        %v531 = vunpack.c.l.b16 %v499
        %v532 = vunpack.c.l.b16 %v500
        %v533 = vunpack.c.l.b16 %v501
        %v534 = vunpack.c.l.b16 %v502
        %v535 = vunpack.c.l.b16 %v503
        %v536 = vunpack.c.l.b16 %v504
        %v537 = vunpack.c.l.b16 %v505
        %v538 = vunpack.c.l.b16 %v506
        %v539 = vunpack.c.l.b16 %v507
        %v540 = vunpack.c.l.b16 %v508
        %v541 = vunpack.c.l.b16 %v509
        %v542 = vpack.c.b16 %v527, %v526
        %v543 = vpack.c.b16 %v529, %v528
        %v544 = vpack.c.b16 %v531, %v530
        %v545 = vpack.c.b16 %v533, %v532
        %v546 = vpack.c.b16 %v535, %v534
        %v547 = vpack.c.b16 %v537, %v536
        %v548 = vpack.c.b16 %v539, %v538
        %v549 = vpack.c.b16 %v541, %v540
        %vm558 = vsmask.f32 7424
        %v560 = vshrl.u32 %v542, 16
        %v562 = vshll.u32 %v542, 16
        %v564 = vrot.slane %v562, 1
        %v565 = vor.u32 %v560, %v564
        %v567 = vshll.u32 %v543, 16
        %v569 = vrot.slane %v567, 1
        %v570 = vsel %vm558, %v565, %v569
        %v571 = vshrl.u32 %v543, 16
        %v573 = vor.u32 %v571, %v569
        %v575 = vshll.u32 %v544, 16
        %v577 = vrot.slane %v575, 1
        %v578 = vsel %vm558, %v573, %v577
        %v579 = vshrl.u32 %v544, 16
        %v581 = vor.u32 %v579, %v577
        %v583 = vshll.u32 %v545, 16
        %v585 = vrot.slane %v583, 1
        %v586 = vsel %vm558, %v581, %v585
        %v587 = vshrl.u32 %v545, 16
        %v589 = vor.u32 %v587, %v585
        %v591 = vshll.u32 %v546, 16
        %v593 = vrot.slane %v591, 1
        %v594 = vsel %vm558, %v589, %v593
        %v595 = vshrl.u32 %v546, 16
        %v597 = vor.u32 %v595, %v593
        %v599 = vshll.u32 %v547, 16
        %v601 = vrot.slane %v599, 1
        %v602 = vsel %vm558, %v597, %v601
        %v603 = vshrl.u32 %v547, 16
        %v605 = vor.u32 %v603, %v601
        %v607 = vshll.u32 %v548, 16
        %v609 = vrot.slane %v607, 1
        %v610 = vsel %vm558, %v605, %v609
        %v611 = vshrl.u32 %v548, 16
        %v613 = vor.u32 %v611, %v609
        %v615 = vshll.u32 %v549, 16
        %v617 = vrot.slane %v615, 1
        %v618 = vsel %vm558, %v613, %v617
        %v619 = vshrl.u32 %v549, 16
        %v621 = vor.u32 %v619, %v617
        %vm630 = vcmask 1046528
        %v631 = vrot.slane %v542, 1
        %v632 = vrot.slane %v543, 1
        %v633 = vsel %vm630, %v631, %v632
        %v634 = vrot.slane %v544, 1
        %v635 = vsel %vm630, %v632, %v634
        %v636 = vrot.slane %v545, 1
        %v637 = vsel %vm630, %v634, %v636
        %v638 = vrot.slane %v546, 1
        %v639 = vsel %vm630, %v636, %v638
        %v640 = vrot.slane %v547, 1
        %v641 = vsel %vm630, %v638, %v640
        %v642 = vrot.slane %v548, 1
        %v643 = vsel %vm630, %v640, %v642
        %v644 = vrot.slane %v549, 1
        %v645 = vsel %vm630, %v642, %v644
        %vm654 = vsmask.f32 6400
        %v655 = vrot.slane %v560, 1
        %v656 = vrot.slane %v562, 2
        %v657 = vor.u32 %v655, %v656
        %v658 = vrot.slane %v571, 1
        %v659 = vrot.slane %v567, 2
        %v660 = vor.u32 %v658, %v659
        %v661 = vsel %vm654, %v657, %v660
        %v662 = vrot.slane %v579, 1
        %v663 = vrot.slane %v575, 2
        %v664 = vor.u32 %v662, %v663
        %v665 = vsel %vm654, %v660, %v664
        %v666 = vrot.slane %v587, 1
        %v667 = vrot.slane %v583, 2
        %v668 = vor.u32 %v666, %v667
        %v669 = vsel %vm654, %v664, %v668
        %v670 = vrot.slane %v595, 1
        %v671 = vrot.slane %v591, 2
        %v672 = vor.u32 %v670, %v671
        %v673 = vsel %vm654, %v668, %v672
        %v674 = vrot.slane %v603, 1
        %v675 = vrot.slane %v599, 2
        %v676 = vor.u32 %v674, %v675
        %v677 = vsel %vm654, %v672, %v676
        %v678 = vrot.slane %v611, 1
        %v679 = vrot.slane %v607, 2
        %v680 = vor.u32 %v678, %v679
        %v681 = vsel %vm654, %v676, %v680
        %v682 = vrot.slane %v619, 1
        %v683 = vrot.slane %v615, 2
        %v684 = vor.u32 %v682, %v683
        %v685 = vsel %vm654, %v680, %v684
        %vm694 = vcmask 1045504
        %v695 = vrot.slane %v542, 2
        %v696 = vrot.slane %v543, 2
        %v697 = vsel %vm694, %v695, %v696
        %v698 = vrot.slane %v544, 2
        %v699 = vsel %vm694, %v696, %v698
        %v700 = vrot.slane %v545, 2
        %v701 = vsel %vm694, %v698, %v700
        %v702 = vrot.slane %v546, 2
        %v703 = vsel %vm694, %v700, %v702
        %v704 = vrot.slane %v547, 2
        %v705 = vsel %vm694, %v702, %v704
        %v706 = vrot.slane %v548, 2
        %v707 = vsel %vm694, %v704, %v706
        %v708 = vrot.slane %v549, 2
        %v709 = vsel %vm694, %v706, %v708
        %v718 = vld [vmem:[%s1] sm:$0xff]
        %v719 = vld [vmem:[%s1 + $0x8] sm:$0xff]
        %v720 = vld [vmem:[%s1 + $0x10] sm:$0xff]
        %v721 = vld [vmem:[%s1 + $0x18] sm:$0xff]
        %v722 = vld [vmem:[%s1 + $0x20] sm:$0xff]
        %v723 = vld [vmem:[%s1 + $0x28] sm:$0xff]
        %v724 = vld [vmem:[%s1 + $0x30] sm:$0xff]
        %v725 = vld [vmem:[%s1 + $0x38] sm:$0xff]
        %v726 = vld [vmem:[%s1 + $0x40] sm:$0xff]
        %v727 = vld [vmem:[%s1 + $0x48] sm:$0xff]
        %v728 = vld [vmem:[%s1 + $0x50] sm:$0xff]
        %v729 = vld [vmem:[%s1 + $0x58] sm:$0xff]
        %v730 = vld [vmem:[%s1 + $0x60] sm:$0xff]
        %v731 = vld [vmem:[%s1 + $0x68] sm:$0xff]
        %v732 = vld [vmem:[%s1 + $0x70] sm:$0xff]
        %v733 = vld [vmem:[%s1 + $0x78] sm:$0xff]
        %v734 = vld [vmem:[%s1 + $0x80] sm:$0xff]
        %v735 = vld [vmem:[%s1 + $0x88] sm:$0xff]
        %v736 = vld [vmem:[%s1 + $0x90] sm:$0xff]
        %v737 = vld [vmem:[%s1 + $0x98] sm:$0xff]
        %v738 = vld [vmem:[%s1 + $0xa0] sm:$0xff]
        %v739 = vld [vmem:[%s1 + $0xa8] sm:$0xff]
        %v740 = vld [vmem:[%s1 + $0xb0] sm:$0xff]
        %v741 = vld [vmem:[%s1 + $0xb8] sm:$0xff]
        %v742 = vld [vmem:[%s1 + $0xc0] sm:$0xff]
        %v743 = vld [vmem:[%s1 + $0xc8] sm:$0xff]
        %v744 = vld [vmem:[%s1 + $0xd0] sm:$0xff]
        %v745 = vld [vmem:[%s1 + $0xd8] sm:$0xff]
        %v746 = vld [vmem:[%s1 + $0xe0] sm:$0xff]
        %v747 = vld [vmem:[%s1 + $0xe8] sm:$0xff]
        %v748 = vld [vmem:[%s1 + $0xf0] sm:$0xff]
        %v749 = vld [vmem:[%s1 + $0xf8] sm:$0xff]
        %v750 = vld [vmem:[%s1 + $0x100] sm:$0xff]
        %v751 = vld [vmem:[%s1 + $0x108] sm:$0xff]
        %v752 = vld [vmem:[%s1 + $0x110] sm:$0xff]
        %v753 = vld [vmem:[%s1 + $0x118] sm:$0xff]
        %v754 = vld [vmem:[%s1 + $0x120] sm:$0xff]
        %v755 = vld [vmem:[%s1 + $0x128] sm:$0xff]
        %v756 = vld [vmem:[%s1 + $0x130] sm:$0xff]
        %v757 = vld [vmem:[%s1 + $0x138] sm:$0xff]
        %v758 = vld [vmem:[%s1 + $0x140] sm:$0xff]
        %v759 = vld [vmem:[%s1 + $0x148] sm:$0xff]
        %v760 = vld [vmem:[%s1 + $0x150] sm:$0xff]
        %v761 = vld [vmem:[%s1 + $0x158] sm:$0xff]
        %v762 = vld [vmem:[%s1 + $0x160] sm:$0xff]
        %v763 = vld [vmem:[%s1 + $0x168] sm:$0xff]
        %v764 = vld [vmem:[%s1 + $0x170] sm:$0xff]
        %v765 = vld [vmem:[%s1 + $0x178] sm:$0xff]
        %v766 = vld [vmem:[%s1 + $0x180] sm:$0xff]
        %v767 = vld [vmem:[%s1 + $0x188] sm:$0xff]
        %v768 = vld [vmem:[%s1 + $0x190] sm:$0xff]
        %v769 = vld [vmem:[%s1 + $0x198] sm:$0xff]
        %v770 = vld [vmem:[%s1 + $0x1a0] sm:$0xff]
        %v771 = vld [vmem:[%s1 + $0x1a8] sm:$0xff]
        %v772 = vld [vmem:[%s1 + $0x1b0] sm:$0xff]
        %v773 = vld [vmem:[%s1 + $0x1b8] sm:$0xff]
        %v774 = vld [vmem:[%s1 + $0x1c0] sm:$0xff]
        %v775 = vld [vmem:[%s1 + $0x1c8] sm:$0xff]
        %v776 = vld [vmem:[%s1 + $0x1d0] sm:$0xff]
        %v777 = vld [vmem:[%s1 + $0x1d8] sm:$0xff]
        %v778 = vld [vmem:[%s1 + $0x1e0] sm:$0xff]
        %v779 = vld [vmem:[%s1 + $0x1e8] sm:$0xff]
        %v780 = vld [vmem:[%s1 + $0x1f0] sm:$0xff]
        %v781 = vld [vmem:[%s1 + $0x1f8] sm:$0xff]
        %v782 = vld [vmem:[%s1 + $0x200] sm:$0xff]
        %v783 = vld [vmem:[%s1 + $0x208] sm:$0xff]
        %v784 = vld [vmem:[%s1 + $0x210] sm:$0xff]
        %v785 = vld [vmem:[%s1 + $0x218] sm:$0xff]
        %v786 = vld [vmem:[%s1 + $0x220] sm:$0xff]
        %v787 = vld [vmem:[%s1 + $0x228] sm:$0xff]
        %v788 = vld [vmem:[%s1 + $0x230] sm:$0xff]
        %v789 = vld [vmem:[%s1 + $0x238] sm:$0xff]
        %v790 = vld [vmem:[%s1 + $0x240] sm:$0xff]
        %v791 = vld [vmem:[%s1 + $0x248] sm:$0xff]
        %v792 = vld [vmem:[%s1 + $0x250] sm:$0xff]
        %v793 = vld [vmem:[%s1 + $0x258] sm:$0xff]
        %v794 = vld [vmem:[%s1 + $0x260] sm:$0xff]
        %v795 = vld [vmem:[%s1 + $0x268] sm:$0xff]
        %v796 = vld [vmem:[%s1 + $0x270] sm:$0xff]
        %v797 = vld [vmem:[%s1 + $0x278] sm:$0xff]
        %v878 = vunpack.c.l.b16 %v718
        %v879 = vunpack.c.h.b16 %v718
        %v880 = vunpack.c.l.b16 %v719
        %v881 = vunpack.c.h.b16 %v719
        %v882 = vunpack.c.l.b16 %v720
        %v883 = vunpack.c.h.b16 %v720
        %v884 = vunpack.c.l.b16 %v721
        %v885 = vunpack.c.h.b16 %v721
        %v886 = vunpack.c.l.b16 %v722
        %v887 = vunpack.c.h.b16 %v722
        %v888 = vunpack.c.l.b16 %v723
        %v889 = vunpack.c.h.b16 %v723
        %v890 = vunpack.c.l.b16 %v724
        %v891 = vunpack.c.h.b16 %v724
        %v892 = vunpack.c.l.b16 %v725
        %v893 = vunpack.c.h.b16 %v725
        %v894 = vunpack.c.l.b16 %v726
        %v895 = vunpack.c.h.b16 %v726
        %v896 = vunpack.c.l.b16 %v727
        %v897 = vunpack.c.h.b16 %v727
        %v898 = vunpack.c.l.b16 %v728
        %v899 = vunpack.c.h.b16 %v728
        %v900 = vunpack.c.l.b16 %v729
        %v901 = vunpack.c.h.b16 %v729
        %v902 = vunpack.c.l.b16 %v730
        %v903 = vunpack.c.h.b16 %v730
        %v904 = vunpack.c.l.b16 %v731
        %v905 = vunpack.c.h.b16 %v731
        %v906 = vunpack.c.l.b16 %v732
        %v907 = vunpack.c.h.b16 %v732
        %v908 = vunpack.c.l.b16 %v733
        %v909 = vunpack.c.h.b16 %v733
        %v910 = vunpack.c.l.b16 %v734
        %v911 = vunpack.c.h.b16 %v734
        %v912 = vunpack.c.l.b16 %v735
        %v913 = vunpack.c.h.b16 %v735
        %v914 = vunpack.c.l.b16 %v736
        %v915 = vunpack.c.h.b16 %v736
        %v916 = vunpack.c.l.b16 %v737
        %v917 = vunpack.c.h.b16 %v737
        %v918 = vunpack.c.l.b16 %v738
        %v919 = vunpack.c.h.b16 %v738
        %v920 = vunpack.c.l.b16 %v739
        %v921 = vunpack.c.h.b16 %v739
        %v922 = vunpack.c.l.b16 %v740
        %v923 = vunpack.c.h.b16 %v740
        %v924 = vunpack.c.l.b16 %v741
        %v925 = vunpack.c.h.b16 %v741
        %v926 = vunpack.c.l.b16 %v742
        %v927 = vunpack.c.h.b16 %v742
        %v928 = vunpack.c.l.b16 %v743
        %v929 = vunpack.c.h.b16 %v743
        %v930 = vunpack.c.l.b16 %v744
        %v931 = vunpack.c.h.b16 %v744
        %v932 = vunpack.c.l.b16 %v745
        %v933 = vunpack.c.h.b16 %v745
        %v934 = vunpack.c.l.b16 %v746
        %v935 = vunpack.c.h.b16 %v746
        %v936 = vunpack.c.l.b16 %v747
        %v937 = vunpack.c.h.b16 %v747
        %v938 = vunpack.c.l.b16 %v748
        %v939 = vunpack.c.h.b16 %v748
        %v940 = vunpack.c.l.b16 %v749
        %v941 = vunpack.c.h.b16 %v749
        %v942 = vunpack.c.l.b16 %v750
        %v943 = vunpack.c.h.b16 %v750
        %v944 = vunpack.c.l.b16 %v751
        %v945 = vunpack.c.h.b16 %v751
        %v946 = vunpack.c.l.b16 %v752
        %v947 = vunpack.c.h.b16 %v752
        %v948 = vunpack.c.l.b16 %v753
        %v949 = vunpack.c.h.b16 %v753
        %v950 = vunpack.c.l.b16 %v754
        %v951 = vunpack.c.h.b16 %v754
        %v952 = vunpack.c.l.b16 %v755
        %v953 = vunpack.c.h.b16 %v755
        %v954 = vunpack.c.l.b16 %v756
        %v955 = vunpack.c.h.b16 %v756
        %v956 = vunpack.c.l.b16 %v757
        %v957 = vunpack.c.h.b16 %v757
        %v958 = vunpack.c.l.b16 %v758
        %v959 = vunpack.c.h.b16 %v758
        %v960 = vunpack.c.l.b16 %v759
        %v961 = vunpack.c.h.b16 %v759
        %v962 = vunpack.c.l.b16 %v760
        %v963 = vunpack.c.h.b16 %v760
        %v964 = vunpack.c.l.b16 %v761
        %v965 = vunpack.c.h.b16 %v761
        %v966 = vunpack.c.l.b16 %v762
        %v967 = vunpack.c.h.b16 %v762
        %v968 = vunpack.c.l.b16 %v763
        %v969 = vunpack.c.h.b16 %v763
        %v970 = vunpack.c.l.b16 %v764
        %v971 = vunpack.c.h.b16 %v764
        %v972 = vunpack.c.l.b16 %v765
        %v973 = vunpack.c.h.b16 %v765
        %v974 = vunpack.c.l.b16 %v766
        %v975 = vunpack.c.h.b16 %v766
        %v976 = vunpack.c.l.b16 %v767
        %v977 = vunpack.c.h.b16 %v767
        %v978 = vunpack.c.l.b16 %v768
        %v979 = vunpack.c.h.b16 %v768
        %v980 = vunpack.c.l.b16 %v769
        %v981 = vunpack.c.h.b16 %v769
        %v982 = vunpack.c.l.b16 %v770
        %v983 = vunpack.c.h.b16 %v770
        %v984 = vunpack.c.l.b16 %v771
        %v985 = vunpack.c.h.b16 %v771
        %v986 = vunpack.c.l.b16 %v772
        %v987 = vunpack.c.h.b16 %v772
        %v988 = vunpack.c.l.b16 %v773
        %v989 = vunpack.c.h.b16 %v773
        %v990 = vunpack.c.l.b16 %v774
        %v991 = vunpack.c.h.b16 %v774
        %v992 = vunpack.c.l.b16 %v775
        %v993 = vunpack.c.h.b16 %v775
        %v994 = vunpack.c.l.b16 %v776
        %v995 = vunpack.c.h.b16 %v776
        %v996 = vunpack.c.l.b16 %v777
        %v997 = vunpack.c.h.b16 %v777
        %v998 = vunpack.c.l.b16 %v778
        %v999 = vunpack.c.h.b16 %v778
        %v1000 = vunpack.c.l.b16 %v779
        %v1001 = vunpack.c.h.b16 %v779
        %v1002 = vunpack.c.l.b16 %v780
        %v1003 = vunpack.c.h.b16 %v780
        %v1004 = vunpack.c.l.b16 %v781
        %v1005 = vunpack.c.h.b16 %v781
        %v1006 = vunpack.c.l.b16 %v782
        %v1007 = vunpack.c.h.b16 %v782
        %v1008 = vunpack.c.l.b16 %v783
        %v1009 = vunpack.c.h.b16 %v783
        %v1010 = vunpack.c.l.b16 %v784
        %v1011 = vunpack.c.h.b16 %v784
        %v1012 = vunpack.c.l.b16 %v785
        %v1013 = vunpack.c.h.b16 %v785
        %v1014 = vunpack.c.l.b16 %v786
        %v1015 = vunpack.c.h.b16 %v786
        %v1016 = vunpack.c.l.b16 %v787
        %v1017 = vunpack.c.h.b16 %v787
        %v1018 = vunpack.c.l.b16 %v788
        %v1019 = vunpack.c.h.b16 %v788
        %v1020 = vunpack.c.l.b16 %v789
        %v1021 = vunpack.c.h.b16 %v789
        %v1022 = vunpack.c.l.b16 %v790
        %v1023 = vunpack.c.h.b16 %v790
        %v1024 = vunpack.c.l.b16 %v791
        %v1025 = vunpack.c.h.b16 %v791
        %v1026 = vunpack.c.l.b16 %v792
        %v1027 = vunpack.c.h.b16 %v792
        %v1028 = vunpack.c.l.b16 %v793
        %v1029 = vunpack.c.h.b16 %v793
        %v1030 = vunpack.c.l.b16 %v794
        %v1031 = vunpack.c.h.b16 %v794
        %v1032 = vunpack.c.l.b16 %v795
        %v1033 = vunpack.c.h.b16 %v795
        %v1034 = vunpack.c.l.b16 %v796
        %v1035 = vunpack.c.h.b16 %v796
        %v1036 = vunpack.c.l.b16 %v797
        %v1037 = vunpack.c.h.b16 %v797
        %v1038 = vpack.c.b16 %v880, %v878
        %v1039 = vpack.c.b16 %v881, %v879
        %v1040 = vpack.c.b16 %v884, %v882
        %v1041 = vpack.c.b16 %v885, %v883
        %v1042 = vpack.c.b16 %v888, %v886
        %v1043 = vpack.c.b16 %v889, %v887
        %v1044 = vpack.c.b16 %v892, %v890
        %v1045 = vpack.c.b16 %v893, %v891
        %v1046 = vpack.c.b16 %v896, %v894
        %v1047 = vpack.c.b16 %v897, %v895
        %v1048 = vpack.c.b16 %v900, %v898
        %v1049 = vpack.c.b16 %v901, %v899
        %v1050 = vpack.c.b16 %v904, %v902
        %v1051 = vpack.c.b16 %v905, %v903
        %v1052 = vpack.c.b16 %v908, %v906
        %v1053 = vpack.c.b16 %v909, %v907
        %v1054 = vpack.c.b16 %v912, %v910
        %v1055 = vpack.c.b16 %v913, %v911
        %v1056 = vpack.c.b16 %v916, %v914
        %v1057 = vpack.c.b16 %v917, %v915
        %v1058 = vpack.c.b16 %v920, %v918
        %v1059 = vpack.c.b16 %v921, %v919
        %v1060 = vpack.c.b16 %v924, %v922
        %v1061 = vpack.c.b16 %v925, %v923
        %v1062 = vpack.c.b16 %v928, %v926
        %v1063 = vpack.c.b16 %v929, %v927
        %v1064 = vpack.c.b16 %v932, %v930
        %v1065 = vpack.c.b16 %v933, %v931
        %v1066 = vpack.c.b16 %v936, %v934
        %v1067 = vpack.c.b16 %v937, %v935
        %v1068 = vpack.c.b16 %v940, %v938
        %v1069 = vpack.c.b16 %v941, %v939
        %v1070 = vpack.c.b16 %v944, %v942
        %v1071 = vpack.c.b16 %v945, %v943
        %v1072 = vpack.c.b16 %v948, %v946
        %v1073 = vpack.c.b16 %v949, %v947
        %v1074 = vpack.c.b16 %v952, %v950
        %v1075 = vpack.c.b16 %v953, %v951
        %v1076 = vpack.c.b16 %v956, %v954
        %v1077 = vpack.c.b16 %v957, %v955
        %v1078 = vpack.c.b16 %v960, %v958
        %v1079 = vpack.c.b16 %v961, %v959
        %v1080 = vpack.c.b16 %v964, %v962
        %v1081 = vpack.c.b16 %v965, %v963
        %v1082 = vpack.c.b16 %v968, %v966
        %v1083 = vpack.c.b16 %v969, %v967
        %v1084 = vpack.c.b16 %v972, %v970
        %v1085 = vpack.c.b16 %v973, %v971
        %v1086 = vpack.c.b16 %v976, %v974
        %v1087 = vpack.c.b16 %v977, %v975
        %v1088 = vpack.c.b16 %v980, %v978
        %v1089 = vpack.c.b16 %v981, %v979
        %v1090 = vpack.c.b16 %v984, %v982
        %v1091 = vpack.c.b16 %v985, %v983
        %v1092 = vpack.c.b16 %v988, %v986
        %v1093 = vpack.c.b16 %v989, %v987
        %v1094 = vpack.c.b16 %v992, %v990
        %v1095 = vpack.c.b16 %v993, %v991
        %v1096 = vpack.c.b16 %v996, %v994
        %v1097 = vpack.c.b16 %v997, %v995
        %v1098 = vpack.c.b16 %v1000, %v998
        %v1099 = vpack.c.b16 %v1001, %v999
        %v1100 = vpack.c.b16 %v1004, %v1002
        %v1101 = vpack.c.b16 %v1005, %v1003
        %v1102 = vpack.c.b16 %v1008, %v1006
        %v1103 = vpack.c.b16 %v1009, %v1007
        %v1104 = vpack.c.b16 %v1012, %v1010
        %v1105 = vpack.c.b16 %v1013, %v1011
        %v1106 = vpack.c.b16 %v1016, %v1014
        %v1107 = vpack.c.b16 %v1017, %v1015
        %v1108 = vpack.c.b16 %v1020, %v1018
        %v1109 = vpack.c.b16 %v1021, %v1019
        %v1110 = vpack.c.b16 %v1024, %v1022
        %v1111 = vpack.c.b16 %v1025, %v1023
        %v1112 = vpack.c.b16 %v1028, %v1026
        %v1113 = vpack.c.b16 %v1029, %v1027
        %v1114 = vpack.c.b16 %v1032, %v1030
        %v1115 = vpack.c.b16 %v1033, %v1031
        %v1116 = vpack.c.b16 %v1036, %v1034
        %v1117 = vpack.c.b16 %v1037, %v1035
        %1198 = vmatpush.bf16.msra.mxu0 %v1052
        %1199 = vmatpush.bf16.msra.mxu0 %v1050
        %1200 = vmatpush.bf16.msra.mxu0 %v1048
        %1201 = vmatpush.bf16.msra.mxu0 %v1046
        %1202 = vmatpush.bf16.msra.mxu0 %v1044
        %1203 = vmatpush.bf16.msra.mxu0 %v1042
        %1204 = vmatpush.bf16.msra.mxu0 %v1040
        %1205 = vmatpush.bf16.msra.mxu0 %v1038
        %1206 = vmatmul.bf16.gmra.mxu0 %v542
        %v1207 = vpop.f32.mrf.mxu0
        %v1208 = vadd.f32 0.0, %v1207
        %v1209 = vpop.f32.mrf.mxu0
        %v1210 = vadd.f32 0.0, %v1209
        %1211 = vmatmul.bf16.gmra.mxu0 %v543
        %v1212 = vpop.f32.mrf.mxu0
        %v1213 = vadd.f32 0.0, %v1212
        %v1214 = vpop.f32.mrf.mxu0
        %v1215 = vadd.f32 0.0, %v1214
        %1216 = vmatmul.bf16.gmra.mxu0 %v544
        %v1217 = vpop.f32.mrf.mxu0
        %v1218 = vadd.f32 0.0, %v1217
        %v1219 = vpop.f32.mrf.mxu0
        %v1220 = vadd.f32 0.0, %v1219
        %1221 = vmatmul.bf16.gmra.mxu0 %v545
        %v1222 = vpop.f32.mrf.mxu0
        %v1223 = vadd.f32 0.0, %v1222
        %v1224 = vpop.f32.mrf.mxu0
        %v1225 = vadd.f32 0.0, %v1224
        %1226 = vmatmul.bf16.gmra.mxu0 %v546
        %v1227 = vpop.f32.mrf.mxu0
        %v1228 = vadd.f32 0.0, %v1227
        %v1229 = vpop.f32.mrf.mxu0
        %v1230 = vadd.f32 0.0, %v1229
        %1231 = vmatmul.bf16.gmra.mxu0 %v547
        %v1232 = vpop.f32.mrf.mxu0
        %v1233 = vadd.f32 0.0, %v1232
        %v1234 = vpop.f32.mrf.mxu0
        %v1235 = vadd.f32 0.0, %v1234
        %1236 = vmatmul.bf16.gmra.mxu0 %v548
        %v1237 = vpop.f32.mrf.mxu0
        %v1238 = vadd.f32 0.0, %v1237
        %v1239 = vpop.f32.mrf.mxu0
        %v1240 = vadd.f32 0.0, %v1239
        %1241 = vmatmul.bf16.gmra.mxu0 %v549
        %v1242 = vpop.f32.mrf.mxu0
        %v1243 = vadd.f32 0.0, %v1242
        %v1244 = vpop.f32.mrf.mxu0
        %v1245 = vadd.f32 0.0, %v1244
        %1246 = vdwg.mxu0
        %1247 = vmatpush.bf16.msra.mxu0 %v1068
        %1248 = vmatpush.bf16.msra.mxu0 %v1066
        %1249 = vmatpush.bf16.msra.mxu0 %v1064
        %1250 = vmatpush.bf16.msra.mxu0 %v1062
        %1251 = vmatpush.bf16.msra.mxu0 %v1060
        %1252 = vmatpush.bf16.msra.mxu0 %v1058
        %1253 = vmatpush.bf16.msra.mxu0 %v1056
        %1254 = vmatpush.bf16.msra.mxu0 %v1054
        %1255 = vmatmul.bf16.gmra.mxu0 %v570
        %v1256 = vpop.f32.mrf.mxu0
        %v1257 = vadd.f32 %v1208, %v1256
        %v1258 = vpop.f32.mrf.mxu0
        %v1259 = vadd.f32 %v1210, %v1258
        %1260 = vmatmul.bf16.gmra.mxu0 %v578
        %v1261 = vpop.f32.mrf.mxu0
        %v1262 = vadd.f32 %v1213, %v1261
        %v1263 = vpop.f32.mrf.mxu0
        %v1264 = vadd.f32 %v1215, %v1263
        %1265 = vmatmul.bf16.gmra.mxu0 %v586
        %v1266 = vpop.f32.mrf.mxu0
        %v1267 = vadd.f32 %v1218, %v1266
        %v1268 = vpop.f32.mrf.mxu0
        %v1269 = vadd.f32 %v1220, %v1268
        %1270 = vmatmul.bf16.gmra.mxu0 %v594
        %v1271 = vpop.f32.mrf.mxu0
        %v1272 = vadd.f32 %v1223, %v1271
        %v1273 = vpop.f32.mrf.mxu0
        %v1274 = vadd.f32 %v1225, %v1273
        %1275 = vmatmul.bf16.gmra.mxu0 %v602
        %v1276 = vpop.f32.mrf.mxu0
        %v1277 = vadd.f32 %v1228, %v1276
        %v1278 = vpop.f32.mrf.mxu0
        %v1279 = vadd.f32 %v1230, %v1278
        %1280 = vmatmul.bf16.gmra.mxu0 %v610
        %v1281 = vpop.f32.mrf.mxu0
        %v1282 = vadd.f32 %v1233, %v1281
        %v1283 = vpop.f32.mrf.mxu0
        %v1284 = vadd.f32 %v1235, %v1283
        %1285 = vmatmul.bf16.gmra.mxu0 %v618
        %v1286 = vpop.f32.mrf.mxu0
        %v1287 = vadd.f32 %v1238, %v1286
        %v1288 = vpop.f32.mrf.mxu0
        %v1289 = vadd.f32 %v1240, %v1288
        %1290 = vmatmul.bf16.gmra.mxu0 %v621
        %v1291 = vpop.f32.mrf.mxu0
        %v1292 = vadd.f32 %v1243, %v1291
        %v1293 = vpop.f32.mrf.mxu0
        %v1294 = vadd.f32 %v1245, %v1293
        %1295 = vdwg.mxu0
        %1296 = vmatpush.bf16.msra.mxu0 %v1084
        %1297 = vmatpush.bf16.msra.mxu0 %v1082
        %1298 = vmatpush.bf16.msra.mxu0 %v1080
        %1299 = vmatpush.bf16.msra.mxu0 %v1078
        %1300 = vmatpush.bf16.msra.mxu0 %v1076
        %1301 = vmatpush.bf16.msra.mxu0 %v1074
        %1302 = vmatpush.bf16.msra.mxu0 %v1072
        %1303 = vmatpush.bf16.msra.mxu0 %v1070
        %1304 = vmatmul.bf16.gmra.mxu0 %v633
        %v1305 = vpop.f32.mrf.mxu0
        %v1306 = vadd.f32 %v1257, %v1305
        %v1307 = vpop.f32.mrf.mxu0
        %v1308 = vadd.f32 %v1259, %v1307
        %1309 = vmatmul.bf16.gmra.mxu0 %v635
        %v1310 = vpop.f32.mrf.mxu0
        %v1311 = vadd.f32 %v1262, %v1310
        %v1312 = vpop.f32.mrf.mxu0
        %v1313 = vadd.f32 %v1264, %v1312
        %1314 = vmatmul.bf16.gmra.mxu0 %v637
        %v1315 = vpop.f32.mrf.mxu0
        %v1316 = vadd.f32 %v1267, %v1315
        %v1317 = vpop.f32.mrf.mxu0
        %v1318 = vadd.f32 %v1269, %v1317
        %1319 = vmatmul.bf16.gmra.mxu0 %v639
        %v1320 = vpop.f32.mrf.mxu0
        %v1321 = vadd.f32 %v1272, %v1320
        %v1322 = vpop.f32.mrf.mxu0
        %v1323 = vadd.f32 %v1274, %v1322
        %1324 = vmatmul.bf16.gmra.mxu0 %v641
        %v1325 = vpop.f32.mrf.mxu0
        %v1326 = vadd.f32 %v1277, %v1325
        %v1327 = vpop.f32.mrf.mxu0
        %v1328 = vadd.f32 %v1279, %v1327
        %1329 = vmatmul.bf16.gmra.mxu0 %v643
        %v1330 = vpop.f32.mrf.mxu0
        %v1331 = vadd.f32 %v1282, %v1330
        %v1332 = vpop.f32.mrf.mxu0
        %v1333 = vadd.f32 %v1284, %v1332
        %1334 = vmatmul.bf16.gmra.mxu0 %v645
        %v1335 = vpop.f32.mrf.mxu0
        %v1336 = vadd.f32 %v1287, %v1335
        %v1337 = vpop.f32.mrf.mxu0
        %v1338 = vadd.f32 %v1289, %v1337
        %1339 = vmatmul.bf16.gmra.mxu0 %v644
        %v1340 = vpop.f32.mrf.mxu0
        %v1341 = vadd.f32 %v1292, %v1340
        %v1342 = vpop.f32.mrf.mxu0
        %v1343 = vadd.f32 %v1294, %v1342
        %1344 = vdwg.mxu0
        %1345 = vmatpush.bf16.msra.mxu0 %v1100
        %1346 = vmatpush.bf16.msra.mxu0 %v1098
        %1347 = vmatpush.bf16.msra.mxu0 %v1096
        %1348 = vmatpush.bf16.msra.mxu0 %v1094
        %1349 = vmatpush.bf16.msra.mxu0 %v1092
        %1350 = vmatpush.bf16.msra.mxu0 %v1090
        %1351 = vmatpush.bf16.msra.mxu0 %v1088
        %1352 = vmatpush.bf16.msra.mxu0 %v1086
        %1353 = vmatmul.bf16.gmra.mxu0 %v661
        %v1354 = vpop.f32.mrf.mxu0
        %v1355 = vadd.f32 %v1306, %v1354
        %v1356 = vpop.f32.mrf.mxu0
        %v1357 = vadd.f32 %v1308, %v1356
        %1358 = vmatmul.bf16.gmra.mxu0 %v665
        %v1359 = vpop.f32.mrf.mxu0
        %v1360 = vadd.f32 %v1311, %v1359
        %v1361 = vpop.f32.mrf.mxu0
        %v1362 = vadd.f32 %v1313, %v1361
        %1363 = vmatmul.bf16.gmra.mxu0 %v669
        %v1364 = vpop.f32.mrf.mxu0
        %v1365 = vadd.f32 %v1316, %v1364
        %v1366 = vpop.f32.mrf.mxu0
        %v1367 = vadd.f32 %v1318, %v1366
        %1368 = vmatmul.bf16.gmra.mxu0 %v673
        %v1369 = vpop.f32.mrf.mxu0
        %v1370 = vadd.f32 %v1321, %v1369
        %v1371 = vpop.f32.mrf.mxu0
        %v1372 = vadd.f32 %v1323, %v1371
        %1373 = vmatmul.bf16.gmra.mxu0 %v677
        %v1374 = vpop.f32.mrf.mxu0
        %v1375 = vadd.f32 %v1326, %v1374
        %v1376 = vpop.f32.mrf.mxu0
        %v1377 = vadd.f32 %v1328, %v1376
        %1378 = vmatmul.bf16.gmra.mxu0 %v681
        %v1379 = vpop.f32.mrf.mxu0
        %v1380 = vadd.f32 %v1331, %v1379
        %v1381 = vpop.f32.mrf.mxu0
        %v1382 = vadd.f32 %v1333, %v1381
        %1383 = vmatmul.bf16.gmra.mxu0 %v685
        %v1384 = vpop.f32.mrf.mxu0
        %v1385 = vadd.f32 %v1336, %v1384
        %v1386 = vpop.f32.mrf.mxu0
        %v1387 = vadd.f32 %v1338, %v1386
        %1388 = vmatmul.bf16.gmra.mxu0 %v684
        %v1389 = vpop.f32.mrf.mxu0
        %v1390 = vadd.f32 %v1341, %v1389
        %v1391 = vpop.f32.mrf.mxu0
        %v1392 = vadd.f32 %v1343, %v1391
        %1393 = vdwg.mxu0
        %1394 = vmatpush.bf16.msra.mxu0 %v1116
        %1395 = vmatpush.bf16.msra.mxu0 %v1114
        %1396 = vmatpush.bf16.msra.mxu0 %v1112
        %1397 = vmatpush.bf16.msra.mxu0 %v1110
        %1398 = vmatpush.bf16.msra.mxu0 %v1108
        %1399 = vmatpush.bf16.msra.mxu0 %v1106
        %1400 = vmatpush.bf16.msra.mxu0 %v1104
        %1401 = vmatpush.bf16.msra.mxu0 %v1102
        %1402 = vmatmul.bf16.gmra.mxu0 %v697
        %v1403 = vpop.f32.mrf.mxu0
        %v1404 = vadd.f32 %v1355, %v1403
        %v1405 = vpop.f32.mrf.mxu0
        %v1406 = vadd.f32 %v1357, %v1405
        %1407 = vmatmul.bf16.gmra.mxu0 %v699
        %v1408 = vpop.f32.mrf.mxu0
        %v1409 = vadd.f32 %v1360, %v1408
        %v1410 = vpop.f32.mrf.mxu0
        %v1411 = vadd.f32 %v1362, %v1410
        %1412 = vmatmul.bf16.gmra.mxu0 %v701
        %v1413 = vpop.f32.mrf.mxu0
        %v1414 = vadd.f32 %v1365, %v1413
        %v1415 = vpop.f32.mrf.mxu0
        %v1416 = vadd.f32 %v1367, %v1415
        %1417 = vmatmul.bf16.gmra.mxu0 %v703
        %v1418 = vpop.f32.mrf.mxu0
        %v1419 = vadd.f32 %v1370, %v1418
        %v1420 = vpop.f32.mrf.mxu0
        %v1421 = vadd.f32 %v1372, %v1420
        %1422 = vmatmul.bf16.gmra.mxu0 %v705
        %v1423 = vpop.f32.mrf.mxu0
        %v1424 = vadd.f32 %v1375, %v1423
        %v1425 = vpop.f32.mrf.mxu0
        %v1426 = vadd.f32 %v1377, %v1425
        %1427 = vmatmul.bf16.gmra.mxu0 %v707
        %v1428 = vpop.f32.mrf.mxu0
        %v1429 = vadd.f32 %v1380, %v1428
        %v1430 = vpop.f32.mrf.mxu0
        %v1431 = vadd.f32 %v1382, %v1430
        %1432 = vmatmul.bf16.gmra.mxu0 %v709
        %v1433 = vpop.f32.mrf.mxu0
        %v1434 = vadd.f32 %v1385, %v1433
        %v1435 = vpop.f32.mrf.mxu0
        %v1436 = vadd.f32 %v1387, %v1435
        %1437 = vmatmul.bf16.gmra.mxu0 %v708
        %v1438 = vpop.f32.mrf.mxu0
        %v1439 = vadd.f32 %v1390, %v1438
        %v1440 = vpop.f32.mrf.mxu0
        %v1441 = vadd.f32 %v1392, %v1440
        %1442 = vdwg.mxu0
        %1443 = vmatpush.bf16.msra.mxu0 %v1053
        %1444 = vmatpush.bf16.msra.mxu0 %v1051
        %1445 = vmatpush.bf16.msra.mxu0 %v1049
        %1446 = vmatpush.bf16.msra.mxu0 %v1047
        %1447 = vmatpush.bf16.msra.mxu0 %v1045
        %1448 = vmatpush.bf16.msra.mxu0 %v1043
        %1449 = vmatpush.bf16.msra.mxu0 %v1041
        %1450 = vmatpush.bf16.msra.mxu0 %v1039
        %1451 = vmatmul.bf16.gmra.mxu0 %v542
        %v1452 = vpop.f32.mrf.mxu0
        %v1453 = vadd.f32 0.0, %v1452
        %v1454 = vpop.f32.mrf.mxu0
        %v1455 = vadd.f32 0.0, %v1454
        %1456 = vmatmul.bf16.gmra.mxu0 %v543
        %v1457 = vpop.f32.mrf.mxu0
        %v1458 = vadd.f32 0.0, %v1457
        %v1459 = vpop.f32.mrf.mxu0
        %v1460 = vadd.f32 0.0, %v1459
        %1461 = vmatmul.bf16.gmra.mxu0 %v544
        %v1462 = vpop.f32.mrf.mxu0
        %v1463 = vadd.f32 0.0, %v1462
        %v1464 = vpop.f32.mrf.mxu0
        %v1465 = vadd.f32 0.0, %v1464
        %1466 = vmatmul.bf16.gmra.mxu0 %v545
        %v1467 = vpop.f32.mrf.mxu0
        %v1468 = vadd.f32 0.0, %v1467
        %v1469 = vpop.f32.mrf.mxu0
        %v1470 = vadd.f32 0.0, %v1469
        %1471 = vmatmul.bf16.gmra.mxu0 %v546
        %v1472 = vpop.f32.mrf.mxu0
        %v1473 = vadd.f32 0.0, %v1472
        %v1474 = vpop.f32.mrf.mxu0
        %v1475 = vadd.f32 0.0, %v1474
        %1476 = vmatmul.bf16.gmra.mxu0 %v547
        %v1477 = vpop.f32.mrf.mxu0
        %v1478 = vadd.f32 0.0, %v1477
        %v1479 = vpop.f32.mrf.mxu0
        %v1480 = vadd.f32 0.0, %v1479
        %1481 = vmatmul.bf16.gmra.mxu0 %v548
        %v1482 = vpop.f32.mrf.mxu0
        %v1483 = vadd.f32 0.0, %v1482
        %v1484 = vpop.f32.mrf.mxu0
        %v1485 = vadd.f32 0.0, %v1484
        %1486 = vmatmul.bf16.gmra.mxu0 %v549
        %v1487 = vpop.f32.mrf.mxu0
        %v1488 = vadd.f32 0.0, %v1487
        %v1489 = vpop.f32.mrf.mxu0
        %v1490 = vadd.f32 0.0, %v1489
        %1491 = vdwg.mxu0
        %1492 = vmatpush.bf16.msra.mxu0 %v1069
        %1493 = vmatpush.bf16.msra.mxu0 %v1067
        %1494 = vmatpush.bf16.msra.mxu0 %v1065
        %1495 = vmatpush.bf16.msra.mxu0 %v1063
        %1496 = vmatpush.bf16.msra.mxu0 %v1061
        %1497 = vmatpush.bf16.msra.mxu0 %v1059
        %1498 = vmatpush.bf16.msra.mxu0 %v1057
        %1499 = vmatpush.bf16.msra.mxu0 %v1055
        %1500 = vmatmul.bf16.gmra.mxu0 %v570
        %v1501 = vpop.f32.mrf.mxu0
        %v1502 = vadd.f32 %v1453, %v1501
        %v1503 = vpop.f32.mrf.mxu0
        %v1504 = vadd.f32 %v1455, %v1503
        %1505 = vmatmul.bf16.gmra.mxu0 %v578
        %v1506 = vpop.f32.mrf.mxu0
        %v1507 = vadd.f32 %v1458, %v1506
        %v1508 = vpop.f32.mrf.mxu0
        %v1509 = vadd.f32 %v1460, %v1508
        %1510 = vmatmul.bf16.gmra.mxu0 %v586
        %v1511 = vpop.f32.mrf.mxu0
        %v1512 = vadd.f32 %v1463, %v1511
        %v1513 = vpop.f32.mrf.mxu0
        %v1514 = vadd.f32 %v1465, %v1513
        %1515 = vmatmul.bf16.gmra.mxu0 %v594
        %v1516 = vpop.f32.mrf.mxu0
        %v1517 = vadd.f32 %v1468, %v1516
        %v1518 = vpop.f32.mrf.mxu0
        %v1519 = vadd.f32 %v1470, %v1518
        %1520 = vmatmul.bf16.gmra.mxu0 %v602
        %v1521 = vpop.f32.mrf.mxu0
        %v1522 = vadd.f32 %v1473, %v1521
        %v1523 = vpop.f32.mrf.mxu0
        %v1524 = vadd.f32 %v1475, %v1523
        %1525 = vmatmul.bf16.gmra.mxu0 %v610
        %v1526 = vpop.f32.mrf.mxu0
        %v1527 = vadd.f32 %v1478, %v1526
        %v1528 = vpop.f32.mrf.mxu0
        %v1529 = vadd.f32 %v1480, %v1528
        %1530 = vmatmul.bf16.gmra.mxu0 %v618
        %v1531 = vpop.f32.mrf.mxu0
        %v1532 = vadd.f32 %v1483, %v1531
        %v1533 = vpop.f32.mrf.mxu0
        %v1534 = vadd.f32 %v1485, %v1533
        %1535 = vmatmul.bf16.gmra.mxu0 %v621
        %v1536 = vpop.f32.mrf.mxu0
        %v1537 = vadd.f32 %v1488, %v1536
        %v1538 = vpop.f32.mrf.mxu0
        %v1539 = vadd.f32 %v1490, %v1538
        %1540 = vdwg.mxu0
        %1541 = vmatpush.bf16.msra.mxu0 %v1085
        %1542 = vmatpush.bf16.msra.mxu0 %v1083
        %1543 = vmatpush.bf16.msra.mxu0 %v1081
        %1544 = vmatpush.bf16.msra.mxu0 %v1079
        %1545 = vmatpush.bf16.msra.mxu0 %v1077
        %1546 = vmatpush.bf16.msra.mxu0 %v1075
        %1547 = vmatpush.bf16.msra.mxu0 %v1073
        %1548 = vmatpush.bf16.msra.mxu0 %v1071
        %1549 = vmatmul.bf16.gmra.mxu0 %v633
        %v1550 = vpop.f32.mrf.mxu0
        %v1551 = vadd.f32 %v1502, %v1550
        %v1552 = vpop.f32.mrf.mxu0
        %v1553 = vadd.f32 %v1504, %v1552
        %1554 = vmatmul.bf16.gmra.mxu0 %v635
        %v1555 = vpop.f32.mrf.mxu0
        %v1556 = vadd.f32 %v1507, %v1555
        %v1557 = vpop.f32.mrf.mxu0
        %v1558 = vadd.f32 %v1509, %v1557
        %1559 = vmatmul.bf16.gmra.mxu0 %v637
        %v1560 = vpop.f32.mrf.mxu0
        %v1561 = vadd.f32 %v1512, %v1560
        %v1562 = vpop.f32.mrf.mxu0
        %v1563 = vadd.f32 %v1514, %v1562
        %1564 = vmatmul.bf16.gmra.mxu0 %v639
        %v1565 = vpop.f32.mrf.mxu0
        %v1566 = vadd.f32 %v1517, %v1565
        %v1567 = vpop.f32.mrf.mxu0
        %v1568 = vadd.f32 %v1519, %v1567
        %1569 = vmatmul.bf16.gmra.mxu0 %v641
        %v1570 = vpop.f32.mrf.mxu0
        %v1571 = vadd.f32 %v1522, %v1570
        %v1572 = vpop.f32.mrf.mxu0
        %v1573 = vadd.f32 %v1524, %v1572
        %1574 = vmatmul.bf16.gmra.mxu0 %v643
        %v1575 = vpop.f32.mrf.mxu0
        %v1576 = vadd.f32 %v1527, %v1575
        %v1577 = vpop.f32.mrf.mxu0
        %v1578 = vadd.f32 %v1529, %v1577
        %1579 = vmatmul.bf16.gmra.mxu0 %v645
        %v1580 = vpop.f32.mrf.mxu0
        %v1581 = vadd.f32 %v1532, %v1580
        %v1582 = vpop.f32.mrf.mxu0
        %v1583 = vadd.f32 %v1534, %v1582
        %1584 = vmatmul.bf16.gmra.mxu0 %v644
        %v1585 = vpop.f32.mrf.mxu0
        %v1586 = vadd.f32 %v1537, %v1585
        %v1587 = vpop.f32.mrf.mxu0
        %v1588 = vadd.f32 %v1539, %v1587
        %1589 = vdwg.mxu0
        %1590 = vmatpush.bf16.msra.mxu0 %v1101
        %1591 = vmatpush.bf16.msra.mxu0 %v1099
        %1592 = vmatpush.bf16.msra.mxu0 %v1097
        %1593 = vmatpush.bf16.msra.mxu0 %v1095
        %1594 = vmatpush.bf16.msra.mxu0 %v1093
        %1595 = vmatpush.bf16.msra.mxu0 %v1091
        %1596 = vmatpush.bf16.msra.mxu0 %v1089
        %1597 = vmatpush.bf16.msra.mxu0 %v1087
        %1598 = vmatmul.bf16.gmra.mxu0 %v661
        %v1599 = vpop.f32.mrf.mxu0
        %v1600 = vadd.f32 %v1551, %v1599
        %v1601 = vpop.f32.mrf.mxu0
        %v1602 = vadd.f32 %v1553, %v1601
        %1603 = vmatmul.bf16.gmra.mxu0 %v665
        %v1604 = vpop.f32.mrf.mxu0
        %v1605 = vadd.f32 %v1556, %v1604
        %v1606 = vpop.f32.mrf.mxu0
        %v1607 = vadd.f32 %v1558, %v1606
        %1608 = vmatmul.bf16.gmra.mxu0 %v669
        %v1609 = vpop.f32.mrf.mxu0
        %v1610 = vadd.f32 %v1561, %v1609
        %v1611 = vpop.f32.mrf.mxu0
        %v1612 = vadd.f32 %v1563, %v1611
        %1613 = vmatmul.bf16.gmra.mxu0 %v673
        %v1614 = vpop.f32.mrf.mxu0
        %v1615 = vadd.f32 %v1566, %v1614
        %v1616 = vpop.f32.mrf.mxu0
        %v1617 = vadd.f32 %v1568, %v1616
        %1618 = vmatmul.bf16.gmra.mxu0 %v677
        %v1619 = vpop.f32.mrf.mxu0
        %v1620 = vadd.f32 %v1571, %v1619
        %v1621 = vpop.f32.mrf.mxu0
        %v1622 = vadd.f32 %v1573, %v1621
        %1623 = vmatmul.bf16.gmra.mxu0 %v681
        %v1624 = vpop.f32.mrf.mxu0
        %v1625 = vadd.f32 %v1576, %v1624
        %v1626 = vpop.f32.mrf.mxu0
        %v1627 = vadd.f32 %v1578, %v1626
        %1628 = vmatmul.bf16.gmra.mxu0 %v685
        %v1629 = vpop.f32.mrf.mxu0
        %v1630 = vadd.f32 %v1581, %v1629
        %v1631 = vpop.f32.mrf.mxu0
        %v1632 = vadd.f32 %v1583, %v1631
        %1633 = vmatmul.bf16.gmra.mxu0 %v684
        %v1634 = vpop.f32.mrf.mxu0
        %v1635 = vadd.f32 %v1586, %v1634
        %v1636 = vpop.f32.mrf.mxu0
        %v1637 = vadd.f32 %v1588, %v1636
        %1638 = vdwg.mxu0
        %1639 = vmatpush.bf16.msra.mxu0 %v1117
        %1640 = vmatpush.bf16.msra.mxu0 %v1115
        %1641 = vmatpush.bf16.msra.mxu0 %v1113
        %1642 = vmatpush.bf16.msra.mxu0 %v1111
        %1643 = vmatpush.bf16.msra.mxu0 %v1109
        %1644 = vmatpush.bf16.msra.mxu0 %v1107
        %1645 = vmatpush.bf16.msra.mxu0 %v1105
        %1646 = vmatpush.bf16.msra.mxu0 %v1103
        %1647 = vmatmul.bf16.gmra.mxu0 %v697
        %v1648 = vpop.f32.mrf.mxu0
        %v1649 = vadd.f32 %v1600, %v1648
        %v1650 = vpop.f32.mrf.mxu0
        %v1651 = vadd.f32 %v1602, %v1650
        %1652 = vmatmul.bf16.gmra.mxu0 %v699
        %v1653 = vpop.f32.mrf.mxu0
        %v1654 = vadd.f32 %v1605, %v1653
        %v1655 = vpop.f32.mrf.mxu0
        %v1656 = vadd.f32 %v1607, %v1655
        %1657 = vmatmul.bf16.gmra.mxu0 %v701
        %v1658 = vpop.f32.mrf.mxu0
        %v1659 = vadd.f32 %v1610, %v1658
        %v1660 = vpop.f32.mrf.mxu0
        %v1661 = vadd.f32 %v1612, %v1660
        %1662 = vmatmul.bf16.gmra.mxu0 %v703
        %v1663 = vpop.f32.mrf.mxu0
        %v1664 = vadd.f32 %v1615, %v1663
        %v1665 = vpop.f32.mrf.mxu0
        %v1666 = vadd.f32 %v1617, %v1665
        %1667 = vmatmul.bf16.gmra.mxu0 %v705
        %v1668 = vpop.f32.mrf.mxu0
        %v1669 = vadd.f32 %v1620, %v1668
        %v1670 = vpop.f32.mrf.mxu0
        %v1671 = vadd.f32 %v1622, %v1670
        %1672 = vmatmul.bf16.gmra.mxu0 %v707
        %v1673 = vpop.f32.mrf.mxu0
        %v1674 = vadd.f32 %v1625, %v1673
        %v1675 = vpop.f32.mrf.mxu0
        %v1676 = vadd.f32 %v1627, %v1675
        %1677 = vmatmul.bf16.gmra.mxu0 %v709
        %v1678 = vpop.f32.mrf.mxu0
        %v1679 = vadd.f32 %v1630, %v1678
        %v1680 = vpop.f32.mrf.mxu0
        %v1681 = vadd.f32 %v1632, %v1680
        %1682 = vmatmul.bf16.gmra.mxu0 %v708
        %v1683 = vpop.f32.mrf.mxu0
        %v1684 = vadd.f32 %v1635, %v1683
        %v1685 = vpop.f32.mrf.mxu0
        %v1686 = vadd.f32 %v1637, %v1685
        %1687 = vdwg.mxu0
        %v1688 = vmax.f32 %v1404, %v1649
        %v1689 = vmax.f32 %v1406, %v1651
        %v1690 = vmax.f32 %v1409, %v1654
        %v1691 = vmax.f32 %v1411, %v1656
        %v1692 = vmax.f32 %v1414, %v1659
        %v1693 = vmax.f32 %v1416, %v1661
        %v1694 = vmax.f32 %v1419, %v1664
        %v1695 = vmax.f32 %v1421, %v1666
        %v1696 = vmax.f32 %v1424, %v1669
        %v1697 = vmax.f32 %v1426, %v1671
        %v1698 = vmax.f32 %v1429, %v1674
        %v1699 = vmax.f32 %v1431, %v1676
        %v1700 = vmax.f32 %v1434, %v1679
        %v1701 = vmax.f32 %v1436, %v1681
        %v1702 = vmax.f32 %v1439, %v1684
        %v1703 = vmax.f32 %v1441, %v1686
        %v1704 = vld [vmem:[%s2] sm:$0x1]
        %v1706 = vperm.slane %v1704, 0
        %v1708 = vadd.f32 %v1688, %v1706
        %v1709 = vadd.f32 %v1689, %v1706
        %v1710 = vadd.f32 %v1690, %v1706
        %v1711 = vadd.f32 %v1691, %v1706
        %v1712 = vadd.f32 %v1692, %v1706
        %v1713 = vadd.f32 %v1693, %v1706
        %v1714 = vadd.f32 %v1694, %v1706
        %v1715 = vadd.f32 %v1695, %v1706
        %v1716 = vadd.f32 %v1696, %v1706
        %v1717 = vadd.f32 %v1697, %v1706
        %v1718 = vadd.f32 %v1698, %v1706
        %v1719 = vadd.f32 %v1699, %v1706
        %v1720 = vadd.f32 %v1700, %v1706
        %v1721 = vadd.f32 %v1701, %v1706
        %v1722 = vadd.f32 %v1702, %v1706
        %v1723 = vadd.f32 %v1703, %v1706
        %v1724 = vmax.f32 %v1708, 0.0
        %v1725 = vmax.f32 %v1709, 0.0
        %v1726 = vmax.f32 %v1710, 0.0
        %v1727 = vmax.f32 %v1711, 0.0
        %v1728 = vmax.f32 %v1712, 0.0
        %v1729 = vmax.f32 %v1713, 0.0
        %v1730 = vmax.f32 %v1714, 0.0
        %v1731 = vmax.f32 %v1715, 0.0
        %v1732 = vmax.f32 %v1716, 0.0
        %v1733 = vmax.f32 %v1717, 0.0
        %v1734 = vmax.f32 %v1718, 0.0
        %v1735 = vmax.f32 %v1719, 0.0
        %v1736 = vmax.f32 %v1720, 0.0
        %v1737 = vmax.f32 %v1721, 0.0
        %v1738 = vmax.f32 %v1722, 0.0
        %v1739 = vmax.f32 %v1723, 0.0
        %v1740 = vpack.c.bf16 %v1725, %v1724
        %v1741 = vpack.c.bf16 %v1727, %v1726
        %v1742 = vpack.c.bf16 %v1729, %v1728
        %v1743 = vpack.c.bf16 %v1731, %v1730
        %v1744 = vpack.c.bf16 %v1733, %v1732
        %v1745 = vpack.c.bf16 %v1735, %v1734
        %v1746 = vpack.c.bf16 %v1737, %v1736
        %v1747 = vpack.c.bf16 %v1739, %v1738
        %v1748 = vld [vmem:[%s3] sm:$0xf]
        %v1749 = vld [vmem:[%s3 + $0x4] sm:$0xf]
        %v1750 = vld [vmem:[%s3 + $0x8] sm:$0xf]
        %v1751 = vld [vmem:[%s3 + $0xc] sm:$0xf]
        %v1752 = vld [vmem:[%s3 + $0x10] sm:$0xf]
        %v1753 = vld [vmem:[%s3 + $0x14] sm:$0xf]
        %v1754 = vld [vmem:[%s3 + $0x18] sm:$0xf]
        %v1762 = vunpack.c.l.b16 %v1748
        %v1763 = vunpack.c.l.b16 %v1749
        %v1764 = vunpack.c.l.b16 %v1750
        %v1765 = vunpack.c.l.b16 %v1751
        %v1766 = vunpack.c.l.b16 %v1752
        %v1767 = vunpack.c.l.b16 %v1753
        %v1768 = vunpack.c.l.b16 %v1754
        %v1769 = vpack.c.b16 %v1763, %v1762
        %v1770 = vpack.c.b16 %v1765, %v1764
        %v1771 = vpack.c.b16 %v1767, %v1766
        %v1772 = vpack.c.b16 %v1768, %v1768
        %vm1773 = vcmask 1014784
        %v1775 = vsel %vm1773, %v1769, 0
        %v1778 = vsel %vm1773, %v1770, 0
        %v1781 = vsel %vm1773, %v1771, 0
        %v1784 = vsel %vm1773, %v1772, 0
        %vm1786 = vcmask 1045504
        %v1788 = vsel %vm1786, %v1747, 0
        %1790 = vmatpush.bf16.msra.mxu0 %v1788
        %1791 = vmatpush.bf16.msra.mxu0 %v1746
        %1792 = vmatpush.bf16.msra.mxu0 %v1745
        %1793 = vmatpush.bf16.msra.mxu0 %v1744
        %1794 = vmatpush.bf16.msra.mxu0 %v1743
        %1795 = vmatpush.bf16.msra.mxu0 %v1742
        %1796 = vmatpush.bf16.msra.mxu0 %v1741
        %1797 = vmatpush.bf16.msra.mxu0 %v1740
        %1798 = vmatmul.bf16.gmra.mxu0 %v1775
        %v1799 = vpop.f32.mrf.mxu0
        %v1800 = vadd.f32 0.0, %v1799
        %v1801 = vpop.f32.mrf.mxu0
        %v1802 = vadd.f32 0.0, %v1801
        %1803 = vmatmul.bf16.gmra.mxu0 %v1778
        %v1804 = vpop.f32.mrf.mxu0
        %v1805 = vadd.f32 0.0, %v1804
        %v1806 = vpop.f32.mrf.mxu0
        %v1807 = vadd.f32 0.0, %v1806
        %1808 = vmatmul.bf16.gmra.mxu0 %v1781
        %v1809 = vpop.f32.mrf.mxu0
        %v1810 = vadd.f32 0.0, %v1809
        %v1811 = vpop.f32.mrf.mxu0
        %v1812 = vadd.f32 0.0, %v1811
        %1813 = vmatmul.bf16.gmra.mxu0 %v1784
        %v1814 = vpop.f32.mrf.mxu0
        %v1815 = vadd.f32 0.0, %v1814
        %v1816 = vpop.f32.mrf.mxu0
        %1817 = vdwg.mxu0
        %v1818 = vld [vmem:[%s4] sm:$0xf]
        %v1819 = vld [vmem:[%s4 + $0x4] sm:$0xf]
        %v1820 = vld [vmem:[%s4 + $0x8] sm:$0xf]
        %v1821 = vld [vmem:[%s4 + $0xc] sm:$0xf]
        %v1822 = vld [vmem:[%s4 + $0x10] sm:$0xf]
        %v1823 = vld [vmem:[%s4 + $0x14] sm:$0xf]
        %v1824 = vld [vmem:[%s4 + $0x18] sm:$0xf]
        %v1832 = vunpack.c.l.b16 %v1818
        %v1833 = vunpack.c.l.b16 %v1819
        %v1834 = vunpack.c.l.b16 %v1820
        %v1835 = vunpack.c.l.b16 %v1821
        %v1836 = vunpack.c.l.b16 %v1822
        %v1837 = vunpack.c.l.b16 %v1823
        %v1838 = vunpack.c.l.b16 %v1824
        %v1839 = vpack.c.b16 %v1833, %v1832
        %v1840 = vpack.c.b16 %v1835, %v1834
        %v1841 = vpack.c.b16 %v1837, %v1836
        %v1842 = vpack.c.b16 %v1838, %v1838
        %v1844 = vsel %vm1773, %v1839, 0
        %v1847 = vsel %vm1773, %v1840, 0
        %v1850 = vsel %vm1773, %v1841, 0
        %v1853 = vsel %vm1773, %v1842, 0
        %1855 = vmatpush.bf16.msra.mxu0 %v1788
        %1856 = vmatpush.bf16.msra.mxu0 %v1746
        %1857 = vmatpush.bf16.msra.mxu0 %v1745
        %1858 = vmatpush.bf16.msra.mxu0 %v1744
        %1859 = vmatpush.bf16.msra.mxu0 %v1743
        %1860 = vmatpush.bf16.msra.mxu0 %v1742
        %1861 = vmatpush.bf16.msra.mxu0 %v1741
        %1862 = vmatpush.bf16.msra.mxu0 %v1740
        %1863 = vmatmul.bf16.gmra.mxu0 %v1844
        %v1864 = vpop.f32.mrf.mxu0
        %v1865 = vadd.f32 0.0, %v1864
        %v1866 = vpop.f32.mrf.mxu0
        %v1867 = vadd.f32 0.0, %v1866
        %1868 = vmatmul.bf16.gmra.mxu0 %v1847
        %v1869 = vpop.f32.mrf.mxu0
        %v1870 = vadd.f32 0.0, %v1869
        %v1871 = vpop.f32.mrf.mxu0
        %v1872 = vadd.f32 0.0, %v1871
        %1873 = vmatmul.bf16.gmra.mxu0 %v1850
        %v1874 = vpop.f32.mrf.mxu0
        %v1875 = vadd.f32 0.0, %v1874
        %v1876 = vpop.f32.mrf.mxu0
        %v1877 = vadd.f32 0.0, %v1876
        %1878 = vmatmul.bf16.gmra.mxu0 %v1853
        %v1879 = vpop.f32.mrf.mxu0
        %v1880 = vadd.f32 0.0, %v1879
        %v1881 = vpop.f32.mrf.mxu0
        %1882 = vdwg.mxu0
        %v1883 = vmax.f32 %v1800, %v1865
        %v1884 = vmax.f32 %v1802, %v1867
        %v1885 = vmax.f32 %v1805, %v1870
        %v1886 = vmax.f32 %v1807, %v1872
        %v1887 = vmax.f32 %v1810, %v1875
        %v1888 = vmax.f32 %v1812, %v1877
        %v1889 = vmax.f32 %v1815, %v1880
        %v1890 = vpack.c.bf16 %v1883, %v1883
        %v1891 = vpack.c.bf16 %v1884, %v1884
        %v1892 = vpack.c.bf16 %v1885, %v1885
        %v1893 = vpack.c.bf16 %v1886, %v1886
        %v1894 = vpack.c.bf16 %v1887, %v1887
        %v1895 = vpack.c.bf16 %v1888, %v1888
        %v1896 = vpack.c.bf16 %v1889, %v1889
        %v1904 = vunpack.c.l.b16 %v1890
        %v1905 = vunpack.c.l.b16 %v1891
        %v1906 = vunpack.c.l.b16 %v1892
        %v1907 = vunpack.c.l.b16 %v1893
        %v1908 = vunpack.c.l.b16 %v1894
        %v1909 = vunpack.c.l.b16 %v1895
        %v1910 = vunpack.c.l.b16 %v1896
        %v1911 = vpack.c.b16 %v1905, %v1904
        %v1912 = vpack.c.b16 %v1907, %v1906
        %v1913 = vpack.c.b16 %v1909, %v1908
        %v1914 = vpack.c.b16 %v1910, %v1910
        %v1920 = vshrl.u32 %v1911, 16
        %v1922 = vshll.u32 %v1911, 16
        %v1924 = vrot.slane %v1922, 1
        %v1925 = vor.u32 %v1920, %v1924
        %v1927 = vshll.u32 %v1912, 16
        %v1929 = vrot.slane %v1927, 1
        %v1930 = vsel %vm558, %v1925, %v1929
        %v1931 = vshrl.u32 %v1912, 16
        %v1933 = vor.u32 %v1931, %v1929
        %v1935 = vshll.u32 %v1913, 16
        %v1937 = vrot.slane %v1935, 1
        %v1938 = vsel %vm558, %v1933, %v1937
        %v1939 = vshrl.u32 %v1913, 16
        %v1941 = vor.u32 %v1939, %v1937
        %v1943 = vshll.u32 %v1914, 16
        %v1945 = vrot.slane %v1943, 1
        %v1946 = vsel %vm558, %v1941, %v1945
        %v1947 = vshrl.u32 %v1914, 16
        %v1949 = vor.u32 %v1947, %v1945
        %v1954 = vrot.slane %v1911, 1
        %v1955 = vrot.slane %v1912, 1
        %v1956 = vsel %vm630, %v1954, %v1955
        %v1957 = vrot.slane %v1913, 1
        %v1958 = vsel %vm630, %v1955, %v1957
        %v1959 = vrot.slane %v1914, 1
        %v1960 = vsel %vm630, %v1957, %v1959
        %v1965 = vrot.slane %v1920, 1
        %v1966 = vrot.slane %v1922, 2
        %v1967 = vor.u32 %v1965, %v1966
        %v1968 = vrot.slane %v1931, 1
        %v1969 = vrot.slane %v1927, 2
        %v1970 = vor.u32 %v1968, %v1969
        %v1971 = vsel %vm654, %v1967, %v1970
        %v1972 = vrot.slane %v1939, 1
        %v1973 = vrot.slane %v1935, 2
        %v1974 = vor.u32 %v1972, %v1973
        %v1975 = vsel %vm654, %v1970, %v1974
        %v1976 = vrot.slane %v1947, 1
        %v1977 = vrot.slane %v1943, 2
        %v1978 = vor.u32 %v1976, %v1977
        %v1979 = vsel %vm654, %v1974, %v1978
        %v1984 = vrot.slane %v1911, 2
        %v1985 = vrot.slane %v1912, 2
        %v1986 = vsel %vm694, %v1984, %v1985
        %v1987 = vrot.slane %v1913, 2
        %v1988 = vsel %vm694, %v1985, %v1987
        %v1989 = vrot.slane %v1914, 2
        %v1990 = vsel %vm694, %v1987, %v1989
        %v1995 = vld [vmem:[%s5] sm:$0xff]
        %v1996 = vld [vmem:[%s5 + $0x8] sm:$0xff]
        %v1997 = vld [vmem:[%s5 + $0x10] sm:$0xff]
        %v1998 = vld [vmem:[%s5 + $0x18] sm:$0xff]
        %v1999 = vld [vmem:[%s5 + $0x20] sm:$0xff]
        %v2000 = vld [vmem:[%s5 + $0x28] sm:$0xff]
        %v2001 = vld [vmem:[%s5 + $0x30] sm:$0xff]
        %v2002 = vld [vmem:[%s5 + $0x38] sm:$0xff]
        %v2003 = vld [vmem:[%s5 + $0x40] sm:$0xff]
        %v2004 = vld [vmem:[%s5 + $0x48] sm:$0xff]
        %v2005 = vld [vmem:[%s5 + $0x50] sm:$0xff]
        %v2006 = vld [vmem:[%s5 + $0x58] sm:$0xff]
        %v2007 = vld [vmem:[%s5 + $0x60] sm:$0xff]
        %v2008 = vld [vmem:[%s5 + $0x68] sm:$0xff]
        %v2009 = vld [vmem:[%s5 + $0x70] sm:$0xff]
        %v2010 = vld [vmem:[%s5 + $0x78] sm:$0xff]
        %v2011 = vld [vmem:[%s5 + $0x80] sm:$0xff]
        %v2012 = vld [vmem:[%s5 + $0x88] sm:$0xff]
        %v2013 = vld [vmem:[%s5 + $0x90] sm:$0xff]
        %v2014 = vld [vmem:[%s5 + $0x98] sm:$0xff]
        %v2015 = vld [vmem:[%s5 + $0xa0] sm:$0xff]
        %v2016 = vld [vmem:[%s5 + $0xa8] sm:$0xff]
        %v2017 = vld [vmem:[%s5 + $0xb0] sm:$0xff]
        %v2018 = vld [vmem:[%s5 + $0xb8] sm:$0xff]
        %v2019 = vld [vmem:[%s5 + $0xc0] sm:$0xff]
        %v2020 = vld [vmem:[%s5 + $0xc8] sm:$0xff]
        %v2021 = vld [vmem:[%s5 + $0xd0] sm:$0xff]
        %v2022 = vld [vmem:[%s5 + $0xd8] sm:$0xff]
        %v2023 = vld [vmem:[%s5 + $0xe0] sm:$0xff]
        %v2024 = vld [vmem:[%s5 + $0xe8] sm:$0xff]
        %v2025 = vld [vmem:[%s5 + $0xf0] sm:$0xff]
        %v2026 = vld [vmem:[%s5 + $0xf8] sm:$0xff]
        %v2027 = vld [vmem:[%s5 + $0x100] sm:$0xff]
        %v2028 = vld [vmem:[%s5 + $0x108] sm:$0xff]
        %v2029 = vld [vmem:[%s5 + $0x110] sm:$0xff]
        %v2030 = vld [vmem:[%s5 + $0x118] sm:$0xff]
        %v2031 = vld [vmem:[%s5 + $0x120] sm:$0xff]
        %v2032 = vld [vmem:[%s5 + $0x128] sm:$0xff]
        %v2033 = vld [vmem:[%s5 + $0x130] sm:$0xff]
        %v2034 = vld [vmem:[%s5 + $0x138] sm:$0xff]
        %v2035 = vld [vmem:[%s5 + $0x140] sm:$0xff]
        %v2036 = vld [vmem:[%s5 + $0x148] sm:$0xff]
        %v2037 = vld [vmem:[%s5 + $0x150] sm:$0xff]
        %v2038 = vld [vmem:[%s5 + $0x158] sm:$0xff]
        %v2039 = vld [vmem:[%s5 + $0x160] sm:$0xff]
        %v2040 = vld [vmem:[%s5 + $0x168] sm:$0xff]
        %v2041 = vld [vmem:[%s5 + $0x170] sm:$0xff]
        %v2042 = vld [vmem:[%s5 + $0x178] sm:$0xff]
        %v2043 = vld [vmem:[%s5 + $0x180] sm:$0xff]
        %v2044 = vld [vmem:[%s5 + $0x188] sm:$0xff]
        %v2045 = vld [vmem:[%s5 + $0x190] sm:$0xff]
        %v2046 = vld [vmem:[%s5 + $0x198] sm:$0xff]
        %v2047 = vld [vmem:[%s5 + $0x1a0] sm:$0xff]
        %v2048 = vld [vmem:[%s5 + $0x1a8] sm:$0xff]
        %v2049 = vld [vmem:[%s5 + $0x1b0] sm:$0xff]
        %v2050 = vld [vmem:[%s5 + $0x1b8] sm:$0xff]
        %v2051 = vld [vmem:[%s5 + $0x1c0] sm:$0xff]
        %v2052 = vld [vmem:[%s5 + $0x1c8] sm:$0xff]
        %v2053 = vld [vmem:[%s5 + $0x1d0] sm:$0xff]
        %v2054 = vld [vmem:[%s5 + $0x1d8] sm:$0xff]
        %v2055 = vld [vmem:[%s5 + $0x1e0] sm:$0xff]
        %v2056 = vld [vmem:[%s5 + $0x1e8] sm:$0xff]
        %v2057 = vld [vmem:[%s5 + $0x1f0] sm:$0xff]
        %v2058 = vld [vmem:[%s5 + $0x1f8] sm:$0xff]
        %v2059 = vld [vmem:[%s5 + $0x200] sm:$0xff]
        %v2060 = vld [vmem:[%s5 + $0x208] sm:$0xff]
        %v2061 = vld [vmem:[%s5 + $0x210] sm:$0xff]
        %v2062 = vld [vmem:[%s5 + $0x218] sm:$0xff]
        %v2063 = vld [vmem:[%s5 + $0x220] sm:$0xff]
        %v2064 = vld [vmem:[%s5 + $0x228] sm:$0xff]
        %v2065 = vld [vmem:[%s5 + $0x230] sm:$0xff]
        %v2066 = vld [vmem:[%s5 + $0x238] sm:$0xff]
        %v2067 = vld [vmem:[%s5 + $0x240] sm:$0xff]
        %v2068 = vld [vmem:[%s5 + $0x248] sm:$0xff]
        %v2069 = vld [vmem:[%s5 + $0x250] sm:$0xff]
        %v2070 = vld [vmem:[%s5 + $0x258] sm:$0xff]
        %v2071 = vld [vmem:[%s5 + $0x260] sm:$0xff]
        %v2072 = vld [vmem:[%s5 + $0x268] sm:$0xff]
        %v2073 = vld [vmem:[%s5 + $0x270] sm:$0xff]
        %v2074 = vld [vmem:[%s5 + $0x278] sm:$0xff]
        %v2155 = vunpack.c.l.b16 %v1995
        %v2156 = vunpack.c.h.b16 %v1995
        %v2157 = vunpack.c.l.b16 %v1996
        %v2158 = vunpack.c.h.b16 %v1996
        %v2159 = vunpack.c.l.b16 %v1997
        %v2160 = vunpack.c.h.b16 %v1997
        %v2161 = vunpack.c.l.b16 %v1998
        %v2162 = vunpack.c.h.b16 %v1998
        %v2163 = vunpack.c.l.b16 %v1999
        %v2164 = vunpack.c.h.b16 %v1999
        %v2165 = vunpack.c.l.b16 %v2000
        %v2166 = vunpack.c.h.b16 %v2000
        %v2167 = vunpack.c.l.b16 %v2001
        %v2168 = vunpack.c.h.b16 %v2001
        %v2169 = vunpack.c.l.b16 %v2002
        %v2170 = vunpack.c.h.b16 %v2002
        %v2171 = vunpack.c.l.b16 %v2003
        %v2172 = vunpack.c.h.b16 %v2003
        %v2173 = vunpack.c.l.b16 %v2004
        %v2174 = vunpack.c.h.b16 %v2004
        %v2175 = vunpack.c.l.b16 %v2005
        %v2176 = vunpack.c.h.b16 %v2005
        %v2177 = vunpack.c.l.b16 %v2006
        %v2178 = vunpack.c.h.b16 %v2006
        %v2179 = vunpack.c.l.b16 %v2007
        %v2180 = vunpack.c.h.b16 %v2007
        %v2181 = vunpack.c.l.b16 %v2008
        %v2182 = vunpack.c.h.b16 %v2008
        %v2183 = vunpack.c.l.b16 %v2009
        %v2184 = vunpack.c.h.b16 %v2009
        %v2185 = vunpack.c.l.b16 %v2010
        %v2186 = vunpack.c.h.b16 %v2010
        %v2187 = vunpack.c.l.b16 %v2011
        %v2188 = vunpack.c.h.b16 %v2011
        %v2189 = vunpack.c.l.b16 %v2012
        %v2190 = vunpack.c.h.b16 %v2012
        %v2191 = vunpack.c.l.b16 %v2013
        %v2192 = vunpack.c.h.b16 %v2013
        %v2193 = vunpack.c.l.b16 %v2014
        %v2194 = vunpack.c.h.b16 %v2014
        %v2195 = vunpack.c.l.b16 %v2015
        %v2196 = vunpack.c.h.b16 %v2015
        %v2197 = vunpack.c.l.b16 %v2016
        %v2198 = vunpack.c.h.b16 %v2016
        %v2199 = vunpack.c.l.b16 %v2017
        %v2200 = vunpack.c.h.b16 %v2017
        %v2201 = vunpack.c.l.b16 %v2018
        %v2202 = vunpack.c.h.b16 %v2018
        %v2203 = vunpack.c.l.b16 %v2019
        %v2204 = vunpack.c.h.b16 %v2019
        %v2205 = vunpack.c.l.b16 %v2020
        %v2206 = vunpack.c.h.b16 %v2020
        %v2207 = vunpack.c.l.b16 %v2021
        %v2208 = vunpack.c.h.b16 %v2021
        %v2209 = vunpack.c.l.b16 %v2022
        %v2210 = vunpack.c.h.b16 %v2022
        %v2211 = vunpack.c.l.b16 %v2023
        %v2212 = vunpack.c.h.b16 %v2023
        %v2213 = vunpack.c.l.b16 %v2024
        %v2214 = vunpack.c.h.b16 %v2024
        %v2215 = vunpack.c.l.b16 %v2025
        %v2216 = vunpack.c.h.b16 %v2025
        %v2217 = vunpack.c.l.b16 %v2026
        %v2218 = vunpack.c.h.b16 %v2026
        %v2219 = vunpack.c.l.b16 %v2027
        %v2220 = vunpack.c.h.b16 %v2027
        %v2221 = vunpack.c.l.b16 %v2028
        %v2222 = vunpack.c.h.b16 %v2028
        %v2223 = vunpack.c.l.b16 %v2029
        %v2224 = vunpack.c.h.b16 %v2029
        %v2225 = vunpack.c.l.b16 %v2030
        %v2226 = vunpack.c.h.b16 %v2030
        %v2227 = vunpack.c.l.b16 %v2031
        %v2228 = vunpack.c.h.b16 %v2031
        %v2229 = vunpack.c.l.b16 %v2032
        %v2230 = vunpack.c.h.b16 %v2032
        %v2231 = vunpack.c.l.b16 %v2033
        %v2232 = vunpack.c.h.b16 %v2033
        %v2233 = vunpack.c.l.b16 %v2034
        %v2234 = vunpack.c.h.b16 %v2034
        %v2235 = vunpack.c.l.b16 %v2035
        %v2236 = vunpack.c.h.b16 %v2035
        %v2237 = vunpack.c.l.b16 %v2036
        %v2238 = vunpack.c.h.b16 %v2036
        %v2239 = vunpack.c.l.b16 %v2037
        %v2240 = vunpack.c.h.b16 %v2037
        %v2241 = vunpack.c.l.b16 %v2038
        %v2242 = vunpack.c.h.b16 %v2038
        %v2243 = vunpack.c.l.b16 %v2039
        %v2244 = vunpack.c.h.b16 %v2039
        %v2245 = vunpack.c.l.b16 %v2040
        %v2246 = vunpack.c.h.b16 %v2040
        %v2247 = vunpack.c.l.b16 %v2041
        %v2248 = vunpack.c.h.b16 %v2041
        %v2249 = vunpack.c.l.b16 %v2042
        %v2250 = vunpack.c.h.b16 %v2042
        %v2251 = vunpack.c.l.b16 %v2043
        %v2252 = vunpack.c.h.b16 %v2043
        %v2253 = vunpack.c.l.b16 %v2044
        %v2254 = vunpack.c.h.b16 %v2044
        %v2255 = vunpack.c.l.b16 %v2045
        %v2256 = vunpack.c.h.b16 %v2045
        %v2257 = vunpack.c.l.b16 %v2046
        %v2258 = vunpack.c.h.b16 %v2046
        %v2259 = vunpack.c.l.b16 %v2047
        %v2260 = vunpack.c.h.b16 %v2047
        %v2261 = vunpack.c.l.b16 %v2048
        %v2262 = vunpack.c.h.b16 %v2048
        %v2263 = vunpack.c.l.b16 %v2049
        %v2264 = vunpack.c.h.b16 %v2049
        %v2265 = vunpack.c.l.b16 %v2050
        %v2266 = vunpack.c.h.b16 %v2050
        %v2267 = vunpack.c.l.b16 %v2051
        %v2268 = vunpack.c.h.b16 %v2051
        %v2269 = vunpack.c.l.b16 %v2052
        %v2270 = vunpack.c.h.b16 %v2052
        %v2271 = vunpack.c.l.b16 %v2053
        %v2272 = vunpack.c.h.b16 %v2053
        %v2273 = vunpack.c.l.b16 %v2054
        %v2274 = vunpack.c.h.b16 %v2054
        %v2275 = vunpack.c.l.b16 %v2055
        %v2276 = vunpack.c.h.b16 %v2055
        %v2277 = vunpack.c.l.b16 %v2056
        %v2278 = vunpack.c.h.b16 %v2056
        %v2279 = vunpack.c.l.b16 %v2057
        %v2280 = vunpack.c.h.b16 %v2057
        %v2281 = vunpack.c.l.b16 %v2058
        %v2282 = vunpack.c.h.b16 %v2058
        %v2283 = vunpack.c.l.b16 %v2059
        %v2284 = vunpack.c.h.b16 %v2059
        %v2285 = vunpack.c.l.b16 %v2060
        %v2286 = vunpack.c.h.b16 %v2060
        %v2287 = vunpack.c.l.b16 %v2061
        %v2288 = vunpack.c.h.b16 %v2061
        %v2289 = vunpack.c.l.b16 %v2062
        %v2290 = vunpack.c.h.b16 %v2062
        %v2291 = vunpack.c.l.b16 %v2063
        %v2292 = vunpack.c.h.b16 %v2063
        %v2293 = vunpack.c.l.b16 %v2064
        %v2294 = vunpack.c.h.b16 %v2064
        %v2295 = vunpack.c.l.b16 %v2065
        %v2296 = vunpack.c.h.b16 %v2065
        %v2297 = vunpack.c.l.b16 %v2066
        %v2298 = vunpack.c.h.b16 %v2066
        %v2299 = vunpack.c.l.b16 %v2067
        %v2300 = vunpack.c.h.b16 %v2067
        %v2301 = vunpack.c.l.b16 %v2068
        %v2302 = vunpack.c.h.b16 %v2068
        %v2303 = vunpack.c.l.b16 %v2069
        %v2304 = vunpack.c.h.b16 %v2069
        %v2305 = vunpack.c.l.b16 %v2070
        %v2306 = vunpack.c.h.b16 %v2070
        %v2307 = vunpack.c.l.b16 %v2071
        %v2308 = vunpack.c.h.b16 %v2071
        %v2309 = vunpack.c.l.b16 %v2072
        %v2310 = vunpack.c.h.b16 %v2072
        %v2311 = vunpack.c.l.b16 %v2073
        %v2312 = vunpack.c.h.b16 %v2073
        %v2313 = vunpack.c.l.b16 %v2074
        %v2314 = vunpack.c.h.b16 %v2074
        %v2315 = vpack.c.b16 %v2157, %v2155
        %v2316 = vpack.c.b16 %v2158, %v2156
        %v2317 = vpack.c.b16 %v2161, %v2159
        %v2318 = vpack.c.b16 %v2162, %v2160
        %v2319 = vpack.c.b16 %v2165, %v2163
        %v2320 = vpack.c.b16 %v2166, %v2164
        %v2321 = vpack.c.b16 %v2169, %v2167
        %v2322 = vpack.c.b16 %v2170, %v2168
        %v2323 = vpack.c.b16 %v2173, %v2171
        %v2324 = vpack.c.b16 %v2174, %v2172
        %v2325 = vpack.c.b16 %v2177, %v2175
        %v2326 = vpack.c.b16 %v2178, %v2176
        %v2327 = vpack.c.b16 %v2181, %v2179
        %v2328 = vpack.c.b16 %v2182, %v2180
        %v2329 = vpack.c.b16 %v2185, %v2183
        %v2330 = vpack.c.b16 %v2186, %v2184
        %v2331 = vpack.c.b16 %v2189, %v2187
        %v2332 = vpack.c.b16 %v2190, %v2188
        %v2333 = vpack.c.b16 %v2193, %v2191
        %v2334 = vpack.c.b16 %v2194, %v2192
        %v2335 = vpack.c.b16 %v2197, %v2195
        %v2336 = vpack.c.b16 %v2198, %v2196
        %v2337 = vpack.c.b16 %v2201, %v2199
        %v2338 = vpack.c.b16 %v2202, %v2200
        %v2339 = vpack.c.b16 %v2205, %v2203
        %v2340 = vpack.c.b16 %v2206, %v2204
        %v2341 = vpack.c.b16 %v2209, %v2207
        %v2342 = vpack.c.b16 %v2210, %v2208
        %v2343 = vpack.c.b16 %v2213, %v2211
        %v2344 = vpack.c.b16 %v2214, %v2212
        %v2345 = vpack.c.b16 %v2217, %v2215
        %v2346 = vpack.c.b16 %v2218, %v2216
        %v2347 = vpack.c.b16 %v2221, %v2219
        %v2348 = vpack.c.b16 %v2222, %v2220
        %v2349 = vpack.c.b16 %v2225, %v2223
        %v2350 = vpack.c.b16 %v2226, %v2224
        %v2351 = vpack.c.b16 %v2229, %v2227
        %v2352 = vpack.c.b16 %v2230, %v2228
        %v2353 = vpack.c.b16 %v2233, %v2231
        %v2354 = vpack.c.b16 %v2234, %v2232
        %v2355 = vpack.c.b16 %v2237, %v2235
        %v2356 = vpack.c.b16 %v2238, %v2236
        %v2357 = vpack.c.b16 %v2241, %v2239
        %v2358 = vpack.c.b16 %v2242, %v2240
        %v2359 = vpack.c.b16 %v2245, %v2243
        %v2360 = vpack.c.b16 %v2246, %v2244
        %v2361 = vpack.c.b16 %v2249, %v2247
        %v2362 = vpack.c.b16 %v2250, %v2248
        %v2363 = vpack.c.b16 %v2253, %v2251
        %v2364 = vpack.c.b16 %v2254, %v2252
        %v2365 = vpack.c.b16 %v2257, %v2255
        %v2366 = vpack.c.b16 %v2258, %v2256
        %v2367 = vpack.c.b16 %v2261, %v2259
        %v2368 = vpack.c.b16 %v2262, %v2260
        %v2369 = vpack.c.b16 %v2265, %v2263
        %v2370 = vpack.c.b16 %v2266, %v2264
        %v2371 = vpack.c.b16 %v2269, %v2267
        %v2372 = vpack.c.b16 %v2270, %v2268
        %v2373 = vpack.c.b16 %v2273, %v2271
        %v2374 = vpack.c.b16 %v2274, %v2272
        %v2375 = vpack.c.b16 %v2277, %v2275
        %v2376 = vpack.c.b16 %v2278, %v2276
        %v2377 = vpack.c.b16 %v2281, %v2279
        %v2378 = vpack.c.b16 %v2282, %v2280
        %v2379 = vpack.c.b16 %v2285, %v2283
        %v2380 = vpack.c.b16 %v2286, %v2284
        %v2381 = vpack.c.b16 %v2289, %v2287
        %v2382 = vpack.c.b16 %v2290, %v2288
        %v2383 = vpack.c.b16 %v2293, %v2291
        %v2384 = vpack.c.b16 %v2294, %v2292
        %v2385 = vpack.c.b16 %v2297, %v2295
        %v2386 = vpack.c.b16 %v2298, %v2296
        %v2387 = vpack.c.b16 %v2301, %v2299
        %v2388 = vpack.c.b16 %v2302, %v2300
        %v2389 = vpack.c.b16 %v2305, %v2303
        %v2390 = vpack.c.b16 %v2306, %v2304
        %v2391 = vpack.c.b16 %v2309, %v2307
        %v2392 = vpack.c.b16 %v2310, %v2308
        %v2393 = vpack.c.b16 %v2313, %v2311
        %v2394 = vpack.c.b16 %v2314, %v2312
        %2475 = vmatpush.bf16.msra.mxu0 %v2329
        %2476 = vmatpush.bf16.msra.mxu0 %v2327
        %2477 = vmatpush.bf16.msra.mxu0 %v2325
        %2478 = vmatpush.bf16.msra.mxu0 %v2323
        %2479 = vmatpush.bf16.msra.mxu0 %v2321
        %2480 = vmatpush.bf16.msra.mxu0 %v2319
        %2481 = vmatpush.bf16.msra.mxu0 %v2317
        %2482 = vmatpush.bf16.msra.mxu0 %v2315
        %2483 = vmatmul.bf16.gmra.mxu0 %v1911
        %v2484 = vpop.f32.mrf.mxu0
        %v2485 = vadd.f32 0.0, %v2484
        %v2486 = vpop.f32.mrf.mxu0
        %v2487 = vadd.f32 0.0, %v2486
        %2488 = vmatmul.bf16.gmra.mxu0 %v1912
        %v2489 = vpop.f32.mrf.mxu0
        %v2490 = vadd.f32 0.0, %v2489
        %v2491 = vpop.f32.mrf.mxu0
        %v2492 = vadd.f32 0.0, %v2491
        %2493 = vmatmul.bf16.gmra.mxu0 %v1913
        %v2494 = vpop.f32.mrf.mxu0
        %v2495 = vadd.f32 0.0, %v2494
        %v2496 = vpop.f32.mrf.mxu0
        %v2497 = vadd.f32 0.0, %v2496
        %2498 = vmatmul.bf16.gmra.mxu0 %v1914
        %v2499 = vpop.f32.mrf.mxu0
        %v2500 = vadd.f32 0.0, %v2499
        %v2501 = vpop.f32.mrf.mxu0
        %2502 = vdwg.mxu0
        %2503 = vmatpush.bf16.msra.mxu0 %v2345
        %2504 = vmatpush.bf16.msra.mxu0 %v2343
        %2505 = vmatpush.bf16.msra.mxu0 %v2341
        %2506 = vmatpush.bf16.msra.mxu0 %v2339
        %2507 = vmatpush.bf16.msra.mxu0 %v2337
        %2508 = vmatpush.bf16.msra.mxu0 %v2335
        %2509 = vmatpush.bf16.msra.mxu0 %v2333
        %2510 = vmatpush.bf16.msra.mxu0 %v2331
        %2511 = vmatmul.bf16.gmra.mxu0 %v1930
        %v2512 = vpop.f32.mrf.mxu0
        %v2513 = vadd.f32 %v2485, %v2512
        %v2514 = vpop.f32.mrf.mxu0
        %v2515 = vadd.f32 %v2487, %v2514
        %2516 = vmatmul.bf16.gmra.mxu0 %v1938
        %v2517 = vpop.f32.mrf.mxu0
        %v2518 = vadd.f32 %v2490, %v2517
        %v2519 = vpop.f32.mrf.mxu0
        %v2520 = vadd.f32 %v2492, %v2519
        %2521 = vmatmul.bf16.gmra.mxu0 %v1946
        %v2522 = vpop.f32.mrf.mxu0
        %v2523 = vadd.f32 %v2495, %v2522
        %v2524 = vpop.f32.mrf.mxu0
        %v2525 = vadd.f32 %v2497, %v2524
        %2526 = vmatmul.bf16.gmra.mxu0 %v1949
        %v2527 = vpop.f32.mrf.mxu0
        %v2528 = vadd.f32 %v2500, %v2527
        %v2529 = vpop.f32.mrf.mxu0
        %2530 = vdwg.mxu0
        %2531 = vmatpush.bf16.msra.mxu0 %v2361
        %2532 = vmatpush.bf16.msra.mxu0 %v2359
        %2533 = vmatpush.bf16.msra.mxu0 %v2357
        %2534 = vmatpush.bf16.msra.mxu0 %v2355
        %2535 = vmatpush.bf16.msra.mxu0 %v2353
        %2536 = vmatpush.bf16.msra.mxu0 %v2351
        %2537 = vmatpush.bf16.msra.mxu0 %v2349
        %2538 = vmatpush.bf16.msra.mxu0 %v2347
        %2539 = vmatmul.bf16.gmra.mxu0 %v1956
        %v2540 = vpop.f32.mrf.mxu0
        %v2541 = vadd.f32 %v2513, %v2540
        %v2542 = vpop.f32.mrf.mxu0
        %v2543 = vadd.f32 %v2515, %v2542
        %2544 = vmatmul.bf16.gmra.mxu0 %v1958
        %v2545 = vpop.f32.mrf.mxu0
        %v2546 = vadd.f32 %v2518, %v2545
        %v2547 = vpop.f32.mrf.mxu0
        %v2548 = vadd.f32 %v2520, %v2547
        %2549 = vmatmul.bf16.gmra.mxu0 %v1960
        %v2550 = vpop.f32.mrf.mxu0
        %v2551 = vadd.f32 %v2523, %v2550
        %v2552 = vpop.f32.mrf.mxu0
        %v2553 = vadd.f32 %v2525, %v2552
        %2554 = vmatmul.bf16.gmra.mxu0 %v1959
        %v2555 = vpop.f32.mrf.mxu0
        %v2556 = vadd.f32 %v2528, %v2555
        %v2557 = vpop.f32.mrf.mxu0
        %2558 = vdwg.mxu0
        %2559 = vmatpush.bf16.msra.mxu0 %v2377
        %2560 = vmatpush.bf16.msra.mxu0 %v2375
        %2561 = vmatpush.bf16.msra.mxu0 %v2373
        %2562 = vmatpush.bf16.msra.mxu0 %v2371
        %2563 = vmatpush.bf16.msra.mxu0 %v2369
        %2564 = vmatpush.bf16.msra.mxu0 %v2367
        %2565 = vmatpush.bf16.msra.mxu0 %v2365
        %2566 = vmatpush.bf16.msra.mxu0 %v2363
        %2567 = vmatmul.bf16.gmra.mxu0 %v1971
        %v2568 = vpop.f32.mrf.mxu0
        %v2569 = vadd.f32 %v2541, %v2568
        %v2570 = vpop.f32.mrf.mxu0
        %v2571 = vadd.f32 %v2543, %v2570
        %2572 = vmatmul.bf16.gmra.mxu0 %v1975
        %v2573 = vpop.f32.mrf.mxu0
        %v2574 = vadd.f32 %v2546, %v2573
        %v2575 = vpop.f32.mrf.mxu0
        %v2576 = vadd.f32 %v2548, %v2575
        %2577 = vmatmul.bf16.gmra.mxu0 %v1979
        %v2578 = vpop.f32.mrf.mxu0
        %v2579 = vadd.f32 %v2551, %v2578
        %v2580 = vpop.f32.mrf.mxu0
        %v2581 = vadd.f32 %v2553, %v2580
        %2582 = vmatmul.bf16.gmra.mxu0 %v1978
        %v2583 = vpop.f32.mrf.mxu0
        %v2584 = vadd.f32 %v2556, %v2583
        %v2585 = vpop.f32.mrf.mxu0
        %2586 = vdwg.mxu0
        %2587 = vmatpush.bf16.msra.mxu0 %v2393
        %2588 = vmatpush.bf16.msra.mxu0 %v2391
        %2589 = vmatpush.bf16.msra.mxu0 %v2389
        %2590 = vmatpush.bf16.msra.mxu0 %v2387
        %2591 = vmatpush.bf16.msra.mxu0 %v2385
        %2592 = vmatpush.bf16.msra.mxu0 %v2383
        %2593 = vmatpush.bf16.msra.mxu0 %v2381
        %2594 = vmatpush.bf16.msra.mxu0 %v2379
        %2595 = vmatmul.bf16.gmra.mxu0 %v1986
        %v2596 = vpop.f32.mrf.mxu0
        %v2597 = vadd.f32 %v2569, %v2596
        %v2598 = vpop.f32.mrf.mxu0
        %v2599 = vadd.f32 %v2571, %v2598
        %2600 = vmatmul.bf16.gmra.mxu0 %v1988
        %v2601 = vpop.f32.mrf.mxu0
        %v2602 = vadd.f32 %v2574, %v2601
        %v2603 = vpop.f32.mrf.mxu0
        %v2604 = vadd.f32 %v2576, %v2603
        %2605 = vmatmul.bf16.gmra.mxu0 %v1990
        %v2606 = vpop.f32.mrf.mxu0
        %v2607 = vadd.f32 %v2579, %v2606
        %v2608 = vpop.f32.mrf.mxu0
        %v2609 = vadd.f32 %v2581, %v2608
        %2610 = vmatmul.bf16.gmra.mxu0 %v1989
        %v2611 = vpop.f32.mrf.mxu0
        %v2612 = vadd.f32 %v2584, %v2611
        %v2613 = vpop.f32.mrf.mxu0
        %2614 = vdwg.mxu0
        %2615 = vmatpush.bf16.msra.mxu0 %v2330
        %2616 = vmatpush.bf16.msra.mxu0 %v2328
        %2617 = vmatpush.bf16.msra.mxu0 %v2326
        %2618 = vmatpush.bf16.msra.mxu0 %v2324
        %2619 = vmatpush.bf16.msra.mxu0 %v2322
        %2620 = vmatpush.bf16.msra.mxu0 %v2320
        %2621 = vmatpush.bf16.msra.mxu0 %v2318
        %2622 = vmatpush.bf16.msra.mxu0 %v2316
        %2623 = vmatmul.bf16.gmra.mxu0 %v1911
        %v2624 = vpop.f32.mrf.mxu0
        %v2625 = vadd.f32 0.0, %v2624
        %v2626 = vpop.f32.mrf.mxu0
        %v2627 = vadd.f32 0.0, %v2626
        %2628 = vmatmul.bf16.gmra.mxu0 %v1912
        %v2629 = vpop.f32.mrf.mxu0
        %v2630 = vadd.f32 0.0, %v2629
        %v2631 = vpop.f32.mrf.mxu0
        %v2632 = vadd.f32 0.0, %v2631
        %2633 = vmatmul.bf16.gmra.mxu0 %v1913
        %v2634 = vpop.f32.mrf.mxu0
        %v2635 = vadd.f32 0.0, %v2634
        %v2636 = vpop.f32.mrf.mxu0
        %v2637 = vadd.f32 0.0, %v2636
        %2638 = vmatmul.bf16.gmra.mxu0 %v1914
        %v2639 = vpop.f32.mrf.mxu0
        %v2640 = vadd.f32 0.0, %v2639
        %v2641 = vpop.f32.mrf.mxu0
        %2642 = vdwg.mxu0
        %2643 = vmatpush.bf16.msra.mxu0 %v2346
        %2644 = vmatpush.bf16.msra.mxu0 %v2344
        %2645 = vmatpush.bf16.msra.mxu0 %v2342
        %2646 = vmatpush.bf16.msra.mxu0 %v2340
        %2647 = vmatpush.bf16.msra.mxu0 %v2338
        %2648 = vmatpush.bf16.msra.mxu0 %v2336
        %2649 = vmatpush.bf16.msra.mxu0 %v2334
        %2650 = vmatpush.bf16.msra.mxu0 %v2332
        %2651 = vmatmul.bf16.gmra.mxu0 %v1930
        %v2652 = vpop.f32.mrf.mxu0
        %v2653 = vadd.f32 %v2625, %v2652
        %v2654 = vpop.f32.mrf.mxu0
        %v2655 = vadd.f32 %v2627, %v2654
        %2656 = vmatmul.bf16.gmra.mxu0 %v1938
        %v2657 = vpop.f32.mrf.mxu0
        %v2658 = vadd.f32 %v2630, %v2657
        %v2659 = vpop.f32.mrf.mxu0
        %v2660 = vadd.f32 %v2632, %v2659
        %2661 = vmatmul.bf16.gmra.mxu0 %v1946
        %v2662 = vpop.f32.mrf.mxu0
        %v2663 = vadd.f32 %v2635, %v2662
        %v2664 = vpop.f32.mrf.mxu0
        %v2665 = vadd.f32 %v2637, %v2664
        %2666 = vmatmul.bf16.gmra.mxu0 %v1949
        %v2667 = vpop.f32.mrf.mxu0
        %v2668 = vadd.f32 %v2640, %v2667
        %v2669 = vpop.f32.mrf.mxu0
        %2670 = vdwg.mxu0
        %2671 = vmatpush.bf16.msra.mxu0 %v2362
        %2672 = vmatpush.bf16.msra.mxu0 %v2360
        %2673 = vmatpush.bf16.msra.mxu0 %v2358
        %2674 = vmatpush.bf16.msra.mxu0 %v2356
        %2675 = vmatpush.bf16.msra.mxu0 %v2354
        %2676 = vmatpush.bf16.msra.mxu0 %v2352
        %2677 = vmatpush.bf16.msra.mxu0 %v2350
        %2678 = vmatpush.bf16.msra.mxu0 %v2348
        %2679 = vmatmul.bf16.gmra.mxu0 %v1956
        %v2680 = vpop.f32.mrf.mxu0
        %v2681 = vadd.f32 %v2653, %v2680
        %v2682 = vpop.f32.mrf.mxu0
        %v2683 = vadd.f32 %v2655, %v2682
        %2684 = vmatmul.bf16.gmra.mxu0 %v1958
        %v2685 = vpop.f32.mrf.mxu0
        %v2686 = vadd.f32 %v2658, %v2685
        %v2687 = vpop.f32.mrf.mxu0
        %v2688 = vadd.f32 %v2660, %v2687
        %2689 = vmatmul.bf16.gmra.mxu0 %v1960
        %v2690 = vpop.f32.mrf.mxu0
        %v2691 = vadd.f32 %v2663, %v2690
        %v2692 = vpop.f32.mrf.mxu0
        %v2693 = vadd.f32 %v2665, %v2692
        %2694 = vmatmul.bf16.gmra.mxu0 %v1959
        %v2695 = vpop.f32.mrf.mxu0
        %v2696 = vadd.f32 %v2668, %v2695
        %v2697 = vpop.f32.mrf.mxu0
        %2698 = vdwg.mxu0
        %2699 = vmatpush.bf16.msra.mxu0 %v2378
        %2700 = vmatpush.bf16.msra.mxu0 %v2376
        %2701 = vmatpush.bf16.msra.mxu0 %v2374
        %2702 = vmatpush.bf16.msra.mxu0 %v2372
        %2703 = vmatpush.bf16.msra.mxu0 %v2370
        %2704 = vmatpush.bf16.msra.mxu0 %v2368
        %2705 = vmatpush.bf16.msra.mxu0 %v2366
        %2706 = vmatpush.bf16.msra.mxu0 %v2364
        %2707 = vmatmul.bf16.gmra.mxu0 %v1971
        %v2708 = vpop.f32.mrf.mxu0
        %v2709 = vadd.f32 %v2681, %v2708
        %v2710 = vpop.f32.mrf.mxu0
        %v2711 = vadd.f32 %v2683, %v2710
        %2712 = vmatmul.bf16.gmra.mxu0 %v1975
        %v2713 = vpop.f32.mrf.mxu0
        %v2714 = vadd.f32 %v2686, %v2713
        %v2715 = vpop.f32.mrf.mxu0
        %v2716 = vadd.f32 %v2688, %v2715
        %2717 = vmatmul.bf16.gmra.mxu0 %v1979
        %v2718 = vpop.f32.mrf.mxu0
        %v2719 = vadd.f32 %v2691, %v2718
        %v2720 = vpop.f32.mrf.mxu0
        %v2721 = vadd.f32 %v2693, %v2720
        %2722 = vmatmul.bf16.gmra.mxu0 %v1978
        %v2723 = vpop.f32.mrf.mxu0
        %v2724 = vadd.f32 %v2696, %v2723
        %v2725 = vpop.f32.mrf.mxu0
        %2726 = vdwg.mxu0
        %2727 = vmatpush.bf16.msra.mxu0 %v2394
        %2728 = vmatpush.bf16.msra.mxu0 %v2392
        %2729 = vmatpush.bf16.msra.mxu0 %v2390
        %2730 = vmatpush.bf16.msra.mxu0 %v2388
        %2731 = vmatpush.bf16.msra.mxu0 %v2386
        %2732 = vmatpush.bf16.msra.mxu0 %v2384
        %2733 = vmatpush.bf16.msra.mxu0 %v2382
        %2734 = vmatpush.bf16.msra.mxu0 %v2380
        %2735 = vmatmul.bf16.gmra.mxu0 %v1986
        %v2736 = vpop.f32.mrf.mxu0
        %v2737 = vadd.f32 %v2709, %v2736
        %v2738 = vpop.f32.mrf.mxu0
        %v2739 = vadd.f32 %v2711, %v2738
        %2740 = vmatmul.bf16.gmra.mxu0 %v1988
        %v2741 = vpop.f32.mrf.mxu0
        %v2742 = vadd.f32 %v2714, %v2741
        %v2743 = vpop.f32.mrf.mxu0
        %v2744 = vadd.f32 %v2716, %v2743
        %2745 = vmatmul.bf16.gmra.mxu0 %v1990
        %v2746 = vpop.f32.mrf.mxu0
        %v2747 = vadd.f32 %v2719, %v2746
        %v2748 = vpop.f32.mrf.mxu0
        %v2749 = vadd.f32 %v2721, %v2748
        %2750 = vmatmul.bf16.gmra.mxu0 %v1989
        %v2751 = vpop.f32.mrf.mxu0
        %v2752 = vadd.f32 %v2724, %v2751
        %v2753 = vpop.f32.mrf.mxu0
        %2754 = vdwg.mxu0
        %v2755 = vmax.f32 %v2597, %v2737
        %v2756 = vmax.f32 %v2599, %v2739
        %v2757 = vmax.f32 %v2602, %v2742
        %v2758 = vmax.f32 %v2604, %v2744
        %v2759 = vmax.f32 %v2607, %v2747
        %v2760 = vmax.f32 %v2609, %v2749
        %v2761 = vmax.f32 %v2612, %v2752
        %v2762 = vld [vmem:[%s6] sm:$0x1]
        %v2764 = vperm.slane %v2762, 0
        %v2766 = vadd.f32 %v2755, %v2764
        %v2767 = vadd.f32 %v2756, %v2764
        %v2768 = vadd.f32 %v2757, %v2764
        %v2769 = vadd.f32 %v2758, %v2764
        %v2770 = vadd.f32 %v2759, %v2764
        %v2771 = vadd.f32 %v2760, %v2764
        %v2772 = vadd.f32 %v2761, %v2764
        %v2773 = vmax.f32 %v2766, 0.0
        %v2774 = vmax.f32 %v2767, 0.0
        %v2775 = vmax.f32 %v2768, 0.0
        %v2776 = vmax.f32 %v2769, 0.0
        %v2777 = vmax.f32 %v2770, 0.0
        %v2778 = vmax.f32 %v2771, 0.0
        %v2779 = vmax.f32 %v2772, 0.0
        %v2780 = vpack.c.bf16 %v2774, %v2773
        %v2781 = vpack.c.bf16 %v2776, %v2775
        %v2782 = vpack.c.bf16 %v2778, %v2777
        %v2783 = vpack.c.bf16 %v2779, %v2779
        %v2784 = vld [vmem:[%s7] sm:$0xf]
        %v2785 = vld [vmem:[%s7 + $0x4] sm:$0xf]
        %v2786 = vld [vmem:[%s7 + $0x8] sm:$0x3]
        %v2790 = vunpack.c.l.b16 %v2784
        %v2791 = vunpack.c.l.b16 %v2785
        %v2792 = vunpack.c.l.b16 %v2786
        %v2793 = vpack.c.b16 %v2791, %v2790
        %v2794 = vpack.c.b16 %v2792, %v2792
        %vm2795 = vcmask 424960
        %v2797 = vsel %vm2795, %v2793, 0
        %v2800 = vsel %vm2795, %v2794, 0
        %vm2802 = vcmask 1041408
        %v2804 = vsel %vm2802, %v2783, 0
        %2806 = vmatpush.bf16.msra.mxu0 0
        %2807 = vmatpush.bf16.msra.mxu0 0
        %2808 = vmatpush.bf16.msra.mxu0 0
        %2809 = vmatpush.bf16.msra.mxu0 0
        %2810 = vmatpush.bf16.msra.mxu0 %v2804
        %2811 = vmatpush.bf16.msra.mxu0 %v2782
        %2812 = vmatpush.bf16.msra.mxu0 %v2781
        %2813 = vmatpush.bf16.msra.mxu0 %v2780
        %2814 = vmatmul.bf16.gmra.mxu0 %v2797
        %v2815 = vpop.f32.mrf.mxu0
        %v2816 = vadd.f32 0.0, %v2815
        %v2817 = vpop.f32.mrf.mxu0
        %v2818 = vadd.f32 0.0, %v2817
        %2819 = vmatmul.bf16.gmra.mxu0 %v2800
        %v2820 = vpop.f32.mrf.mxu0
        %v2821 = vadd.f32 0.0, %v2820
        %v2822 = vpop.f32.mrf.mxu0
        %2823 = vdwg.mxu0
        %v2824 = vld [vmem:[%s8] sm:$0xf]
        %v2825 = vld [vmem:[%s8 + $0x4] sm:$0xf]
        %v2826 = vld [vmem:[%s8 + $0x8] sm:$0x3]
        %v2830 = vunpack.c.l.b16 %v2824
        %v2831 = vunpack.c.l.b16 %v2825
        %v2832 = vunpack.c.l.b16 %v2826
        %v2833 = vpack.c.b16 %v2831, %v2830
        %v2834 = vpack.c.b16 %v2832, %v2832
        %v2836 = vsel %vm2795, %v2833, 0
        %v2839 = vsel %vm2795, %v2834, 0
        %2841 = vmatpush.bf16.msra.mxu0 0
        %2842 = vmatpush.bf16.msra.mxu0 0
        %2843 = vmatpush.bf16.msra.mxu0 0
        %2844 = vmatpush.bf16.msra.mxu0 0
        %2845 = vmatpush.bf16.msra.mxu0 %v2804
        %2846 = vmatpush.bf16.msra.mxu0 %v2782
        %2847 = vmatpush.bf16.msra.mxu0 %v2781
        %2848 = vmatpush.bf16.msra.mxu0 %v2780
        %2849 = vmatmul.bf16.gmra.mxu0 %v2836
        %v2850 = vpop.f32.mrf.mxu0
        %v2851 = vadd.f32 0.0, %v2850
        %v2852 = vpop.f32.mrf.mxu0
        %v2853 = vadd.f32 0.0, %v2852
        %2854 = vmatmul.bf16.gmra.mxu0 %v2839
        %v2855 = vpop.f32.mrf.mxu0
        %v2856 = vadd.f32 0.0, %v2855
        %v2857 = vpop.f32.mrf.mxu0
        %2858 = vdwg.mxu0
        %v2859 = vmax.f32 %v2816, %v2851
        %v2860 = vmax.f32 %v2818, %v2853
        %v2861 = vmax.f32 %v2821, %v2856
        %v2862 = vpack.c.bf16 %v2859, %v2859
        %v2863 = vpack.c.bf16 %v2860, %v2860
        %v2864 = vpack.c.bf16 %v2861, %v2861
        %v2865 = vld [vmem:[%s9] sm:$0xf]
        %v2866 = vld [vmem:[%s9 + $0x4] sm:$0xf]
        %v2867 = vld [vmem:[%s9 + $0x8] sm:$0xf]
        %v2868 = vld [vmem:[%s9 + $0xc] sm:$0xf]
        %v2869 = vld [vmem:[%s9 + $0x10] sm:$0xf]
        %v2870 = vld [vmem:[%s9 + $0x14] sm:$0xf]
        %v2871 = vld [vmem:[%s9 + $0x18] sm:$0xf]
        %v2872 = vld [vmem:[%s9 + $0x1c] sm:$0xf]
        %v2873 = vld [vmem:[%s9 + $0x20] sm:$0xf]
        %v2874 = vld [vmem:[%s9 + $0x24] sm:$0xf]
        %v2875 = vld [vmem:[%s9 + $0x28] sm:$0xf]
        %v2876 = vld [vmem:[%s9 + $0x2c] sm:$0xf]
        %v2877 = vld [vmem:[%s9 + $0x30] sm:$0xf]
        %v2878 = vld [vmem:[%s9 + $0x34] sm:$0xf]
        %v2879 = vld [vmem:[%s9 + $0x38] sm:$0xf]
        %v2880 = vld [vmem:[%s9 + $0x3c] sm:$0xf]
        %s2881 = scalar_lea.vmem %s9, 64
        %v2882 = vld [vmem:[%s2881] sm:$0xf]
        %v2883 = vld [vmem:[%s2881 + $0x4] sm:$0xf]
        %v2884 = vld [vmem:[%s2881 + $0x8] sm:$0xf]
        %v2885 = vld [vmem:[%s2881 + $0xc] sm:$0xf]
        %v2886 = vld [vmem:[%s2881 + $0x10] sm:$0xf]
        %v2887 = vld [vmem:[%s2881 + $0x14] sm:$0xf]
        %v2888 = vld [vmem:[%s2881 + $0x18] sm:$0xf]
        %v2889 = vld [vmem:[%s2881 + $0x1c] sm:$0xf]
        %v2890 = vld [vmem:[%s2881 + $0x20] sm:$0xf]
        %v2891 = vld [vmem:[%s2881 + $0x24] sm:$0xf]
        %v2892 = vld [vmem:[%s2881 + $0x28] sm:$0xf]
        %v2893 = vld [vmem:[%s2881 + $0x2c] sm:$0xf]
        %v2894 = vld [vmem:[%s2881 + $0x30] sm:$0xf]
        %v2895 = vld [vmem:[%s2881 + $0x34] sm:$0xf]
        %v2896 = vld [vmem:[%s2881 + $0x38] sm:$0xf]
        %v2897 = vld [vmem:[%s2881 + $0x3c] sm:$0xf]
        %v2899 = vunpack.c.l.b16 %v2862
        %v2900 = vpack.c.b16 %v2899, %v2899
        %v2901 = vrot.slane %v2900, 2
        %v2919 = vunpack.c.l.b16 %v2882
        %v2920 = vunpack.c.l.b16 %v2883
        %v2921 = vunpack.c.l.b16 %v2884
        %v2922 = vunpack.c.l.b16 %v2885
        %v2923 = vunpack.c.l.b16 %v2886
        %v2924 = vunpack.c.l.b16 %v2887
        %v2925 = vunpack.c.l.b16 %v2888
        %v2926 = vunpack.c.l.b16 %v2889
        %v2927 = vunpack.c.l.b16 %v2890
        %v2928 = vunpack.c.l.b16 %v2891
        %v2929 = vunpack.c.l.b16 %v2892
        %v2930 = vunpack.c.l.b16 %v2893
        %v2931 = vunpack.c.l.b16 %v2894
        %v2932 = vunpack.c.l.b16 %v2895
        %v2933 = vunpack.c.l.b16 %v2896
        %v2934 = vunpack.c.l.b16 %v2897
        %v2935 = vpack.c.b16 %v2920, %v2919
        %v2936 = vpack.c.b16 %v2922, %v2921
        %v2937 = vpack.c.b16 %v2924, %v2923
        %v2938 = vpack.c.b16 %v2926, %v2925
        %v2939 = vpack.c.b16 %v2928, %v2927
        %v2940 = vpack.c.b16 %v2930, %v2929
        %v2941 = vpack.c.b16 %v2932, %v2931
        %v2942 = vpack.c.b16 %v2934, %v2933
        %2951 = vmatpush.bf16.msra.mxu0 %v2942
        %2952 = vmatpush.bf16.msra.mxu0 %v2941
        %2953 = vmatpush.bf16.msra.mxu0 %v2940
        %2954 = vmatpush.bf16.msra.mxu0 %v2939
        %2955 = vmatpush.bf16.msra.mxu0 %v2938
        %2956 = vmatpush.bf16.msra.mxu0 %v2937
        %2957 = vmatpush.bf16.msra.mxu0 %v2936
        %2958 = vmatpush.bf16.msra.mxu0 %v2935
        %2959 = vmatmul.bf16.gmra.mxu0 %v2901
        %v2960 = vpop.f32.mrf.mxu0
        %v2961 = vadd.f32 0.0, %v2960
        %v2962 = vpop.f32.mrf.mxu0
        %2963 = vdwg.mxu0
        %v2980 = vunpack.c.l.b16 %v2865
        %v2981 = vunpack.c.l.b16 %v2866
        %v2982 = vunpack.c.l.b16 %v2867
        %v2983 = vunpack.c.l.b16 %v2868
        %v2984 = vunpack.c.l.b16 %v2869
        %v2985 = vunpack.c.l.b16 %v2870
        %v2986 = vunpack.c.l.b16 %v2871
        %v2987 = vunpack.c.l.b16 %v2872
        %v2988 = vunpack.c.l.b16 %v2873
        %v2989 = vunpack.c.l.b16 %v2874
        %v2990 = vunpack.c.l.b16 %v2875
        %v2991 = vunpack.c.l.b16 %v2876
        %v2992 = vunpack.c.l.b16 %v2877
        %v2993 = vunpack.c.l.b16 %v2878
        %v2994 = vunpack.c.l.b16 %v2879
        %v2995 = vunpack.c.l.b16 %v2880
        %v2996 = vpack.c.b16 %v2981, %v2980
        %v2997 = vpack.c.b16 %v2983, %v2982
        %v2998 = vpack.c.b16 %v2985, %v2984
        %v2999 = vpack.c.b16 %v2987, %v2986
        %v3000 = vpack.c.b16 %v2989, %v2988
        %v3001 = vpack.c.b16 %v2991, %v2990
        %v3002 = vpack.c.b16 %v2993, %v2992
        %v3003 = vpack.c.b16 %v2995, %v2994
        %3012 = vmatpush.bf16.msra.mxu0 %v3003
        %3013 = vmatpush.bf16.msra.mxu0 %v3002
        %3014 = vmatpush.bf16.msra.mxu0 %v3001
        %3015 = vmatpush.bf16.msra.mxu0 %v3000
        %3016 = vmatpush.bf16.msra.mxu0 %v2999
        %3017 = vmatpush.bf16.msra.mxu0 %v2998
        %3018 = vmatpush.bf16.msra.mxu0 %v2997
        %3019 = vmatpush.bf16.msra.mxu0 %v2996
        %3020 = vmatmul.bf16.gmra.mxu0 %v2862
        %v3021 = vpop.f32.mrf.mxu0
        %v3022 = vadd.f32 %v2961, %v3021
        %v3023 = vpop.f32.mrf.mxu0
        %3024 = vdwg.mxu0
        %s3025 = scalar_lea.vmem %s9, 128
        %v3026 = vld [vmem:[%s3025] sm:$0xf]
        %v3027 = vld [vmem:[%s3025 + $0x4] sm:$0xf]
        %v3028 = vld [vmem:[%s3025 + $0x8] sm:$0xf]
        %v3029 = vld [vmem:[%s3025 + $0xc] sm:$0xf]
        %v3030 = vld [vmem:[%s3025 + $0x10] sm:$0xf]
        %v3031 = vld [vmem:[%s3025 + $0x14] sm:$0xf]
        %v3032 = vld [vmem:[%s3025 + $0x18] sm:$0xf]
        %v3033 = vld [vmem:[%s3025 + $0x1c] sm:$0xf]
        %v3034 = vld [vmem:[%s3025 + $0x20] sm:$0xf]
        %v3035 = vld [vmem:[%s3025 + $0x24] sm:$0xf]
        %v3036 = vld [vmem:[%s3025 + $0x28] sm:$0xf]
        %v3037 = vld [vmem:[%s3025 + $0x2c] sm:$0xf]
        %v3038 = vld [vmem:[%s3025 + $0x30] sm:$0xf]
        %v3039 = vld [vmem:[%s3025 + $0x34] sm:$0xf]
        %v3040 = vld [vmem:[%s3025 + $0x38] sm:$0xf]
        %v3041 = vld [vmem:[%s3025 + $0x3c] sm:$0xf]
        %v3058 = vunpack.c.l.b16 %v3026
        %v3059 = vunpack.c.l.b16 %v3027
        %v3060 = vunpack.c.l.b16 %v3028
        %v3061 = vunpack.c.l.b16 %v3029
        %v3062 = vunpack.c.l.b16 %v3030
        %v3063 = vunpack.c.l.b16 %v3031
        %v3064 = vunpack.c.l.b16 %v3032
        %v3065 = vunpack.c.l.b16 %v3033
        %v3066 = vunpack.c.l.b16 %v3034
        %v3067 = vunpack.c.l.b16 %v3035
        %v3068 = vunpack.c.l.b16 %v3036
        %v3069 = vunpack.c.l.b16 %v3037
        %v3070 = vunpack.c.l.b16 %v3038
        %v3071 = vunpack.c.l.b16 %v3039
        %v3072 = vunpack.c.l.b16 %v3040
        %v3073 = vunpack.c.l.b16 %v3041
        %v3074 = vpack.c.b16 %v3059, %v3058
        %v3075 = vpack.c.b16 %v3061, %v3060
        %v3076 = vpack.c.b16 %v3063, %v3062
        %v3077 = vpack.c.b16 %v3065, %v3064
        %v3078 = vpack.c.b16 %v3067, %v3066
        %v3079 = vpack.c.b16 %v3069, %v3068
        %v3080 = vpack.c.b16 %v3071, %v3070
        %v3081 = vpack.c.b16 %v3073, %v3072
        %3090 = vmatpush.bf16.msra.mxu0 %v3081
        %3091 = vmatpush.bf16.msra.mxu0 %v3080
        %3092 = vmatpush.bf16.msra.mxu0 %v3079
        %3093 = vmatpush.bf16.msra.mxu0 %v3078
        %3094 = vmatpush.bf16.msra.mxu0 %v3077
        %3095 = vmatpush.bf16.msra.mxu0 %v3076
        %3096 = vmatpush.bf16.msra.mxu0 %v3075
        %3097 = vmatpush.bf16.msra.mxu0 %v3074
        %3098 = vmatmul.bf16.gmra.mxu0 %v2863
        %v3099 = vpop.f32.mrf.mxu0
        %v3100 = vadd.f32 0.0, %v3099
        %v3101 = vpop.f32.mrf.mxu0
        %3102 = vdwg.mxu0
        %v3103 = vadd.f32 %v3022, %v3100
        %s3104 = scalar_lea.vmem %s9, 192
        %v3105 = vld [vmem:[%s3104] sm:$0xf]
        %v3106 = vld [vmem:[%s3104 + $0x4] sm:$0xf]
        %v3107 = vld [vmem:[%s3104 + $0x8] sm:$0xf]
        %v3108 = vld [vmem:[%s3104 + $0xc] sm:$0xf]
        %v3109 = vld [vmem:[%s3104 + $0x10] sm:$0xf]
        %v3110 = vld [vmem:[%s3104 + $0x14] sm:$0xf]
        %v3111 = vld [vmem:[%s3104 + $0x18] sm:$0xf]
        %v3112 = vld [vmem:[%s3104 + $0x1c] sm:$0xf]
        %v3113 = vld [vmem:[%s3104 + $0x20] sm:$0xf]
        %v3114 = vld [vmem:[%s3104 + $0x24] sm:$0xf]
        %v3115 = vld [vmem:[%s3104 + $0x28] sm:$0xf]
        %v3116 = vld [vmem:[%s3104 + $0x2c] sm:$0xf]
        %v3117 = vld [vmem:[%s3104 + $0x30] sm:$0xf]
        %v3118 = vld [vmem:[%s3104 + $0x34] sm:$0xf]
        %v3119 = vld [vmem:[%s3104 + $0x38] sm:$0xf]
        %v3120 = vld [vmem:[%s3104 + $0x3c] sm:$0xf]
        %v3122 = vunpack.c.l.b16 %v2863
        %v3123 = vpack.c.b16 %v3122, %v3122
        %v3124 = vrot.slane %v3123, 2
        %v3142 = vunpack.c.l.b16 %v3105
        %v3143 = vunpack.c.l.b16 %v3106
        %v3144 = vunpack.c.l.b16 %v3107
        %v3145 = vunpack.c.l.b16 %v3108
        %v3146 = vunpack.c.l.b16 %v3109
        %v3147 = vunpack.c.l.b16 %v3110
        %v3148 = vunpack.c.l.b16 %v3111
        %v3149 = vunpack.c.l.b16 %v3112
        %v3150 = vunpack.c.l.b16 %v3113
        %v3151 = vunpack.c.l.b16 %v3114
        %v3152 = vunpack.c.l.b16 %v3115
        %v3153 = vunpack.c.l.b16 %v3116
        %v3154 = vunpack.c.l.b16 %v3117
        %v3155 = vunpack.c.l.b16 %v3118
        %v3156 = vunpack.c.l.b16 %v3119
        %v3157 = vunpack.c.l.b16 %v3120
        %v3158 = vpack.c.b16 %v3143, %v3142
        %v3159 = vpack.c.b16 %v3145, %v3144
        %v3160 = vpack.c.b16 %v3147, %v3146
        %v3161 = vpack.c.b16 %v3149, %v3148
        %v3162 = vpack.c.b16 %v3151, %v3150
        %v3163 = vpack.c.b16 %v3153, %v3152
        %v3164 = vpack.c.b16 %v3155, %v3154
        %v3165 = vpack.c.b16 %v3157, %v3156
        %3174 = vmatpush.bf16.msra.mxu0 %v3165
        %3175 = vmatpush.bf16.msra.mxu0 %v3164
        %3176 = vmatpush.bf16.msra.mxu0 %v3163
        %3177 = vmatpush.bf16.msra.mxu0 %v3162
        %3178 = vmatpush.bf16.msra.mxu0 %v3161
        %3179 = vmatpush.bf16.msra.mxu0 %v3160
        %3180 = vmatpush.bf16.msra.mxu0 %v3159
        %3181 = vmatpush.bf16.msra.mxu0 %v3158
        %3182 = vmatmul.bf16.gmra.mxu0 %v3124
        %v3183 = vpop.f32.mrf.mxu0
        %v3184 = vadd.f32 0.0, %v3183
        %v3185 = vpop.f32.mrf.mxu0
        %3186 = vdwg.mxu0
        %v3187 = vadd.f32 %v3103, %v3184
        %s3188 = scalar_lea.vmem %s9, 256
        %v3189 = vld [vmem:[%s3188] sm:$0xf]
        %v3190 = vld [vmem:[%s3188 + $0x4] sm:$0xf]
        %v3191 = vld [vmem:[%s3188 + $0x8] sm:$0xf]
        %v3192 = vld [vmem:[%s3188 + $0xc] sm:$0xf]
        %v3193 = vld [vmem:[%s3188 + $0x10] sm:$0xf]
        %v3194 = vld [vmem:[%s3188 + $0x14] sm:$0xf]
        %v3195 = vld [vmem:[%s3188 + $0x18] sm:$0xf]
        %v3196 = vld [vmem:[%s3188 + $0x1c] sm:$0xf]
        %v3197 = vld [vmem:[%s3188 + $0x20] sm:$0xf]
        %v3198 = vld [vmem:[%s3188 + $0x24] sm:$0xf]
        %v3199 = vld [vmem:[%s3188 + $0x28] sm:$0xf]
        %v3200 = vld [vmem:[%s3188 + $0x2c] sm:$0xf]
        %v3201 = vld [vmem:[%s3188 + $0x30] sm:$0xf]
        %v3202 = vld [vmem:[%s3188 + $0x34] sm:$0xf]
        %v3203 = vld [vmem:[%s3188 + $0x38] sm:$0xf]
        %v3204 = vld [vmem:[%s3188 + $0x3c] sm:$0xf]
        %v3221 = vunpack.c.l.b16 %v3189
        %v3222 = vunpack.c.l.b16 %v3190
        %v3223 = vunpack.c.l.b16 %v3191
        %v3224 = vunpack.c.l.b16 %v3192
        %v3225 = vunpack.c.l.b16 %v3193
        %v3226 = vunpack.c.l.b16 %v3194
        %v3227 = vunpack.c.l.b16 %v3195
        %v3228 = vunpack.c.l.b16 %v3196
        %v3229 = vunpack.c.l.b16 %v3197
        %v3230 = vunpack.c.l.b16 %v3198
        %v3231 = vunpack.c.l.b16 %v3199
        %v3232 = vunpack.c.l.b16 %v3200
        %v3233 = vunpack.c.l.b16 %v3201
        %v3234 = vunpack.c.l.b16 %v3202
        %v3235 = vunpack.c.l.b16 %v3203
        %v3236 = vunpack.c.l.b16 %v3204
        %v3237 = vpack.c.b16 %v3222, %v3221
        %v3238 = vpack.c.b16 %v3224, %v3223
        %v3239 = vpack.c.b16 %v3226, %v3225
        %v3240 = vpack.c.b16 %v3228, %v3227
        %v3241 = vpack.c.b16 %v3230, %v3229
        %v3242 = vpack.c.b16 %v3232, %v3231
        %v3243 = vpack.c.b16 %v3234, %v3233
        %v3244 = vpack.c.b16 %v3236, %v3235
        %3253 = vmatpush.bf16.msra.mxu0 %v3244
        %3254 = vmatpush.bf16.msra.mxu0 %v3243
        %3255 = vmatpush.bf16.msra.mxu0 %v3242
        %3256 = vmatpush.bf16.msra.mxu0 %v3241
        %3257 = vmatpush.bf16.msra.mxu0 %v3240
        %3258 = vmatpush.bf16.msra.mxu0 %v3239
        %3259 = vmatpush.bf16.msra.mxu0 %v3238
        %3260 = vmatpush.bf16.msra.mxu0 %v3237
        %3261 = vmatmul.bf16.gmra.mxu0 %v2864
        %v3262 = vpop.f32.mrf.mxu0
        %v3263 = vadd.f32 0.0, %v3262
        %v3264 = vpop.f32.mrf.mxu0
        %3265 = vdwg.mxu0
        %v3266 = vadd.f32 %v3187, %v3263
        %v3267 = vld [vmem:[%s10] sm:$0x1]
        %v3269 = vperm.slane %v3267, 0
        %v3271 = vadd.f32 %v3266, %v3269
        %v3272 = vmax.f32 %v3271, 0.0
        %v3273 = vpack.c.bf16 %v3272, %v3272
        %v3274 = vld [vmem:[%s11] sm:$0xf]
        %v3275 = vld [vmem:[%s11 + $0x4] sm:$0xf]
        %v3276 = vld [vmem:[%s11 + $0x8] sm:$0xf]
        %v3277 = vld [vmem:[%s11 + $0xc] sm:$0xf]
        %v3278 = vld [vmem:[%s11 + $0x10] sm:$0xf]
        %v3279 = vld [vmem:[%s11 + $0x14] sm:$0xf]
        %v3280 = vld [vmem:[%s11 + $0x18] sm:$0xf]
        %v3281 = vld [vmem:[%s11 + $0x1c] sm:$0xf]
        %v3282 = vld [vmem:[%s11 + $0x20] sm:$0xf]
        %v3283 = vld [vmem:[%s11 + $0x24] sm:$0xf]
        %v3284 = vld [vmem:[%s11 + $0x28] sm:$0xf]
        %v3285 = vld [vmem:[%s11 + $0x2c] sm:$0xf]
        %v3286 = vld [vmem:[%s11 + $0x30] sm:$0xf]
        %v3287 = vld [vmem:[%s11 + $0x34] sm:$0xf]
        %v3288 = vld [vmem:[%s11 + $0x38] sm:$0xf]
        %v3289 = vld [vmem:[%s11 + $0x3c] sm:$0xf]
        %v3290 = vld [vmem:[%s12] sm:$0x1]
        %v3292 = vperm.slane %v3290, 0
        %v3310 = vunpack.c.l.b16 %v3274
        %v3311 = vunpack.c.l.b16 %v3275
        %v3312 = vunpack.c.l.b16 %v3276
        %v3313 = vunpack.c.l.b16 %v3277
        %v3314 = vunpack.c.l.b16 %v3278
        %v3315 = vunpack.c.l.b16 %v3279
        %v3316 = vunpack.c.l.b16 %v3280
        %v3317 = vunpack.c.l.b16 %v3281
        %v3318 = vunpack.c.l.b16 %v3282
        %v3319 = vunpack.c.l.b16 %v3283
        %v3320 = vunpack.c.l.b16 %v3284
        %v3321 = vunpack.c.l.b16 %v3285
        %v3322 = vunpack.c.l.b16 %v3286
        %v3323 = vunpack.c.l.b16 %v3287
        %v3324 = vunpack.c.l.b16 %v3288
        %v3325 = vunpack.c.l.b16 %v3289
        %v3326 = vpack.c.b16 %v3311, %v3310
        %v3327 = vpack.c.b16 %v3313, %v3312
        %v3328 = vpack.c.b16 %v3315, %v3314
        %v3329 = vpack.c.b16 %v3317, %v3316
        %v3330 = vpack.c.b16 %v3319, %v3318
        %v3331 = vpack.c.b16 %v3321, %v3320
        %v3332 = vpack.c.b16 %v3323, %v3322
        %v3333 = vpack.c.b16 %v3325, %v3324
        %3342 = vmatpush.bf16.msra.mxu0 %v3333
        %3343 = vmatpush.bf16.msra.mxu0 %v3332
        %3344 = vmatpush.bf16.msra.mxu0 %v3331
        %3345 = vmatpush.bf16.msra.mxu0 %v3330
        %3346 = vmatpush.bf16.msra.mxu0 %v3329
        %3347 = vmatpush.bf16.msra.mxu0 %v3328
        %3348 = vmatpush.bf16.msra.mxu0 %v3327
        %3349 = vmatpush.bf16.msra.mxu0 %v3326
        %3350 = vmatmul.bf16.gmra.mxu0 %v3273
        %v3351 = vpop.f32.mrf.mxu0
        %v3352 = vadd.f32 %v3292, %v3351
        %v3353 = vpop.f32.mrf.mxu0
        %3354 = vdwg.mxu0
        %v3355 = vmax.f32 %v3352, 0.0
        %v3356 = vpack.c.bf16 %v3355, %v3355
        %v3357 = vld [vmem:[%s13] sm:$0xf]
        %v3358 = vld [vmem:[%s13 + $0x4] sm:$0xf]
        %v3359 = vld [vmem:[%s13 + $0x8] sm:$0xf]
        %v3360 = vld [vmem:[%s13 + $0xc] sm:$0xf]
        %v3361 = vld [vmem:[%s13 + $0x10] sm:$0xf]
        %v3362 = vld [vmem:[%s13 + $0x14] sm:$0xf]
        %v3363 = vld [vmem:[%s13 + $0x18] sm:$0xf]
        %v3364 = vld [vmem:[%s13 + $0x1c] sm:$0xf]
        %v3365 = vld [vmem:[%s13 + $0x20] sm:$0xf]
        %v3366 = vld [vmem:[%s13 + $0x24] sm:$0xf]
        %v3367 = vld [vmem:[%s13 + $0x28] sm:$0xf]
        %v3368 = vld [vmem:[%s13 + $0x2c] sm:$0xf]
        %v3369 = vld [vmem:[%s13 + $0x30] sm:$0xf]
        %v3370 = vld [vmem:[%s13 + $0x34] sm:$0xf]
        %v3371 = vld [vmem:[%s13 + $0x38] sm:$0xf]
        %v3372 = vld [vmem:[%s13 + $0x3c] sm:$0xf]
        %v3373 = vld [vmem:[%s14] sm:$0x1]
        %v3375 = vperm.slane %v3373, 0
        %v3393 = vunpack.c.l.b16 %v3357
        %v3394 = vunpack.c.l.b16 %v3358
        %v3395 = vunpack.c.l.b16 %v3359
        %v3396 = vunpack.c.l.b16 %v3360
        %v3397 = vunpack.c.l.b16 %v3361
        %v3398 = vunpack.c.l.b16 %v3362
        %v3399 = vunpack.c.l.b16 %v3363
        %v3400 = vunpack.c.l.b16 %v3364
        %v3401 = vunpack.c.l.b16 %v3365
        %v3402 = vunpack.c.l.b16 %v3366
        %v3403 = vunpack.c.l.b16 %v3367
        %v3404 = vunpack.c.l.b16 %v3368
        %v3405 = vunpack.c.l.b16 %v3369
        %v3406 = vunpack.c.l.b16 %v3370
        %v3407 = vunpack.c.l.b16 %v3371
        %v3408 = vunpack.c.l.b16 %v3372
        %v3409 = vpack.c.b16 %v3394, %v3393
        %v3410 = vpack.c.b16 %v3396, %v3395
        %v3411 = vpack.c.b16 %v3398, %v3397
        %v3412 = vpack.c.b16 %v3400, %v3399
        %v3413 = vpack.c.b16 %v3402, %v3401
        %v3414 = vpack.c.b16 %v3404, %v3403
        %v3415 = vpack.c.b16 %v3406, %v3405
        %v3416 = vpack.c.b16 %v3408, %v3407
        %3425 = vmatpush.bf16.msra.mxu0 %v3416
        %3426 = vmatpush.bf16.msra.mxu0 %v3415
        %3427 = vmatpush.bf16.msra.mxu0 %v3414
        %3428 = vmatpush.bf16.msra.mxu0 %v3413
        %3429 = vmatpush.bf16.msra.mxu0 %v3412
        %3430 = vmatpush.bf16.msra.mxu0 %v3411
        %3431 = vmatpush.bf16.msra.mxu0 %v3410
        %3432 = vmatpush.bf16.msra.mxu0 %v3409
        %3433 = vmatmul.bf16.gmra.mxu0 %v3356
        %v3434 = vpop.f32.mrf.mxu0
        %v3435 = vadd.f32 %v3375, %v3434
        %v3436 = vpop.f32.mrf.mxu0
        %3437 = vdwg.mxu0
        %3438 = vst [vmem:[%s487] sm:$0xf] %v3435
        %s3439 = sand.u32 %s357, 1
        %s3440 = scalar_lea.sflag [#allocation3], %s3439
        %s3441 = sand.u32 %s357, 1
        %s3442 = smul.addr %s3441, 4
        %s3443 = scalar_lea.vmem [#allocation2], %s3442
        // Predicated region
        $region81: #{net_forward.1} parent=79 // pred_check
          %p3444 = pneg %p367
        $region82: #{net_forward.1} parent=79 // pred_check_branch
          %3446 = sbr.rel (%p3444) target = $region84
        $region83: #{net_forward.1} parent=79 // pred_region
          %3448 = vsyncadd %s3440, 0
          %s3449 = smul.addr %s29, 4
          %s3450 = scalar_lea.hbm %s15, %s3449
          %s3452 = sshll.u32 %s3443, 4
          %s3453 = int_to_ptr.vmem [resolvable:$true] %s3452
          %s3454 = sshll.u32 %s3450, 4
          %s3455 = int_to_ptr.hbm [resolvable:$true] %s3454
          %3457 = dma.vmem_to_hbm [thread:$0]  %s3453, 64, %s3455, %s3440
        $region84: #{net_forward.1} parent=79 // pred_fallthru
          _
      $region80: #{net_forward.1} parent=5 // pred_fallthru
        _
      %p3458 = scmp.le.s32.totalorder 2, %s24
      // Predicated region
      $region85: #{net_forward.1} parent=5 // pred_check
        %p3459 = pneg %p3458
      $region86: #{net_forward.1} parent=5 // pred_check_branch
        %3461 = sbr.rel (%p3459) target = $region88
      $region87: #{net_forward.1} parent=5 // pred_region
        %s3462 = ssub.s32 %s24, 2
        // Predicated region
        $region89: #{net_forward.1} parent=87 // pred_check
          %p3463 = pneg %p373
        $region90: #{net_forward.1} parent=87 // pred_check_branch
          %3465 = sbr.rel (%p3463) target = $region92
        $region91: #{net_forward.1} parent=87 // pred_region
          %s3466 = sand.u32 %s358, 1
          %s3467 = scalar_lea.sflag [#allocation3], %s3466
          %s3468 = sand.u32 %s358, 1
          %s3469 = smul.addr %s3468, 4
          %s3470 = scalar_lea.vmem [#allocation2], %s3469
          %3472 = dma.done %s3467, 64
        $region92: #{net_forward.1} parent=87 // pred_fallthru
          _
      $region88: #{net_forward.1} parent=5 // pred_fallthru
        _
    $region6: #{net_forward.1} parent=1 // loop_footer
      %s28 = sadd.s32 1, %s24
    $region7: #{net_forward.1} parent=1 // loop_footer_branch
      %23 = sbr.rel target = $region3
    $region8: #{net_forward.1} parent=1 // loop_exit
      _
    %3473 = vsyncpa [#allocation3], 1
    %s3474 = scalar_lea.sflag [#allocation3], 1
    %3475 = vsyncpa %s3474, 1

</llo_original>
